<compile_context>
chip_gen: v5e
topology: v5e:2x2
jax: 0.10.0
libtpu: 0.0.40
codegen_flags: <defaults>
</compile_context>

<pallas_src>
import numpy as np
import jax
import jax.numpy as jnp
from jax.experimental import pallas as pl
from jax.experimental.pallas import tpu as pltpu

NUM_RAYS = 64  # small synthetic size consistent with the module

# (Cin, Cout, kernel, stride, padding, dilation) for the 6 backbone convs
CONV_CFG = [
    (1,   32, 5, 2, 2, 1),
    (32,  64, 5, 2, 2, 1),
    (64, 128, 5, 2, 2, 1),
    (128, 128, 3, 1, 2, 2),
    (128, 128, 3, 1, 4, 4),
    (128, 256, 3, 2, 1, 1),
]
# (in, out) for the 3 head Linears
HEAD_CFG = [(256, 128), (128, 64), (64, 3)]


# ----------------------------------------------------------------------------
# Static geometry helpers
# ----------------------------------------------------------------------------
def _conv_geometry(length):
    """Per-layer (Lin, Lpad, Lout, Lz); Lz = #stride-1 positions needed."""
    geoms = []
    lin = length
    for _cin, _cout, k, s, p, d in CONV_CFG:
        lpad = lin + 2 * p
        lout = (lpad - d * (k - 1) - 1) // s + 1
        lz = (lout - 1) * s + 1
        geoms.append((lin, lpad, lout, lz))
        lin = lout
    return geoms


def _selection_and_pool(length, batch):
    """Host-built 0/1 constants.

    sel[i]: [B*Lout_i, (B-1)*Lpad_i + Lz_i] picks the strided, per-sample
            valid output rows out of the batch-concatenated tap accumulator.
    pool  : [B, B*Lout_last] with 1/Lout_last entries = AdaptiveAvgPool1d(1).
    """
    geoms = _conv_geometry(length)
    sels = []
    for (_cin, _cout, _k, s, _p, _d), (_lin, lpad, lout, lz) in zip(
            CONV_CFG, geoms):
        rows_in = (batch - 1) * lpad + lz
        sel = np.zeros((batch * lout, rows_in), np.float32)
        for b in range(batch):
            for t in range(lout):
                sel[b * lout + t, b * lpad + t * s] = 1.0
        sels.append(sel)
    lout_last = geoms[-1][2]
    pool = np.zeros((batch, batch * lout_last), np.float32)
    for b in range(batch):
        pool[b, b * lout_last:(b + 1) * lout_last] = 1.0 / lout_last
    return sels, pool


def _full_spec(shape):
    """BlockSpec covering the whole array (grid-less, VMEM resident)."""
    n = len(shape)
    return pl.BlockSpec(shape, lambda *_: (0,) * n)


# ----------------------------------------------------------------------------
# The fused kernel: 6 convs + avgpool + 3 FCs, all VMEM resident.
# ----------------------------------------------------------------------------
def _fused_kernel(
    x_ref,                                               # [L, B]
    s0_ref, s1_ref, s2_ref, s3_ref, s4_ref, s5_ref,      # selection matrices
    pool_ref,                                            # [B, B*Lout_last]
    w0_ref, b0_ref, w1_ref, b1_ref, w2_ref, b2_ref,      # conv w [k,Cin,Cout]
    w3_ref, b3_ref, w4_ref, b4_ref, w5_ref, b5_ref,      # conv b [1,Cout]
    fw0_ref, fb0_ref, fw1_ref, fb1_ref, fw2_ref, fb2_ref,  # head [in,out]/[1,out]
    o_ref,                                               # [B, 3]
    pad_ref,                                             # VMEM [B*Lpad_max, Cin_max]
):
    length, batch = x_ref.shape
    geoms = _conv_geometry(length)
    conv_ws = (w0_ref, w1_ref, w2_ref, w3_ref, w4_ref, w5_ref)
    conv_bs = (b0_ref, b1_ref, b2_ref, b3_ref, b4_ref, b5_ref)
    sels = (s0_ref, s1_ref, s2_ref, s3_ref, s4_ref, s5_ref)
    lane_w = pad_ref.shape[1]

    h = None  # compact activation value [B*Lout_prev, C_prev]
    for i, ((cin, _cout, k, _s, p, d), (lin, lpad, _lout, lz)) in enumerate(
            zip(CONV_CFG, geoms)):
        rows = (batch - 1) * lpad + lz  # stride-1 output rows to compute

        # ---- stage zero-padded, batch-concatenated input into VMEM scratch --
        for b in range(batch):
            base = b * lpad
            if p > 0:
                pad_ref[base:base + p, :] = jnp.zeros((p, lane_w), jnp.float32)
            tail = lpad - p - lin
            if tail > 0:
                pad_ref[base + p + lin:base + lpad, :] = jnp.zeros(
                    (tail, lane_w), jnp.float32)
            if i == 0:
                pad_ref[base + p:base + p + lin, 0:1] = x_ref[:, b:b + 1]
            else:
                pad_ref[base + p:base + p + lin, 0:cin] = \
                    h[b * lin:(b + 1) * lin, :]

        # ---- tap-wise accumulation (contiguous slices of the padded buffer) -
        acc = None
        for j in range(k):
            xj = pad_ref[j * d:j * d + rows, 0:cin]          # [rows, cin]
            wj = conv_ws[i][j]                               # [cin, cout]
            if cin == 1:
                tap = xj * wj                                # VPU path (conv0)
            else:
                tap = jnp.dot(xj, wj, preferred_element_type=jnp.float32)
            acc = tap if acc is None else acc + tap

        # ---- stride + valid-row extraction via one 0/1 selection matmul -----
        y = jnp.dot(sels[i][...], acc, preferred_element_type=jnp.float32)
        h = jnp.maximum(y + conv_bs[i][...], 0.0)            # [B*Lout, cout]

    # ---- fused AdaptiveAvgPool1d(1): one (1/Lout) pooling matmul ------------
    feat = jnp.dot(pool_ref[...], h, preferred_element_type=jnp.float32)

    # ---- fused head: 256 -> 128 -> 64 -> 3 -----------------------------------
    h1 = jnp.maximum(
        jnp.dot(feat, fw0_ref[...], preferred_element_type=jnp.float32)
        + fb0_ref[...], 0.0)
    h2 = jnp.maximum(
        jnp.dot(h1, fw1_ref[...], preferred_element_type=jnp.float32)
        + fb1_ref[...], 0.0)
    out = (jnp.dot(h2, fw2_ref[...], preferred_element_type=jnp.float32)
           + fb2_ref[...])
    o_ref[...] = out.astype(o_ref.dtype)


# ----------------------------------------------------------------------------
# Wrapper: one pallas_call for the entire forward pass.
# ----------------------------------------------------------------------------
def pallet_pose_cnn_forward(packed_params, x):
    """x: [B, num_rays] float -> [B, 3]."""
    batch, length = x.shape
    x_t = jnp.transpose(x.astype(jnp.float32))               # [L, B]

    geoms = _conv_geometry(length)
    sels_np, pool_np = _selection_and_pool(length, batch)
    sel_arrs = tuple(jnp.asarray(s) for s in sels_np)
    pool_arr = jnp.asarray(pool_np)

    pad_rows = batch * max(lpad for (_lin, lpad, _lo, _lz) in geoms)  # 136
    pad_cols = max(cfg[0] for cfg in CONV_CFG)                        # 128
    out_dim = HEAD_CFG[-1][1]                                         # 3

    inputs = (x_t,) + sel_arrs + (pool_arr,) + tuple(packed_params)

    # Advisory cost estimate for XLA scheduling around the fused call.
    flops = 0
    for ((cin, cout, k, _s, _p, _d), (_lin, lpad, lout, lz)) in zip(
            CONV_CFG, geoms):
        rows = (batch - 1) * lpad + lz
        flops += 2 * k * rows * cin * cout      # tap matmuls
        flops += 2 * batch * lout * rows * cout  # selection matmul
    flops += 2 * batch * (batch * geoms[-1][2]) * CONV_CFG[-1][1]  # pool
    for fin, fout in HEAD_CFG:
        flops += 2 * batch * fin * fout
    bytes_accessed = (sum(a.size * a.dtype.itemsize for a in inputs)
                      + batch * out_dim * 4)

    return pl.pallas_call(
        _fused_kernel,
        out_shape=jax.ShapeDtypeStruct((batch, out_dim), jnp.float32),
        in_specs=[_full_spec(a.shape) for a in inputs],
        out_specs=_full_spec((batch, out_dim)),
        scratch_shapes=[pltpu.VMEM((pad_rows, pad_cols), jnp.float32)],
        cost_estimate=pl.CostEstimate(
            flops=flops, transcendentals=0, bytes_accessed=bytes_accessed),
    )(*inputs)


# ----------------------------------------------------------------------------
# Parameters: PyTorch-compatible layouts + one-time packing to kernel layout.
# ----------------------------------------------------------------------------
def init_params(key):
    params = {}
    for i, (cin, cout, k, _s, _p, _d) in enumerate(CONV_CFG):
        key, kw, kb = jax.random.split(key, 3)
        fan_in = cin * k
        params[f"conv{i}_w"] = (
            jax.random.normal(kw, (cout, cin, k), jnp.float32)
            * jnp.sqrt(2.0 / fan_in))
        params[f"conv{i}_b"] = jax.random.normal(kb, (cout,), jnp.float32) * 0.01
    for i, (fin, fout) in enumerate(HEAD_CFG):
        key, kw, kb = jax.random.split(key, 3)
        params[f"fc{i}_w"] = (
            jax.random.normal(kw, (fin, fout), jnp.float32)
            * jnp.sqrt(2.0 / fin))
        params[f"fc{i}_b"] = jax.random.normal(kb, (fout,), jnp.float32) * 0.01
    return params


def pack_params(params):
    """Convert to the kernel layouts: conv [k,Cin,Cout], biases [1,N]."""
    packed = []
    for i, (_cin, cout, _k, _s, _p, _d) in enumerate(CONV_CFG):
        w = params[f"conv{i}_w"]                              # [Cout, Cin, k]
        packed.append(jnp.transpose(w, (2, 1, 0)).astype(jnp.float32))
        packed.append(params[f"conv{i}_b"].reshape(1, cout).astype(jnp.float32))
    for i, (_fin, fout) in enumerate(HEAD_CFG):
        packed.append(params[f"fc{i}_w"].astype(jnp.float32))  # [in, out]
        packed.append(params[f"fc{i}_b"].reshape(1, fout).astype(jnp.float32))
    return tuple(packed)


# ----------------------------------------------------------------------------
# Pure-JAX reference (same math as the PyTorch module) for validation.
# ----------------------------------------------------------------------------
def _reference_forward(params, x):
    h = x[:, :, None].astype(jnp.float32)                     # [B, L, 1]
    for i, (cin, cout, k, s, p, d) in enumerate(CONV_CFG):
        w = params[f"conv{i}_w"]
        bvec = params[f"conv{i}_b"]
        bsz, lin, _ = h.shape
        lout = (lin + 2 * p - d * (k - 1) - 1) // s + 1
        xp = jnp.pad(h, ((0, 0), (p, p), (0, 0)))
        idx = jnp.arange(lout)[:, None] * s + jnp.arange(k)[None, :] * d
        patches = xp[:, idx, :].reshape(bsz * lout, k * cin)
        w2 = jnp.transpose(w, (2, 1, 0)).reshape(k * cin, cout)
        h = jnp.maximum(patches @ w2 + bvec, 0.0).reshape(bsz, lout, cout)
    feat = jnp.mean(h, axis=1)
    h = jnp.maximum(feat @ params["fc0_w"] + params["fc0_b"], 0.0)
    h = jnp.maximum(h @ params["fc1_w"] + params["fc1_b"], 0.0)
    return h @ params["fc2_w"] + params["fc2_b"]


if __name__ == "__main__":
    key = jax.random.PRNGKey(0)
    k_params, k_x = jax.random.split(key)

    params = init_params(k_params)
    packed = pack_params(params)          # one-time layout conversion

    batch = 2
    x = jax.random.normal(k_x, (batch, NUM_RAYS), jnp.float32)

    fwd = jax.jit(pallet_pose_cnn_forward)
    out = jax.block_until_ready(fwd(packed, x))

    assert out.shape == (batch, 3), out.shape
    assert out.dtype == jnp.float32

    # Validate against the pure-JAX reference of the PyTorch module.
    with jax.default_matmul_precision("float32"):
        ref = jax.block_until_ready(_reference_forward(params, x))
    assert bool(jnp.allclose(out, ref, rtol=1e-2, atol=1e-2)), (
        float(jnp.max(jnp.abs(out - ref))))

    print("KERNEL_OK")
</pallas_src>

<mosaic_0001>
module attributes {stable_mosaic.version = 11 : i64} {
  func.func @_fused_kernel(%arg0: memref<64x2xf32, #tpu.memory_space<vmem>>, %arg1: memref<64x131xf32, #tpu.memory_space<vmem>>, %arg2: memref<32x67xf32, #tpu.memory_space<vmem>>, %arg3: memref<16x35xf32, #tpu.memory_space<vmem>>, %arg4: memref<16x20xf32, #tpu.memory_space<vmem>>, %arg5: memref<16x24xf32, #tpu.memory_space<vmem>>, %arg6: memref<8x17xf32, #tpu.memory_space<vmem>>, %arg7: memref<2x8xf32, #tpu.memory_space<vmem>>, %arg8: memref<5x1x32xf32, #tpu.memory_space<vmem>>, %arg9: memref<1x32xf32, #tpu.memory_space<vmem>>, %arg10: memref<5x32x64xf32, #tpu.memory_space<vmem>>, %arg11: memref<1x64xf32, #tpu.memory_space<vmem>>, %arg12: memref<5x64x128xf32, #tpu.memory_space<vmem>>, %arg13: memref<1x128xf32, #tpu.memory_space<vmem>>, %arg14: memref<3x128x128xf32, #tpu.memory_space<vmem>>, %arg15: memref<1x128xf32, #tpu.memory_space<vmem>>, %arg16: memref<3x128x128xf32, #tpu.memory_space<vmem>>, %arg17: memref<1x128xf32, #tpu.memory_space<vmem>>, %arg18: memref<3x128x256xf32, #tpu.memory_space<vmem>>, %arg19: memref<1x256xf32, #tpu.memory_space<vmem>>, %arg20: memref<256x128xf32, #tpu.memory_space<vmem>>, %arg21: memref<1x128xf32, #tpu.memory_space<vmem>>, %arg22: memref<128x64xf32, #tpu.memory_space<vmem>>, %arg23: memref<1x64xf32, #tpu.memory_space<vmem>>, %arg24: memref<64x3xf32, #tpu.memory_space<vmem>>, %arg25: memref<1x3xf32, #tpu.memory_space<vmem>>, %arg26: memref<2x3xf32, #tpu.memory_space<vmem>>, %arg27: memref<136x128xf32, #tpu.memory_space<vmem>>) attributes {dimension_semantics = [], scalar_prefetch = 0 : i64, scratch_operands = 1 : i64, tpu.core_type = #tpu.core_type<tc>} {
    %cst = arith.constant 0.000000e+00 : f32
    %0 = vector.broadcast %cst : f32 to vector<2x128xf32>
    %c0 = arith.constant 0 : index
    %c0_0 = arith.constant 0 : index
    %1 = vector.load %arg27[%c0, %c0_0] : memref<136x128xf32, #tpu.memory_space<vmem>>, vector<2x128xf32>
    tpu.vector_store %arg27[%c0, %c0_0], %0 {strides = array<i32>} : memref<136x128xf32, #tpu.memory_space<vmem>>, vector<2x128xf32>,
    %cst_1 = arith.constant 0.000000e+00 : f32
    %2 = vector.broadcast %cst_1 : f32 to vector<2x128xf32>
    %c66 = arith.constant 66 : index
    %c0_2 = arith.constant 0 : index
    %3 = vector.load %arg27[%c66, %c0_2] : memref<136x128xf32, #tpu.memory_space<vmem>>, vector<2x128xf32>
    tpu.vector_store %arg27[%c66, %c0_2], %2 {strides = array<i32>} : memref<136x128xf32, #tpu.memory_space<vmem>>, vector<2x128xf32>,
    %c0_3 = arith.constant 0 : index
    %c0_4 = arith.constant 0 : index
    %4 = vector.load %arg0[%c0_3, %c0_4] : memref<64x2xf32, #tpu.memory_space<vmem>>, vector<64x1xf32>
    %c2 = arith.constant 2 : index
    %c0_5 = arith.constant 0 : index
    %5 = vector.load %arg27[%c2, %c0_5] : memref<136x128xf32, #tpu.memory_space<vmem>>, vector<64x1xf32>
    tpu.vector_store %arg27[%c2, %c0_5], %4 {strides = array<i32>} : memref<136x128xf32, #tpu.memory_space<vmem>>, vector<64x1xf32>,
    %cst_6 = arith.constant 0.000000e+00 : f32
    %6 = vector.broadcast %cst_6 : f32 to vector<2x128xf32>
    %c68 = arith.constant 68 : index
    %c0_7 = arith.constant 0 : index
    %7 = vector.load %arg27[%c68, %c0_7] : memref<136x128xf32, #tpu.memory_space<vmem>>, vector<2x128xf32>
    tpu.vector_store %arg27[%c68, %c0_7], %6 {strides = array<i32>} : memref<136x128xf32, #tpu.memory_space<vmem>>, vector<2x128xf32>,
    %cst_8 = arith.constant 0.000000e+00 : f32
    %8 = vector.broadcast %cst_8 : f32 to vector<2x128xf32>
    %c134 = arith.constant 134 : index
    %c0_9 = arith.constant 0 : index
    %9 = vector.load %arg27[%c134, %c0_9] : memref<136x128xf32, #tpu.memory_space<vmem>>, vector<2x128xf32>
    tpu.vector_store %arg27[%c134, %c0_9], %8 {strides = array<i32>} : memref<136x128xf32, #tpu.memory_space<vmem>>, vector<2x128xf32>,
    %c0_10 = arith.constant 0 : index
    %c1 = arith.constant 1 : index
    %10 = vector.load %arg0[%c0_10, %c1] : memref<64x2xf32, #tpu.memory_space<vmem>>, vector<64x1xf32>
    %c70 = arith.constant 70 : index
    %c0_11 = arith.constant 0 : index
    %11 = vector.load %arg27[%c70, %c0_11] : memref<136x128xf32, #tpu.memory_space<vmem>>, vector<64x1xf32>
    tpu.vector_store %arg27[%c70, %c0_11], %10 {strides = array<i32>} : memref<136x128xf32, #tpu.memory_space<vmem>>, vector<64x1xf32>,
    %c0_12 = arith.constant 0 : index
    %c0_13 = arith.constant 0 : index
    %12 = vector.load %arg27[%c0_12, %c0_13] : memref<136x128xf32, #tpu.memory_space<vmem>>, vector<131x1xf32>
    %c0_14 = arith.constant 0 : index
    %c0_15 = arith.constant 0 : index
    %c0_16 = arith.constant 0 : index
    %13 = vector.load %arg8[%c0_14, %c0_15, %c0_16] : memref<5x1x32xf32, #tpu.memory_space<vmem>>, vector<1x1x32xf32>
    %14 = vector.shape_cast %13 : vector<1x1x32xf32> to vector<1x32xf32>
    %15 = vector.broadcast %12 : vector<131x1xf32> to vector<131x32xf32>
    %16 = vector.broadcast %14 : vector<1x32xf32> to vector<131x32xf32>
    %17 = arith.mulf %15, %16 : vector<131x32xf32>
    %c1_17 = arith.constant 1 : index
    %c0_18 = arith.constant 0 : index
    %18 = vector.load %arg27[%c1_17, %c0_18] : memref<136x128xf32, #tpu.memory_space<vmem>>, vector<131x1xf32>
    %c1_19 = arith.constant 1 : index
    %c0_20 = arith.constant 0 : index
    %c0_21 = arith.constant 0 : index
    %19 = vector.load %arg8[%c1_19, %c0_20, %c0_21] : memref<5x1x32xf32, #tpu.memory_space<vmem>>, vector<1x1x32xf32>
    %20 = vector.shape_cast %19 : vector<1x1x32xf32> to vector<1x32xf32>
    %21 = vector.broadcast %18 : vector<131x1xf32> to vector<131x32xf32>
    %22 = vector.broadcast %20 : vector<1x32xf32> to vector<131x32xf32>
    %23 = arith.mulf %21, %22 : vector<131x32xf32>
    %24 = arith.addf %17, %23 : vector<131x32xf32>
    %c2_22 = arith.constant 2 : index
    %c0_23 = arith.constant 0 : index
    %25 = vector.load %arg27[%c2_22, %c0_23] : memref<136x128xf32, #tpu.memory_space<vmem>>, vector<131x1xf32>
    %c2_24 = arith.constant 2 : index
    %c0_25 = arith.constant 0 : index
    %c0_26 = arith.constant 0 : index
    %26 = vector.load %arg8[%c2_24, %c0_25, %c0_26] : memref<5x1x32xf32, #tpu.memory_space<vmem>>, vector<1x1x32xf32>
    %27 = vector.shape_cast %26 : vector<1x1x32xf32> to vector<1x32xf32>
    %28 = vector.broadcast %25 : vector<131x1xf32> to vector<131x32xf32>
    %29 = vector.broadcast %27 : vector<1x32xf32> to vector<131x32xf32>
    %30 = arith.mulf %28, %29 : vector<131x32xf32>
    %31 = arith.addf %24, %30 : vector<131x32xf32>
    %c3 = arith.constant 3 : index
    %c0_27 = arith.constant 0 : index
    %32 = vector.load %arg27[%c3, %c0_27] : memref<136x128xf32, #tpu.memory_space<vmem>>, vector<131x1xf32>
    %c3_28 = arith.constant 3 : index
    %c0_29 = arith.constant 0 : index
    %c0_30 = arith.constant 0 : index
    %33 = vector.load %arg8[%c3_28, %c0_29, %c0_30] : memref<5x1x32xf32, #tpu.memory_space<vmem>>, vector<1x1x32xf32>
    %34 = vector.shape_cast %33 : vector<1x1x32xf32> to vector<1x32xf32>
    %35 = vector.broadcast %32 : vector<131x1xf32> to vector<131x32xf32>
    %36 = vector.broadcast %34 : vector<1x32xf32> to vector<131x32xf32>
    %37 = arith.mulf %35, %36 : vector<131x32xf32>
    %38 = arith.addf %31, %37 : vector<131x32xf32>
    %c4 = arith.constant 4 : index
    %c0_31 = arith.constant 0 : index
    %39 = vector.load %arg27[%c4, %c0_31] : memref<136x128xf32, #tpu.memory_space<vmem>>, vector<131x1xf32>
    %c4_32 = arith.constant 4 : index
    %c0_33 = arith.constant 0 : index
    %c0_34 = arith.constant 0 : index
    %40 = vector.load %arg8[%c4_32, %c0_33, %c0_34] : memref<5x1x32xf32, #tpu.memory_space<vmem>>, vector<1x1x32xf32>
    %41 = vector.shape_cast %40 : vector<1x1x32xf32> to vector<1x32xf32>
    %42 = vector.broadcast %39 : vector<131x1xf32> to vector<131x32xf32>
    %43 = vector.broadcast %41 : vector<1x32xf32> to vector<131x32xf32>
    %44 = arith.mulf %42, %43 : vector<131x32xf32>
    %45 = arith.addf %38, %44 : vector<131x32xf32>
    %c0_35 = arith.constant 0 : index
    %c0_36 = arith.constant 0 : index
    %46 = vector.load %arg1[%c0_35, %c0_36] : memref<64x131xf32, #tpu.memory_space<vmem>>, vector<64x131xf32>
    %cst_37 = arith.constant dense<0.000000e+00> : vector<64x32xf32>
    %47 = tpu.matmul %46, %45, %cst_37 {dimension_numbers = #tpu.dot_dimension_numbers<[1], [0], [0], [1], [0, 0, 1, 1], [], []>} : vector<64x131xf32>, vector<131x32xf32>, vector<64x32xf32> -> vector<64x32xf32>
    %c0_38 = arith.constant 0 : index
    %c0_39 = arith.constant 0 : index
    %48 = vector.load %arg9[%c0_38, %c0_39] : memref<1x32xf32, #tpu.memory_space<vmem>>, vector<1x32xf32>
    %49 = vector.broadcast %48 : vector<1x32xf32> to vector<64x32xf32>
    %50 = arith.addf %47, %49 : vector<64x32xf32>
    %cst_40 = arith.constant 0.000000e+00 : f32
    %51 = vector.broadcast %cst_40 : f32 to vector<64x32xf32>
    %52 = arith.maximumf %50, %51 : vector<64x32xf32>
    %cst_41 = arith.constant 0.000000e+00 : f32
    %53 = vector.broadcast %cst_41 : f32 to vector<2x128xf32>
    %c0_42 = arith.constant 0 : index
    %c0_43 = arith.constant 0 : index
    %54 = vector.load %arg27[%c0_42, %c0_43] : memref<136x128xf32, #tpu.memory_space<vmem>>, vector<2x128xf32>
    tpu.vector_store %arg27[%c0_42, %c0_43], %53 {strides = array<i32>} : memref<136x128xf32, #tpu.memory_space<vmem>>, vector<2x128xf32>,
    %cst_44 = arith.constant 0.000000e+00 : f32
    %55 = vector.broadcast %cst_44 : f32 to vector<2x128xf32>
    %c34 = arith.constant 34 : index
    %c0_45 = arith.constant 0 : index
    %56 = vector.load %arg27[%c34, %c0_45] : memref<136x128xf32, #tpu.memory_space<vmem>>, vector<2x128xf32>
    tpu.vector_store %arg27[%c34, %c0_45], %55 {strides = array<i32>} : memref<136x128xf32, #tpu.memory_space<vmem>>, vector<2x128xf32>,
    %57 = vector.extract_strided_slice %52 {offsets = [0, 0], sizes = [32, 32], strides = [1, 1]} : vector<64x32xf32> to vector<32x32xf32>
    %c2_46 = arith.constant 2 : index
    %c0_47 = arith.constant 0 : index
    %58 = vector.load %arg27[%c2_46, %c0_47] : memref<136x128xf32, #tpu.memory_space<vmem>>, vector<32x32xf32>
    tpu.vector_store %arg27[%c2_46, %c0_47], %57 {strides = array<i32>} : memref<136x128xf32, #tpu.memory_space<vmem>>, vector<32x32xf32>,
    %cst_48 = arith.constant 0.000000e+00 : f32
    %59 = vector.broadcast %cst_48 : f32 to vector<2x128xf32>
    %c36 = arith.constant 36 : index
    %c0_49 = arith.constant 0 : index
    %60 = vector.load %arg27[%c36, %c0_49] : memref<136x128xf32, #tpu.memory_space<vmem>>, vector<2x128xf32>
    tpu.vector_store %arg27[%c36, %c0_49], %59 {strides = array<i32>} : memref<136x128xf32, #tpu.memory_space<vmem>>, vector<2x128xf32>,
    %cst_50 = arith.constant 0.000000e+00 : f32
    %61 = vector.broadcast %cst_50 : f32 to vector<2x128xf32>
    %c70_51 = arith.constant 70 : index
    %c0_52 = arith.constant 0 : index
    %62 = vector.load %arg27[%c70_51, %c0_52] : memref<136x128xf32, #tpu.memory_space<vmem>>, vector<2x128xf32>
    tpu.vector_store %arg27[%c70_51, %c0_52], %61 {strides = array<i32>} : memref<136x128xf32, #tpu.memory_space<vmem>>, vector<2x128xf32>,
    %63 = vector.extract_strided_slice %52 {offsets = [32, 0], sizes = [32, 32], strides = [1, 1]} : vector<64x32xf32> to vector<32x32xf32>
    %c38 = arith.constant 38 : index
    %c0_53 = arith.constant 0 : index
    %64 = vector.load %arg27[%c38, %c0_53] : memref<136x128xf32, #tpu.memory_space<vmem>>, vector<32x32xf32>
    tpu.vector_store %arg27[%c38, %c0_53], %63 {strides = array<i32>} : memref<136x128xf32, #tpu.memory_space<vmem>>, vector<32x32xf32>,
    %c0_54 = arith.constant 0 : index
    %c0_55 = arith.constant 0 : index
    %65 = vector.load %arg27[%c0_54, %c0_55] : memref<136x128xf32, #tpu.memory_space<vmem>>, vector<67x32xf32>
    %c0_56 = arith.constant 0 : index
    %c0_57 = arith.constant 0 : index
    %c0_58 = arith.constant 0 : index
    %66 = vector.load %arg10[%c0_56, %c0_57, %c0_58] : memref<5x32x64xf32, #tpu.memory_space<vmem>>, vector<1x32x64xf32>
    %67 = vector.shape_cast %66 : vector<1x32x64xf32> to vector<32x64xf32>
    %cst_59 = arith.constant dense<0.000000e+00> : vector<67x64xf32>
    %68 = tpu.matmul %65, %67, %cst_59 {dimension_numbers = #tpu.dot_dimension_numbers<[1], [0], [0], [1], [0, 0, 1, 1], [], []>} : vector<67x32xf32>, vector<32x64xf32>, vector<67x64xf32> -> vector<67x64xf32>
    %c1_60 = arith.constant 1 : index
    %c0_61 = arith.constant 0 : index
    %69 = vector.load %arg27[%c1_60, %c0_61] : memref<136x128xf32, #tpu.memory_space<vmem>>, vector<67x32xf32>
    %c1_62 = arith.constant 1 : index
    %c0_63 = arith.constant 0 : index
    %c0_64 = arith.constant 0 : index
    %70 = vector.load %arg10[%c1_62, %c0_63, %c0_64] : memref<5x32x64xf32, #tpu.memory_space<vmem>>, vector<1x32x64xf32>
    %71 = vector.shape_cast %70 : vector<1x32x64xf32> to vector<32x64xf32>
    %cst_65 = arith.constant dense<0.000000e+00> : vector<67x64xf32>
    %72 = tpu.matmul %69, %71, %cst_65 {dimension_numbers = #tpu.dot_dimension_numbers<[1], [0], [0], [1], [0, 0, 1, 1], [], []>} : vector<67x32xf32>, vector<32x64xf32>, vector<67x64xf32> -> vector<67x64xf32>
    %73 = arith.addf %68, %72 : vector<67x64xf32>
    %c2_66 = arith.constant 2 : index
    %c0_67 = arith.constant 0 : index
    %74 = vector.load %arg27[%c2_66, %c0_67] : memref<136x128xf32, #tpu.memory_space<vmem>>, vector<67x32xf32>
    %c2_68 = arith.constant 2 : index
    %c0_69 = arith.constant 0 : index
    %c0_70 = arith.constant 0 : index
    %75 = vector.load %arg10[%c2_68, %c0_69, %c0_70] : memref<5x32x64xf32, #tpu.memory_space<vmem>>, vector<1x32x64xf32>
    %76 = vector.shape_cast %75 : vector<1x32x64xf32> to vector<32x64xf32>
    %cst_71 = arith.constant dense<0.000000e+00> : vector<67x64xf32>
    %77 = tpu.matmul %74, %76, %cst_71 {dimension_numbers = #tpu.dot_dimension_numbers<[1], [0], [0], [1], [0, 0, 1, 1], [], []>} : vector<67x32xf32>, vector<32x64xf32>, vector<67x64xf32> -> vector<67x64xf32>
    %78 = arith.addf %73, %77 : vector<67x64xf32>
    %c3_72 = arith.constant 3 : index
    %c0_73 = arith.constant 0 : index
    %79 = vector.load %arg27[%c3_72, %c0_73] : memref<136x128xf32, #tpu.memory_space<vmem>>, vector<67x32xf32>
    %c3_74 = arith.constant 3 : index
    %c0_75 = arith.constant 0 : index
    %c0_76 = arith.constant 0 : index
    %80 = vector.load %arg10[%c3_74, %c0_75, %c0_76] : memref<5x32x64xf32, #tpu.memory_space<vmem>>, vector<1x32x64xf32>
    %81 = vector.shape_cast %80 : vector<1x32x64xf32> to vector<32x64xf32>
    %cst_77 = arith.constant dense<0.000000e+00> : vector<67x64xf32>
    %82 = tpu.matmul %79, %81, %cst_77 {dimension_numbers = #tpu.dot_dimension_numbers<[1], [0], [0], [1], [0, 0, 1, 1], [], []>} : vector<67x32xf32>, vector<32x64xf32>, vector<67x64xf32> -> vector<67x64xf32>
    %83 = arith.addf %78, %82 : vector<67x64xf32>
    %c4_78 = arith.constant 4 : index
    %c0_79 = arith.constant 0 : index
    %84 = vector.load %arg27[%c4_78, %c0_79] : memref<136x128xf32, #tpu.memory_space<vmem>>, vector<67x32xf32>
    %c4_80 = arith.constant 4 : index
    %c0_81 = arith.constant 0 : index
    %c0_82 = arith.constant 0 : index
    %85 = vector.load %arg10[%c4_80, %c0_81, %c0_82] : memref<5x32x64xf32, #tpu.memory_space<vmem>>, vector<1x32x64xf32>
    %86 = vector.shape_cast %85 : vector<1x32x64xf32> to vector<32x64xf32>
    %cst_83 = arith.constant dense<0.000000e+00> : vector<67x64xf32>
    %87 = tpu.matmul %84, %86, %cst_83 {dimension_numbers = #tpu.dot_dimension_numbers<[1], [0], [0], [1], [0, 0, 1, 1], [], []>} : vector<67x32xf32>, vector<32x64xf32>, vector<67x64xf32> -> vector<67x64xf32>
    %88 = arith.addf %83, %87 : vector<67x64xf32>
    %c0_84 = arith.constant 0 : index
    %c0_85 = arith.constant 0 : index
    %89 = vector.load %arg2[%c0_84, %c0_85] : memref<32x67xf32, #tpu.memory_space<vmem>>, vector<32x67xf32>
    %cst_86 = arith.constant dense<0.000000e+00> : vector<32x64xf32>
    %90 = tpu.matmul %89, %88, %cst_86 {dimension_numbers = #tpu.dot_dimension_numbers<[1], [0], [0], [1], [0, 0, 1, 1], [], []>} : vector<32x67xf32>, vector<67x64xf32>, vector<32x64xf32> -> vector<32x64xf32>
    %c0_87 = arith.constant 0 : index
    %c0_88 = arith.constant 0 : index
    %91 = vector.load %arg11[%c0_87, %c0_88] : memref<1x64xf32, #tpu.memory_space<vmem>>, vector<1x64xf32>
    %92 = vector.broadcast %91 : vector<1x64xf32> to vector<32x64xf32>
    %93 = arith.addf %90, %92 : vector<32x64xf32>
    %cst_89 = arith.constant 0.000000e+00 : f32
    %94 = vector.broadcast %cst_89 : f32 to vector<32x64xf32>
    %95 = arith.maximumf %93, %94 : vector<32x64xf32>
    %cst_90 = arith.constant 0.000000e+00 : f32
    %96 = vector.broadcast %cst_90 : f32 to vector<2x128xf32>
    %c0_91 = arith.constant 0 : index
    %c0_92 = arith.constant 0 : index
    %97 = vector.load %arg27[%c0_91, %c0_92] : memref<136x128xf32, #tpu.memory_space<vmem>>, vector<2x128xf32>
    tpu.vector_store %arg27[%c0_91, %c0_92], %96 {strides = array<i32>} : memref<136x128xf32, #tpu.memory_space<vmem>>, vector<2x128xf32>,
    %cst_93 = arith.constant 0.000000e+00 : f32
    %98 = vector.broadcast %cst_93 : f32 to vector<2x128xf32>
    %c18 = arith.constant 18 : index
    %c0_94 = arith.constant 0 : index
    %99 = vector.load %arg27[%c18, %c0_94] : memref<136x128xf32, #tpu.memory_space<vmem>>, vector<2x128xf32>
    tpu.vector_store %arg27[%c18, %c0_94], %98 {strides = array<i32>} : memref<136x128xf32, #tpu.memory_space<vmem>>, vector<2x128xf32>,
    %100 = vector.extract_strided_slice %95 {offsets = [0, 0], sizes = [16, 64], strides = [1, 1]} : vector<32x64xf32> to vector<16x64xf32>
    %c2_95 = arith.constant 2 : index
    %c0_96 = arith.constant 0 : index
    %101 = vector.load %arg27[%c2_95, %c0_96] : memref<136x128xf32, #tpu.memory_space<vmem>>, vector<16x64xf32>
    tpu.vector_store %arg27[%c2_95, %c0_96], %100 {strides = array<i32>} : memref<136x128xf32, #tpu.memory_space<vmem>>, vector<16x64xf32>,
    %cst_97 = arith.constant 0.000000e+00 : f32
    %102 = vector.broadcast %cst_97 : f32 to vector<2x128xf32>
    %c20 = arith.constant 20 : index
    %c0_98 = arith.constant 0 : index
    %103 = vector.load %arg27[%c20, %c0_98] : memref<136x128xf32, #tpu.memory_space<vmem>>, vector<2x128xf32>
    tpu.vector_store %arg27[%c20, %c0_98], %102 {strides = array<i32>} : memref<136x128xf32, #tpu.memory_space<vmem>>, vector<2x128xf32>,
    %cst_99 = arith.constant 0.000000e+00 : f32
    %104 = vector.broadcast %cst_99 : f32 to vector<2x128xf32>
    %c38_100 = arith.constant 38 : index
    %c0_101 = arith.constant 0 : index
    %105 = vector.load %arg27[%c38_100, %c0_101] : memref<136x128xf32, #tpu.memory_space<vmem>>, vector<2x128xf32>
    tpu.vector_store %arg27[%c38_100, %c0_101], %104 {strides = array<i32>} : memref<136x128xf32, #tpu.memory_space<vmem>>, vector<2x128xf32>,
    %106 = vector.extract_strided_slice %95 {offsets = [16, 0], sizes = [16, 64], strides = [1, 1]} : vector<32x64xf32> to vector<16x64xf32>
    %c22 = arith.constant 22 : index
    %c0_102 = arith.constant 0 : index
    %107 = vector.load %arg27[%c22, %c0_102] : memref<136x128xf32, #tpu.memory_space<vmem>>, vector<16x64xf32>
    tpu.vector_store %arg27[%c22, %c0_102], %106 {strides = array<i32>} : memref<136x128xf32, #tpu.memory_space<vmem>>, vector<16x64xf32>,
    %c0_103 = arith.constant 0 : index
    %c0_104 = arith.constant 0 : index
    %108 = vector.load %arg27[%c0_103, %c0_104] : memref<136x128xf32, #tpu.memory_space<vmem>>, vector<35x64xf32>
    %c0_105 = arith.constant 0 : index
    %c0_106 = arith.constant 0 : index
    %c0_107 = arith.constant 0 : index
    %109 = vector.load %arg12[%c0_105, %c0_106, %c0_107] : memref<5x64x128xf32, #tpu.memory_space<vmem>>, vector<1x64x128xf32>
    %110 = vector.shape_cast %109 : vector<1x64x128xf32> to vector<64x128xf32>
    %cst_108 = arith.constant dense<0.000000e+00> : vector<35x128xf32>
    %111 = tpu.matmul %108, %110, %cst_108 {dimension_numbers = #tpu.dot_dimension_numbers<[1], [0], [0], [1], [0, 0, 1, 1], [], []>} : vector<35x64xf32>, vector<64x128xf32>, vector<35x128xf32> -> vector<35x128xf32>
    %c1_109 = arith.constant 1 : index
    %c0_110 = arith.constant 0 : index
    %112 = vector.load %arg27[%c1_109, %c0_110] : memref<136x128xf32, #tpu.memory_space<vmem>>, vector<35x64xf32>
    %c1_111 = arith.constant 1 : index
    %c0_112 = arith.constant 0 : index
    %c0_113 = arith.constant 0 : index
    %113 = vector.load %arg12[%c1_111, %c0_112, %c0_113] : memref<5x64x128xf32, #tpu.memory_space<vmem>>, vector<1x64x128xf32>
    %114 = vector.shape_cast %113 : vector<1x64x128xf32> to vector<64x128xf32>
    %cst_114 = arith.constant dense<0.000000e+00> : vector<35x128xf32>
    %115 = tpu.matmul %112, %114, %cst_114 {dimension_numbers = #tpu.dot_dimension_numbers<[1], [0], [0], [1], [0, 0, 1, 1], [], []>} : vector<35x64xf32>, vector<64x128xf32>, vector<35x128xf32> -> vector<35x128xf32>
    %116 = arith.addf %111, %115 : vector<35x128xf32>
    %c2_115 = arith.constant 2 : index
    %c0_116 = arith.constant 0 : index
    %117 = vector.load %arg27[%c2_115, %c0_116] : memref<136x128xf32, #tpu.memory_space<vmem>>, vector<35x64xf32>
    %c2_117 = arith.constant 2 : index
    %c0_118 = arith.constant 0 : index
    %c0_119 = arith.constant 0 : index
    %118 = vector.load %arg12[%c2_117, %c0_118, %c0_119] : memref<5x64x128xf32, #tpu.memory_space<vmem>>, vector<1x64x128xf32>
    %119 = vector.shape_cast %118 : vector<1x64x128xf32> to vector<64x128xf32>
    %cst_120 = arith.constant dense<0.000000e+00> : vector<35x128xf32>
    %120 = tpu.matmul %117, %119, %cst_120 {dimension_numbers = #tpu.dot_dimension_numbers<[1], [0], [0], [1], [0, 0, 1, 1], [], []>} : vector<35x64xf32>, vector<64x128xf32>, vector<35x128xf32> -> vector<35x128xf32>
    %121 = arith.addf %116, %120 : vector<35x128xf32>
    %c3_121 = arith.constant 3 : index
    %c0_122 = arith.constant 0 : index
    %122 = vector.load %arg27[%c3_121, %c0_122] : memref<136x128xf32, #tpu.memory_space<vmem>>, vector<35x64xf32>
    %c3_123 = arith.constant 3 : index
    %c0_124 = arith.constant 0 : index
    %c0_125 = arith.constant 0 : index
    %123 = vector.load %arg12[%c3_123, %c0_124, %c0_125] : memref<5x64x128xf32, #tpu.memory_space<vmem>>, vector<1x64x128xf32>
    %124 = vector.shape_cast %123 : vector<1x64x128xf32> to vector<64x128xf32>
    %cst_126 = arith.constant dense<0.000000e+00> : vector<35x128xf32>
    %125 = tpu.matmul %122, %124, %cst_126 {dimension_numbers = #tpu.dot_dimension_numbers<[1], [0], [0], [1], [0, 0, 1, 1], [], []>} : vector<35x64xf32>, vector<64x128xf32>, vector<35x128xf32> -> vector<35x128xf32>
    %126 = arith.addf %121, %125 : vector<35x128xf32>
    %c4_127 = arith.constant 4 : index
    %c0_128 = arith.constant 0 : index
    %127 = vector.load %arg27[%c4_127, %c0_128] : memref<136x128xf32, #tpu.memory_space<vmem>>, vector<35x64xf32>
    %c4_129 = arith.constant 4 : index
    %c0_130 = arith.constant 0 : index
    %c0_131 = arith.constant 0 : index
    %128 = vector.load %arg12[%c4_129, %c0_130, %c0_131] : memref<5x64x128xf32, #tpu.memory_space<vmem>>, vector<1x64x128xf32>
    %129 = vector.shape_cast %128 : vector<1x64x128xf32> to vector<64x128xf32>
    %cst_132 = arith.constant dense<0.000000e+00> : vector<35x128xf32>
    %130 = tpu.matmul %127, %129, %cst_132 {dimension_numbers = #tpu.dot_dimension_numbers<[1], [0], [0], [1], [0, 0, 1, 1], [], []>} : vector<35x64xf32>, vector<64x128xf32>, vector<35x128xf32> -> vector<35x128xf32>
    %131 = arith.addf %126, %130 : vector<35x128xf32>
    %c0_133 = arith.constant 0 : index
    %c0_134 = arith.constant 0 : index
    %132 = vector.load %arg3[%c0_133, %c0_134] : memref<16x35xf32, #tpu.memory_space<vmem>>, vector<16x35xf32>
    %cst_135 = arith.constant dense<0.000000e+00> : vector<16x128xf32>
    %133 = tpu.matmul %132, %131, %cst_135 {dimension_numbers = #tpu.dot_dimension_numbers<[1], [0], [0], [1], [0, 0, 1, 1], [], []>} : vector<16x35xf32>, vector<35x128xf32>, vector<16x128xf32> -> vector<16x128xf32>
    %c0_136 = arith.constant 0 : index
    %c0_137 = arith.constant 0 : index
    %134 = vector.load %arg13[%c0_136, %c0_137] : memref<1x128xf32, #tpu.memory_space<vmem>>, vector<1x128xf32>
    %135 = vector.broadcast %134 : vector<1x128xf32> to vector<16x128xf32>
    %136 = arith.addf %133, %135 : vector<16x128xf32>
    %cst_138 = arith.constant 0.000000e+00 : f32
    %137 = vector.broadcast %cst_138 : f32 to vector<16x128xf32>
    %138 = arith.maximumf %136, %137 : vector<16x128xf32>
    %cst_139 = arith.constant 0.000000e+00 : f32
    %139 = vector.broadcast %cst_139 : f32 to vector<2x128xf32>
    %c0_140 = arith.constant 0 : index
    %c0_141 = arith.constant 0 : index
    %140 = vector.load %arg27[%c0_140, %c0_141] : memref<136x128xf32, #tpu.memory_space<vmem>>, vector<2x128xf32>
    tpu.vector_store %arg27[%c0_140, %c0_141], %139 {strides = array<i32>} : memref<136x128xf32, #tpu.memory_space<vmem>>, vector<2x128xf32>,
    %cst_142 = arith.constant 0.000000e+00 : f32
    %141 = vector.broadcast %cst_142 : f32 to vector<2x128xf32>
    %c10 = arith.constant 10 : index
    %c0_143 = arith.constant 0 : index
    %142 = vector.load %arg27[%c10, %c0_143] : memref<136x128xf32, #tpu.memory_space<vmem>>, vector<2x128xf32>
    tpu.vector_store %arg27[%c10, %c0_143], %141 {strides = array<i32>} : memref<136x128xf32, #tpu.memory_space<vmem>>, vector<2x128xf32>,
    %143 = vector.extract_strided_slice %138 {offsets = [0, 0], sizes = [8, 128], strides = [1, 1]} : vector<16x128xf32> to vector<8x128xf32>
    %c2_144 = arith.constant 2 : index
    %c0_145 = arith.constant 0 : index
    %144 = vector.load %arg27[%c2_144, %c0_145] : memref<136x128xf32, #tpu.memory_space<vmem>>, vector<8x128xf32>
    tpu.vector_store %arg27[%c2_144, %c0_145], %143 {strides = array<i32>} : memref<136x128xf32, #tpu.memory_space<vmem>>, vector<8x128xf32>,
    %cst_146 = arith.constant 0.000000e+00 : f32
    %145 = vector.broadcast %cst_146 : f32 to vector<2x128xf32>
    %c12 = arith.constant 12 : index
    %c0_147 = arith.constant 0 : index
    %146 = vector.load %arg27[%c12, %c0_147] : memref<136x128xf32, #tpu.memory_space<vmem>>, vector<2x128xf32>
    tpu.vector_store %arg27[%c12, %c0_147], %145 {strides = array<i32>} : memref<136x128xf32, #tpu.memory_space<vmem>>, vector<2x128xf32>,
    %cst_148 = arith.constant 0.000000e+00 : f32
    %147 = vector.broadcast %cst_148 : f32 to vector<2x128xf32>
    %c22_149 = arith.constant 22 : index
    %c0_150 = arith.constant 0 : index
    %148 = vector.load %arg27[%c22_149, %c0_150] : memref<136x128xf32, #tpu.memory_space<vmem>>, vector<2x128xf32>
    tpu.vector_store %arg27[%c22_149, %c0_150], %147 {strides = array<i32>} : memref<136x128xf32, #tpu.memory_space<vmem>>, vector<2x128xf32>,
    %149 = vector.extract_strided_slice %138 {offsets = [8, 0], sizes = [8, 128], strides = [1, 1]} : vector<16x128xf32> to vector<8x128xf32>
    %c14 = arith.constant 14 : index
    %c0_151 = arith.constant 0 : index
    %150 = vector.load %arg27[%c14, %c0_151] : memref<136x128xf32, #tpu.memory_space<vmem>>, vector<8x128xf32>
    tpu.vector_store %arg27[%c14, %c0_151], %149 {strides = array<i32>} : memref<136x128xf32, #tpu.memory_space<vmem>>, vector<8x128xf32>,
    %c0_152 = arith.constant 0 : index
    %c0_153 = arith.constant 0 : index
    %151 = vector.load %arg27[%c0_152, %c0_153] : memref<136x128xf32, #tpu.memory_space<vmem>>, vector<20x128xf32>
    %c0_154 = arith.constant 0 : index
    %c0_155 = arith.constant 0 : index
    %c0_156 = arith.constant 0 : index
    %152 = vector.load %arg14[%c0_154, %c0_155, %c0_156] : memref<3x128x128xf32, #tpu.memory_space<vmem>>, vector<1x128x128xf32>
    %153 = vector.shape_cast %152 : vector<1x128x128xf32> to vector<128x128xf32>
    %cst_157 = arith.constant dense<0.000000e+00> : vector<20x128xf32>
    %154 = tpu.matmul %151, %153, %cst_157 {dimension_numbers = #tpu.dot_dimension_numbers<[1], [0], [0], [1], [0, 0, 1, 1], [], []>} : vector<20x128xf32>, vector<128x128xf32>, vector<20x128xf32> -> vector<20x128xf32>
    %c2_158 = arith.constant 2 : index
    %c0_159 = arith.constant 0 : index
    %155 = vector.load %arg27[%c2_158, %c0_159] : memref<136x128xf32, #tpu.memory_space<vmem>>, vector<20x128xf32>
    %c1_160 = arith.constant 1 : index
    %c0_161 = arith.constant 0 : index
    %c0_162 = arith.constant 0 : index
    %156 = vector.load %arg14[%c1_160, %c0_161, %c0_162] : memref<3x128x128xf32, #tpu.memory_space<vmem>>, vector<1x128x128xf32>
    %157 = vector.shape_cast %156 : vector<1x128x128xf32> to vector<128x128xf32>
    %cst_163 = arith.constant dense<0.000000e+00> : vector<20x128xf32>
    %158 = tpu.matmul %155, %157, %cst_163 {dimension_numbers = #tpu.dot_dimension_numbers<[1], [0], [0], [1], [0, 0, 1, 1], [], []>} : vector<20x128xf32>, vector<128x128xf32>, vector<20x128xf32> -> vector<20x128xf32>
    %159 = arith.addf %154, %158 : vector<20x128xf32>
    %c4_164 = arith.constant 4 : index
    %c0_165 = arith.constant 0 : index
    %160 = vector.load %arg27[%c4_164, %c0_165] : memref<136x128xf32, #tpu.memory_space<vmem>>, vector<20x128xf32>
    %c2_166 = arith.constant 2 : index
    %c0_167 = arith.constant 0 : index
    %c0_168 = arith.constant 0 : index
    %161 = vector.load %arg14[%c2_166, %c0_167, %c0_168] : memref<3x128x128xf32, #tpu.memory_space<vmem>>, vector<1x128x128xf32>
    %162 = vector.shape_cast %161 : vector<1x128x128xf32> to vector<128x128xf32>
    %cst_169 = arith.constant dense<0.000000e+00> : vector<20x128xf32>
    %163 = tpu.matmul %160, %162, %cst_169 {dimension_numbers = #tpu.dot_dimension_numbers<[1], [0], [0], [1], [0, 0, 1, 1], [], []>} : vector<20x128xf32>, vector<128x128xf32>, vector<20x128xf32> -> vector<20x128xf32>
    %164 = arith.addf %159, %163 : vector<20x128xf32>
    %c0_170 = arith.constant 0 : index
    %c0_171 = arith.constant 0 : index
    %165 = vector.load %arg4[%c0_170, %c0_171] : memref<16x20xf32, #tpu.memory_space<vmem>>, vector<16x20xf32>
    %cst_172 = arith.constant dense<0.000000e+00> : vector<16x128xf32>
    %166 = tpu.matmul %165, %164, %cst_172 {dimension_numbers = #tpu.dot_dimension_numbers<[1], [0], [0], [1], [0, 0, 1, 1], [], []>} : vector<16x20xf32>, vector<20x128xf32>, vector<16x128xf32> -> vector<16x128xf32>
    %c0_173 = arith.constant 0 : index
    %c0_174 = arith.constant 0 : index
    %167 = vector.load %arg15[%c0_173, %c0_174] : memref<1x128xf32, #tpu.memory_space<vmem>>, vector<1x128xf32>
    %168 = vector.broadcast %167 : vector<1x128xf32> to vector<16x128xf32>
    %169 = arith.addf %166, %168 : vector<16x128xf32>
    %cst_175 = arith.constant 0.000000e+00 : f32
    %170 = vector.broadcast %cst_175 : f32 to vector<16x128xf32>
    %171 = arith.maximumf %169, %170 : vector<16x128xf32>
    %cst_176 = arith.constant 0.000000e+00 : f32
    %172 = vector.broadcast %cst_176 : f32 to vector<4x128xf32>
    %c0_177 = arith.constant 0 : index
    %c0_178 = arith.constant 0 : index
    %173 = vector.load %arg27[%c0_177, %c0_178] : memref<136x128xf32, #tpu.memory_space<vmem>>, vector<4x128xf32>
    tpu.vector_store %arg27[%c0_177, %c0_178], %172 {strides = array<i32>} : memref<136x128xf32, #tpu.memory_space<vmem>>, vector<4x128xf32>,
    %cst_179 = arith.constant 0.000000e+00 : f32
    %174 = vector.broadcast %cst_179 : f32 to vector<4x128xf32>
    %c12_180 = arith.constant 12 : index
    %c0_181 = arith.constant 0 : index
    %175 = vector.load %arg27[%c12_180, %c0_181] : memref<136x128xf32, #tpu.memory_space<vmem>>, vector<4x128xf32>
    tpu.vector_store %arg27[%c12_180, %c0_181], %174 {strides = array<i32>} : memref<136x128xf32, #tpu.memory_space<vmem>>, vector<4x128xf32>,
    %176 = vector.extract_strided_slice %171 {offsets = [0, 0], sizes = [8, 128], strides = [1, 1]} : vector<16x128xf32> to vector<8x128xf32>
    %c4_182 = arith.constant 4 : index
    %c0_183 = arith.constant 0 : index
    %177 = vector.load %arg27[%c4_182, %c0_183] : memref<136x128xf32, #tpu.memory_space<vmem>>, vector<8x128xf32>
    tpu.vector_store %arg27[%c4_182, %c0_183], %176 {strides = array<i32>} : memref<136x128xf32, #tpu.memory_space<vmem>>, vector<8x128xf32>,
    %cst_184 = arith.constant 0.000000e+00 : f32
    %178 = vector.broadcast %cst_184 : f32 to vector<4x128xf32>
    %c16 = arith.constant 16 : index
    %c0_185 = arith.constant 0 : index
    %179 = vector.load %arg27[%c16, %c0_185] : memref<136x128xf32, #tpu.memory_space<vmem>>, vector<4x128xf32>
    tpu.vector_store %arg27[%c16, %c0_185], %178 {strides = array<i32>} : memref<136x128xf32, #tpu.memory_space<vmem>>, vector<4x128xf32>,
    %cst_186 = arith.constant 0.000000e+00 : f32
    %180 = vector.broadcast %cst_186 : f32 to vector<4x128xf32>
    %c28 = arith.constant 28 : index
    %c0_187 = arith.constant 0 : index
    %181 = vector.load %arg27[%c28, %c0_187] : memref<136x128xf32, #tpu.memory_space<vmem>>, vector<4x128xf32>
    tpu.vector_store %arg27[%c28, %c0_187], %180 {strides = array<i32>} : memref<136x128xf32, #tpu.memory_space<vmem>>, vector<4x128xf32>,
    %182 = vector.extract_strided_slice %171 {offsets = [8, 0], sizes = [8, 128], strides = [1, 1]} : vector<16x128xf32> to vector<8x128xf32>
    %c20_188 = arith.constant 20 : index
    %c0_189 = arith.constant 0 : index
    %183 = vector.load %arg27[%c20_188, %c0_189] : memref<136x128xf32, #tpu.memory_space<vmem>>, vector<8x128xf32>
    tpu.vector_store %arg27[%c20_188, %c0_189], %182 {strides = array<i32>} : memref<136x128xf32, #tpu.memory_space<vmem>>, vector<8x128xf32>,
    %c0_190 = arith.constant 0 : index
    %c0_191 = arith.constant 0 : index
    %184 = vector.load %arg27[%c0_190, %c0_191] : memref<136x128xf32, #tpu.memory_space<vmem>>, vector<24x128xf32>
    %c0_192 = arith.constant 0 : index
    %c0_193 = arith.constant 0 : index
    %c0_194 = arith.constant 0 : index
    %185 = vector.load %arg16[%c0_192, %c0_193, %c0_194] : memref<3x128x128xf32, #tpu.memory_space<vmem>>, vector<1x128x128xf32>
    %186 = vector.shape_cast %185 : vector<1x128x128xf32> to vector<128x128xf32>
    %cst_195 = arith.constant dense<0.000000e+00> : vector<24x128xf32>
    %187 = tpu.matmul %184, %186, %cst_195 {dimension_numbers = #tpu.dot_dimension_numbers<[1], [0], [0], [1], [0, 0, 1, 1], [], []>} : vector<24x128xf32>, vector<128x128xf32>, vector<24x128xf32> -> vector<24x128xf32>
    %c4_196 = arith.constant 4 : index
    %c0_197 = arith.constant 0 : index
    %188 = vector.load %arg27[%c4_196, %c0_197] : memref<136x128xf32, #tpu.memory_space<vmem>>, vector<24x128xf32>
    %c1_198 = arith.constant 1 : index
    %c0_199 = arith.constant 0 : index
    %c0_200 = arith.constant 0 : index
    %189 = vector.load %arg16[%c1_198, %c0_199, %c0_200] : memref<3x128x128xf32, #tpu.memory_space<vmem>>, vector<1x128x128xf32>
    %190 = vector.shape_cast %189 : vector<1x128x128xf32> to vector<128x128xf32>
    %cst_201 = arith.constant dense<0.000000e+00> : vector<24x128xf32>
    %191 = tpu.matmul %188, %190, %cst_201 {dimension_numbers = #tpu.dot_dimension_numbers<[1], [0], [0], [1], [0, 0, 1, 1], [], []>} : vector<24x128xf32>, vector<128x128xf32>, vector<24x128xf32> -> vector<24x128xf32>
    %192 = arith.addf %187, %191 : vector<24x128xf32>
    %c8 = arith.constant 8 : index
    %c0_202 = arith.constant 0 : index
    %193 = vector.load %arg27[%c8, %c0_202] : memref<136x128xf32, #tpu.memory_space<vmem>>, vector<24x128xf32>
    %c2_203 = arith.constant 2 : index
    %c0_204 = arith.constant 0 : index
    %c0_205 = arith.constant 0 : index
    %194 = vector.load %arg16[%c2_203, %c0_204, %c0_205] : memref<3x128x128xf32, #tpu.memory_space<vmem>>, vector<1x128x128xf32>
    %195 = vector.shape_cast %194 : vector<1x128x128xf32> to vector<128x128xf32>
    %cst_206 = arith.constant dense<0.000000e+00> : vector<24x128xf32>
    %196 = tpu.matmul %193, %195, %cst_206 {dimension_numbers = #tpu.dot_dimension_numbers<[1], [0], [0], [1], [0, 0, 1, 1], [], []>} : vector<24x128xf32>, vector<128x128xf32>, vector<24x128xf32> -> vector<24x128xf32>
    %197 = arith.addf %192, %196 : vector<24x128xf32>
    %c0_207 = arith.constant 0 : index
    %c0_208 = arith.constant 0 : index
    %198 = vector.load %arg5[%c0_207, %c0_208] : memref<16x24xf32, #tpu.memory_space<vmem>>, vector<16x24xf32>
    %cst_209 = arith.constant dense<0.000000e+00> : vector<16x128xf32>
    %199 = tpu.matmul %198, %197, %cst_209 {dimension_numbers = #tpu.dot_dimension_numbers<[1], [0], [0], [1], [0, 0, 1, 1], [], []>} : vector<16x24xf32>, vector<24x128xf32>, vector<16x128xf32> -> vector<16x128xf32>
    %c0_210 = arith.constant 0 : index
    %c0_211 = arith.constant 0 : index
    %200 = vector.load %arg17[%c0_210, %c0_211] : memref<1x128xf32, #tpu.memory_space<vmem>>, vector<1x128xf32>
    %201 = vector.broadcast %200 : vector<1x128xf32> to vector<16x128xf32>
    %202 = arith.addf %199, %201 : vector<16x128xf32>
    %cst_212 = arith.constant 0.000000e+00 : f32
    %203 = vector.broadcast %cst_212 : f32 to vector<16x128xf32>
    %204 = arith.maximumf %202, %203 : vector<16x128xf32>
    %cst_213 = arith.constant 0.000000e+00 : f32
    %205 = vector.broadcast %cst_213 : f32 to vector<1x128xf32>
    %c0_214 = arith.constant 0 : index
    %c0_215 = arith.constant 0 : index
    %206 = vector.load %arg27[%c0_214, %c0_215] : memref<136x128xf32, #tpu.memory_space<vmem>>, vector<1x128xf32>
    tpu.vector_store %arg27[%c0_214, %c0_215], %205 {strides = array<i32>} : memref<136x128xf32, #tpu.memory_space<vmem>>, vector<1x128xf32>,
    %cst_216 = arith.constant 0.000000e+00 : f32
    %207 = vector.broadcast %cst_216 : f32 to vector<1x128xf32>
    %c9 = arith.constant 9 : index
    %c0_217 = arith.constant 0 : index
    %208 = vector.load %arg27[%c9, %c0_217] : memref<136x128xf32, #tpu.memory_space<vmem>>, vector<1x128xf32>
    tpu.vector_store %arg27[%c9, %c0_217], %207 {strides = array<i32>} : memref<136x128xf32, #tpu.memory_space<vmem>>, vector<1x128xf32>,
    %209 = vector.extract_strided_slice %204 {offsets = [0, 0], sizes = [8, 128], strides = [1, 1]} : vector<16x128xf32> to vector<8x128xf32>
    %c1_218 = arith.constant 1 : index
    %c0_219 = arith.constant 0 : index
    %210 = vector.load %arg27[%c1_218, %c0_219] : memref<136x128xf32, #tpu.memory_space<vmem>>, vector<8x128xf32>
    tpu.vector_store %arg27[%c1_218, %c0_219], %209 {strides = array<i32>} : memref<136x128xf32, #tpu.memory_space<vmem>>, vector<8x128xf32>,
    %cst_220 = arith.constant 0.000000e+00 : f32
    %211 = vector.broadcast %cst_220 : f32 to vector<1x128xf32>
    %c10_221 = arith.constant 10 : index
    %c0_222 = arith.constant 0 : index
    %212 = vector.load %arg27[%c10_221, %c0_222] : memref<136x128xf32, #tpu.memory_space<vmem>>, vector<1x128xf32>
    tpu.vector_store %arg27[%c10_221, %c0_222], %211 {strides = array<i32>} : memref<136x128xf32, #tpu.memory_space<vmem>>, vector<1x128xf32>,
    %cst_223 = arith.constant 0.000000e+00 : f32
    %213 = vector.broadcast %cst_223 : f32 to vector<1x128xf32>
    %c19 = arith.constant 19 : index
    %c0_224 = arith.constant 0 : index
    %214 = vector.load %arg27[%c19, %c0_224] : memref<136x128xf32, #tpu.memory_space<vmem>>, vector<1x128xf32>
    tpu.vector_store %arg27[%c19, %c0_224], %213 {strides = array<i32>} : memref<136x128xf32, #tpu.memory_space<vmem>>, vector<1x128xf32>,
    %215 = vector.extract_strided_slice %204 {offsets = [8, 0], sizes = [8, 128], strides = [1, 1]} : vector<16x128xf32> to vector<8x128xf32>
    %c11 = arith.constant 11 : index
    %c0_225 = arith.constant 0 : index
    %216 = vector.load %arg27[%c11, %c0_225] : memref<136x128xf32, #tpu.memory_space<vmem>>, vector<8x128xf32>
    tpu.vector_store %arg27[%c11, %c0_225], %215 {strides = array<i32>} : memref<136x128xf32, #tpu.memory_space<vmem>>, vector<8x128xf32>,
    %c0_226 = arith.constant 0 : index
    %c0_227 = arith.constant 0 : index
    %217 = vector.load %arg27[%c0_226, %c0_227] : memref<136x128xf32, #tpu.memory_space<vmem>>, vector<17x128xf32>
    %c0_228 = arith.constant 0 : index
    %c0_229 = arith.constant 0 : index
    %c0_230 = arith.constant 0 : index
    %218 = vector.load %arg18[%c0_228, %c0_229, %c0_230] : memref<3x128x256xf32, #tpu.memory_space<vmem>>, vector<1x128x256xf32>
    %219 = vector.shape_cast %218 : vector<1x128x256xf32> to vector<128x256xf32>
    %cst_231 = arith.constant dense<0.000000e+00> : vector<17x256xf32>
    %220 = tpu.matmul %217, %219, %cst_231 {dimension_numbers = #tpu.dot_dimension_numbers<[1], [0], [0], [1], [0, 0, 1, 1], [], []>} : vector<17x128xf32>, vector<128x256xf32>, vector<17x256xf32> -> vector<17x256xf32>
    %c1_232 = arith.constant 1 : index
    %c0_233 = arith.constant 0 : index
    %221 = vector.load %arg27[%c1_232, %c0_233] : memref<136x128xf32, #tpu.memory_space<vmem>>, vector<17x128xf32>
    %c1_234 = arith.constant 1 : index
    %c0_235 = arith.constant 0 : index
    %c0_236 = arith.constant 0 : index
    %222 = vector.load %arg18[%c1_234, %c0_235, %c0_236] : memref<3x128x256xf32, #tpu.memory_space<vmem>>, vector<1x128x256xf32>
    %223 = vector.shape_cast %222 : vector<1x128x256xf32> to vector<128x256xf32>
    %cst_237 = arith.constant dense<0.000000e+00> : vector<17x256xf32>
    %224 = tpu.matmul %221, %223, %cst_237 {dimension_numbers = #tpu.dot_dimension_numbers<[1], [0], [0], [1], [0, 0, 1, 1], [], []>} : vector<17x128xf32>, vector<128x256xf32>, vector<17x256xf32> -> vector<17x256xf32>
    %225 = arith.addf %220, %224 : vector<17x256xf32>
    %c2_238 = arith.constant 2 : index
    %c0_239 = arith.constant 0 : index
    %226 = vector.load %arg27[%c2_238, %c0_239] : memref<136x128xf32, #tpu.memory_space<vmem>>, vector<17x128xf32>
    %c2_240 = arith.constant 2 : index
    %c0_241 = arith.constant 0 : index
    %c0_242 = arith.constant 0 : index
    %227 = vector.load %arg18[%c2_240, %c0_241, %c0_242] : memref<3x128x256xf32, #tpu.memory_space<vmem>>, vector<1x128x256xf32>
    %228 = vector.shape_cast %227 : vector<1x128x256xf32> to vector<128x256xf32>
    %cst_243 = arith.constant dense<0.000000e+00> : vector<17x256xf32>
    %229 = tpu.matmul %226, %228, %cst_243 {dimension_numbers = #tpu.dot_dimension_numbers<[1], [0], [0], [1], [0, 0, 1, 1], [], []>} : vector<17x128xf32>, vector<128x256xf32>, vector<17x256xf32> -> vector<17x256xf32>
    %230 = arith.addf %225, %229 : vector<17x256xf32>
    %c0_244 = arith.constant 0 : index
    %c0_245 = arith.constant 0 : index
    %231 = vector.load %arg6[%c0_244, %c0_245] : memref<8x17xf32, #tpu.memory_space<vmem>>, vector<8x17xf32>
    %cst_246 = arith.constant dense<0.000000e+00> : vector<8x256xf32>
    %232 = tpu.matmul %231, %230, %cst_246 {dimension_numbers = #tpu.dot_dimension_numbers<[1], [0], [0], [1], [0, 0, 1, 1], [], []>} : vector<8x17xf32>, vector<17x256xf32>, vector<8x256xf32> -> vector<8x256xf32>
    %c0_247 = arith.constant 0 : index
    %c0_248 = arith.constant 0 : index
    %233 = vector.load %arg19[%c0_247, %c0_248] : memref<1x256xf32, #tpu.memory_space<vmem>>, vector<1x256xf32>
    %234 = vector.broadcast %233 : vector<1x256xf32> to vector<8x256xf32>
    %235 = arith.addf %232, %234 : vector<8x256xf32>
    %cst_249 = arith.constant 0.000000e+00 : f32
    %236 = vector.broadcast %cst_249 : f32 to vector<8x256xf32>
    %237 = arith.maximumf %235, %236 : vector<8x256xf32>
    %c0_250 = arith.constant 0 : index
    %c0_251 = arith.constant 0 : index
    %238 = vector.load %arg7[%c0_250, %c0_251] : memref<2x8xf32, #tpu.memory_space<vmem>>, vector<2x8xf32>
    %cst_252 = arith.constant dense<0.000000e+00> : vector<2x256xf32>
    %239 = tpu.matmul %238, %237, %cst_252 {dimension_numbers = #tpu.dot_dimension_numbers<[1], [0], [0], [1], [0, 0, 1, 1], [], []>} : vector<2x8xf32>, vector<8x256xf32>, vector<2x256xf32> -> vector<2x256xf32>
    %c0_253 = arith.constant 0 : index
    %c0_254 = arith.constant 0 : index
    %240 = vector.load %arg20[%c0_253, %c0_254] : memref<256x128xf32, #tpu.memory_space<vmem>>, vector<256x128xf32>
    %cst_255 = arith.constant dense<0.000000e+00> : vector<2x128xf32>
    %241 = tpu.matmul %239, %240, %cst_255 {dimension_numbers = #tpu.dot_dimension_numbers<[1], [0], [0], [1], [0, 0, 1, 1], [], []>} : vector<2x256xf32>, vector<256x128xf32>, vector<2x128xf32> -> vector<2x128xf32>
    %c0_256 = arith.constant 0 : index
    %c0_257 = arith.constant 0 : index
    %242 = vector.load %arg21[%c0_256, %c0_257] : memref<1x128xf32, #tpu.memory_space<vmem>>, vector<1x128xf32>
    %243 = vector.broadcast %242 : vector<1x128xf32> to vector<2x128xf32>
    %244 = arith.addf %241, %243 : vector<2x128xf32>
    %cst_258 = arith.constant 0.000000e+00 : f32
    %245 = vector.broadcast %cst_258 : f32 to vector<2x128xf32>
    %246 = arith.maximumf %244, %245 : vector<2x128xf32>
    %c0_259 = arith.constant 0 : index
    %c0_260 = arith.constant 0 : index
    %247 = vector.load %arg22[%c0_259, %c0_260] : memref<128x64xf32, #tpu.memory_space<vmem>>, vector<128x64xf32>
    %cst_261 = arith.constant dense<0.000000e+00> : vector<2x64xf32>
    %248 = tpu.matmul %246, %247, %cst_261 {dimension_numbers = #tpu.dot_dimension_numbers<[1], [0], [0], [1], [0, 0, 1, 1], [], []>} : vector<2x128xf32>, vector<128x64xf32>, vector<2x64xf32> -> vector<2x64xf32>
    %c0_262 = arith.constant 0 : index
    %c0_263 = arith.constant 0 : index
    %249 = vector.load %arg23[%c0_262, %c0_263] : memref<1x64xf32, #tpu.memory_space<vmem>>, vector<1x64xf32>
    %250 = vector.broadcast %249 : vector<1x64xf32> to vector<2x64xf32>
    %251 = arith.addf %248, %250 : vector<2x64xf32>
    %cst_264 = arith.constant 0.000000e+00 : f32
    %252 = vector.broadcast %cst_264 : f32 to vector<2x64xf32>
    %253 = arith.maximumf %251, %252 : vector<2x64xf32>
    %c0_265 = arith.constant 0 : index
    %c0_266 = arith.constant 0 : index
    %254 = vector.load %arg24[%c0_265, %c0_266] : memref<64x3xf32, #tpu.memory_space<vmem>>, vector<64x3xf32>
    %cst_267 = arith.constant dense<0.000000e+00> : vector<2x3xf32>
    %255 = tpu.matmul %253, %254, %cst_267 {dimension_numbers = #tpu.dot_dimension_numbers<[1], [0], [0], [1], [0, 0, 1, 1], [], []>} : vector<2x64xf32>, vector<64x3xf32>, vector<2x3xf32> -> vector<2x3xf32>
    %c0_268 = arith.constant 0 : index
    %c0_269 = arith.constant 0 : index
    %256 = vector.load %arg25[%c0_268, %c0_269] : memref<1x3xf32, #tpu.memory_space<vmem>>, vector<1x3xf32>
    %257 = vector.broadcast %256 : vector<1x3xf32> to vector<2x3xf32>
    %258 = arith.addf %255, %257 : vector<2x3xf32>
    %c0_270 = arith.constant 0 : index
    %c0_271 = arith.constant 0 : index
    %259 = vector.load %arg26[%c0_270, %c0_271] : memref<2x3xf32, #tpu.memory_space<vmem>>, vector<2x3xf32>
    tpu.vector_store %arg26[%c0_270, %c0_271], %258 {strides = array<i32>} : memref<2x3xf32, #tpu.memory_space<vmem>>, vector<2x3xf32>,
    return
  }
}

</mosaic_0001>

<llo_original>
// kernel: pallet_pose_cnn_forward.1
$region0: #{pallet_pose_cnn_forward.1}
  #allocation0 [shape = 'u32[]', space=smem, size = 0x4, offset = 0x4, fixed_abs, tag = 'smem constant byte address 0x4 - core index']
  #allocation1 [shape = 'u32[72,128]{1,0:T(1,128)}', space=vmem, size = 0x9000, scoped, tag = 'internal scratch']
  #allocation2 [shape = 'f32[136,128]{1,0:T(8,128)}', space=vmem, size = 0x11000, scoped, tag = 'scratch operand']
  %s0 = inlined_call_operand.vmem [shape: f32[64,2], index: 0, kind: input, shape index: {}]
  %s1 = inlined_call_operand.hbm [shape: f32[64,131], index: 1, kind: input, shape index: {}]
  %s2 = inlined_call_operand.hbm [shape: f32[32,67], index: 2, kind: input, shape index: {}]
  %s3 = inlined_call_operand.hbm [shape: f32[16,35], index: 3, kind: input, shape index: {}]
  %s4 = inlined_call_operand.hbm [shape: f32[16,20], index: 4, kind: input, shape index: {}]
  %s5 = inlined_call_operand.vmem [shape: f32[16,24], index: 5, kind: input, shape index: {}]
  %s6 = inlined_call_operand.vmem [shape: f32[8,17], index: 6, kind: input, shape index: {}]
  %s7 = inlined_call_operand.vmem [shape: f32[2,8], index: 7, kind: input, shape index: {}]
  %s8 = inlined_call_operand.hbm [shape: f32[5,1,32], index: 8, kind: input, shape index: {}]
  %s9 = inlined_call_operand.hbm [shape: f32[1,32], index: 9, kind: input, shape index: {}]
  %s10 = inlined_call_operand.hbm [shape: f32[5,32,64], index: 10, kind: input, shape index: {}]
  %s11 = inlined_call_operand.hbm [shape: f32[1,64], index: 11, kind: input, shape index: {}]
  %s12 = inlined_call_operand.vmem [shape: f32[5,64,128], index: 12, kind: input, shape index: {}]
  %s13 = inlined_call_operand.hbm [shape: f32[1,128], index: 13, kind: input, shape index: {}]
  %s14 = inlined_call_operand.hbm [shape: f32[3,128,128], index: 14, kind: input, shape index: {}]
  %s15 = inlined_call_operand.hbm [shape: f32[1,128], index: 15, kind: input, shape index: {}]
  %s16 = inlined_call_operand.hbm [shape: f32[3,128,128], index: 16, kind: input, shape index: {}]
  %s17 = inlined_call_operand.hbm [shape: f32[1,128], index: 17, kind: input, shape index: {}]
  %s18 = inlined_call_operand.hbm [shape: f32[3,128,256], index: 18, kind: input, shape index: {}]
  %s19 = inlined_call_operand.vmem [shape: f32[1,256], index: 19, kind: input, shape index: {}]
  %s20 = inlined_call_operand.hbm [shape: f32[256,128], index: 20, kind: input, shape index: {}]
  %s21 = inlined_call_operand.hbm [shape: f32[1,128], index: 21, kind: input, shape index: {}]
  %s22 = inlined_call_operand.vmem [shape: f32[128,64], index: 22, kind: input, shape index: {}]
  %s23 = inlined_call_operand.hbm [shape: f32[1,64], index: 23, kind: input, shape index: {}]
  %s24 = inlined_call_operand.vmem [shape: f32[64,3], index: 24, kind: input, shape index: {}]
  %s25 = inlined_call_operand.hbm [shape: f32[1,3], index: 25, kind: input, shape index: {}]
  %s26 = inlined_call_operand.hbm [shape: f32[2,3], index: 26, kind: output, shape index: {}]
  %s27 = sld [smem:[#allocation0]]
  $region186: #{pallet_pose_cnn_forward.1} parent=0
    _
  %s29 = ssub.s32 1, %s27
  %s30 = scalar_select 0, %s29, %s27
  $region1: #{pallet_pose_cnn_forward.1} parent=0
    #allocation3 [shape = 'u8[65536]{0}', space=vmem, size = 0x10000, scoped, tag = 'input window, operand 1, single buffered']
    #allocation4 [shape = 's32[1]{0}', space=sflag, size = 0x4, scoped, tag = 'scoped memory for pallet_pose_cnn_forward.1']
    #allocation5 [shape = 's32[1]{0}', space=sflag, size = 0x4, scoped, tag = 'scoped memory for pallet_pose_cnn_forward.1']
    #allocation6 [shape = 'u8[16384]{0}', space=vmem, size = 0x4000, scoped, tag = 'input window, operand 2, single buffered']
    #allocation7 [shape = 's32[1]{0}', space=sflag, size = 0x4, scoped, tag = 'scoped memory for pallet_pose_cnn_forward.1']
    #allocation8 [shape = 'u8[8192]{0}', space=vmem, size = 0x2000, scoped, tag = 'input window, operand 3, single buffered']
    #allocation9 [shape = 'u8[8192]{0}', space=vmem, size = 0x2000, scoped, tag = 'input window, operand 4, single buffered']
    #allocation10 [shape = 's32[1]{0}', space=sflag, size = 0x4, scoped, tag = 'scoped memory for pallet_pose_cnn_forward.1']
    #allocation11 [shape = 'u8[2560]{0}', space=vmem, size = 0xc00, scoped, tag = 'input window, operand 8, single buffered']
    #allocation12 [shape = 'u8[512]{0}', space=vmem, size = 0x400, scoped, tag = 'input window, operand 9, single buffered']
    #allocation13 [shape = 's32[1]{0}', space=sflag, size = 0x4, scoped, tag = 'scoped memory for pallet_pose_cnn_forward.1']
    #allocation14 [shape = 'u8[81920]{0}', space=vmem, size = 0x14000, scoped, tag = 'input window, operand 10, single buffered']
    #allocation15 [shape = 'u8[512]{0}', space=vmem, size = 0x400, scoped, tag = 'input window, operand 11, single buffered']
    #allocation16 [shape = 's32[1]{0}', space=sflag, size = 0x4, scoped, tag = 'scoped memory for pallet_pose_cnn_forward.1']
    #allocation17 [shape = 'u8[512]{0}', space=vmem, size = 0x400, scoped, tag = 'input window, operand 13, single buffered']
    #allocation18 [shape = 'u8[196608]{0}', space=vmem, size = 0x30000, scoped, tag = 'input window, operand 14, single buffered']
    #allocation19 [shape = 's32[1]{0}', space=sflag, size = 0x4, scoped, tag = 'scoped memory for pallet_pose_cnn_forward.1']
    #allocation20 [shape = 'u8[512]{0}', space=vmem, size = 0x400, scoped, tag = 'input window, operand 15, single buffered']
    #allocation21 [shape = 'u8[196608]{0}', space=vmem, size = 0x30000, scoped, tag = 'input window, operand 16, single buffered']
    #allocation22 [shape = 's32[1]{0}', space=sflag, size = 0x4, scoped, tag = 'scoped memory for pallet_pose_cnn_forward.1']
    #allocation23 [shape = 'u8[512]{0}', space=vmem, size = 0x400, scoped, tag = 'input window, operand 17, single buffered']
    #allocation24 [shape = 'u8[393216]{0}', space=vmem, size = 0x60000, scoped, tag = 'input window, operand 18, single buffered']
    #allocation25 [shape = 's32[1]{0}', space=sflag, size = 0x4, scoped, tag = 'scoped memory for pallet_pose_cnn_forward.1']
    #allocation26 [shape = 'u8[131072]{0}', space=vmem, size = 0x20000, scoped, tag = 'input window, operand 20, single buffered']
    #allocation27 [shape = 'u8[512]{0}', space=vmem, size = 0x400, scoped, tag = 'input window, operand 21, single buffered']
    #allocation28 [shape = 's32[1]{0}', space=sflag, size = 0x4, scoped, tag = 'scoped memory for pallet_pose_cnn_forward.1']
    #allocation29 [shape = 'u8[512]{0}', space=vmem, size = 0x400, scoped, tag = 'input window, operand 23, single buffered']
    #allocation30 [shape = 'u8[512]{0}', space=vmem, size = 0x400, scoped, tag = 'input window, operand 25, single buffered']
    #allocation31 [shape = 's32[1]{0}', space=sflag, size = 0x4, scoped, tag = 'scoped memory for pallet_pose_cnn_forward.1']
    #allocation32 [shape = 'u8[1024]{0}', space=vmem, size = 0x400, scoped, tag = 'output window, operand 0, single buffered']
    %31 = vsyncpa [#allocation4], 0
    %32 = vsyncpa [#allocation7], 0
    %33 = vsyncpa [#allocation10], 0
    %34 = vsyncpa [#allocation13], 0
    %35 = vsyncpa [#allocation16], 0
    %36 = vsyncpa [#allocation19], 0
    %37 = vsyncpa [#allocation22], 0
    %38 = vsyncpa [#allocation25], 0
    %39 = vsyncpa [#allocation28], 0
    %40 = vsyncpa [#allocation31], 0
    %41 = vsyncpa [#allocation5], 0
    // Predicated region
    $region2: #{pallet_pose_cnn_forward.1} parent=1 // pred_check
      _
    $region3: #{pallet_pose_cnn_forward.1} parent=1 // pred_check_branch
      %43 = sbr.rel (0) target = $region5
    $region4: #{pallet_pose_cnn_forward.1} parent=1 // pred_region
      _
    $region5: #{pallet_pose_cnn_forward.1} parent=1 // pred_fallthru
      _
    // Predicated region
    $region6: #{pallet_pose_cnn_forward.1} parent=1 // pred_check
      _
    $region7: #{pallet_pose_cnn_forward.1} parent=1 // pred_check_branch
      %45 = sbr.rel (0) target = $region9
    $region8: #{pallet_pose_cnn_forward.1} parent=1 // pred_region
      %47 = vsyncadd [#allocation4], 0
      %s48 = sshll.u32 %s1, 4
      %s49 = int_to_ptr.hbm [resolvable:$true] %s48
      %s50 = sshll.u32 [#allocation3], 4
      %s51 = int_to_ptr.vmem [resolvable:$true] %s50
      %56 = dma.hbm_to_vmem [thread:$0]  %s49, 2048, %s51, [#allocation4], 256, 256, 16
    $region9: #{pallet_pose_cnn_forward.1} parent=1 // pred_fallthru
      _
    // Predicated region
    $region10: #{pallet_pose_cnn_forward.1} parent=1 // pred_check
      _
    $region11: #{pallet_pose_cnn_forward.1} parent=1 // pred_check_branch
      %58 = sbr.rel (0) target = $region13
    $region12: #{pallet_pose_cnn_forward.1} parent=1 // pred_region
      %60 = vsyncadd [#allocation7], 0
      %s61 = sshll.u32 %s2, 4
      %s62 = int_to_ptr.hbm [resolvable:$true] %s61
      %s63 = sshll.u32 [#allocation6], 4
      %s64 = int_to_ptr.vmem [resolvable:$true] %s63
      %69 = dma.hbm_to_vmem [thread:$0]  %s62, 512, %s64, [#allocation7], 128, 128, 8
    $region13: #{pallet_pose_cnn_forward.1} parent=1 // pred_fallthru
      _
    // Predicated region
    $region14: #{pallet_pose_cnn_forward.1} parent=1 // pred_check
      _
    $region15: #{pallet_pose_cnn_forward.1} parent=1 // pred_check_branch
      %71 = sbr.rel (0) target = $region17
    $region16: #{pallet_pose_cnn_forward.1} parent=1 // pred_region
      %73 = vsyncadd [#allocation7], 0
      %s74 = sshll.u32 %s3, 4
      %s75 = int_to_ptr.hbm [resolvable:$true] %s74
      %s76 = sshll.u32 [#allocation8], 4
      %s77 = int_to_ptr.vmem [resolvable:$true] %s76
      %82 = dma.hbm_to_vmem [thread:$0]  %s75, 256, %s77, [#allocation7], 128, 128, 8
    $region17: #{pallet_pose_cnn_forward.1} parent=1 // pred_fallthru
      _
    // Predicated region
    $region18: #{pallet_pose_cnn_forward.1} parent=1 // pred_check
      _
    $region19: #{pallet_pose_cnn_forward.1} parent=1 // pred_check_branch
      %84 = sbr.rel (0) target = $region21
    $region20: #{pallet_pose_cnn_forward.1} parent=1 // pred_region
      %86 = vsyncadd [#allocation10], 0
      %s87 = sshll.u32 %s4, 4
      %s88 = int_to_ptr.hbm [resolvable:$true] %s87
      %s89 = sshll.u32 [#allocation9], 4
      %s90 = int_to_ptr.vmem [resolvable:$true] %s89
      %95 = dma.hbm_to_vmem [thread:$0]  %s88, 256, %s90, [#allocation10], 128, 128, 8
    $region21: #{pallet_pose_cnn_forward.1} parent=1 // pred_fallthru
      _
    // Predicated region
    $region22: #{pallet_pose_cnn_forward.1} parent=1 // pred_check
      _
    $region23: #{pallet_pose_cnn_forward.1} parent=1 // pred_check_branch
      %97 = sbr.rel (0) target = $region25
    $region24: #{pallet_pose_cnn_forward.1} parent=1 // pred_region
      _
    $region25: #{pallet_pose_cnn_forward.1} parent=1 // pred_fallthru
      _
    // Predicated region
    $region26: #{pallet_pose_cnn_forward.1} parent=1 // pred_check
      _
    $region27: #{pallet_pose_cnn_forward.1} parent=1 // pred_check_branch
      %99 = sbr.rel (0) target = $region29
    $region28: #{pallet_pose_cnn_forward.1} parent=1 // pred_region
      _
    $region29: #{pallet_pose_cnn_forward.1} parent=1 // pred_fallthru
      _
    // Predicated region
    $region30: #{pallet_pose_cnn_forward.1} parent=1 // pred_check
      _
    $region31: #{pallet_pose_cnn_forward.1} parent=1 // pred_check_branch
      %101 = sbr.rel (0) target = $region33
    $region32: #{pallet_pose_cnn_forward.1} parent=1 // pred_region
      _
    $region33: #{pallet_pose_cnn_forward.1} parent=1 // pred_fallthru
      _
    // Predicated region
    $region34: #{pallet_pose_cnn_forward.1} parent=1 // pred_check
      _
    $region35: #{pallet_pose_cnn_forward.1} parent=1 // pred_check_branch
      %103 = sbr.rel (0) target = $region37
    $region36: #{pallet_pose_cnn_forward.1} parent=1 // pred_region
      %105 = vsyncadd [#allocation10], 0
      %s106 = sshll.u32 %s8, 4
      %s107 = int_to_ptr.hbm [resolvable:$true] %s106
      %s108 = sshll.u32 [#allocation11], 4
      %s109 = int_to_ptr.vmem [resolvable:$true] %s108
      %114 = dma.hbm_to_vmem [thread:$0]  %s107, 80, %s109, [#allocation10], 16, 16, 1
    $region37: #{pallet_pose_cnn_forward.1} parent=1 // pred_fallthru
      _
    // Predicated region
    $region38: #{pallet_pose_cnn_forward.1} parent=1 // pred_check
      _
    $region39: #{pallet_pose_cnn_forward.1} parent=1 // pred_check_branch
      %116 = sbr.rel (0) target = $region41
    $region40: #{pallet_pose_cnn_forward.1} parent=1 // pred_region
      %118 = vsyncadd [#allocation13], 0
      %s120 = sshll.u32 %s9, 4
      %s121 = int_to_ptr.hbm [resolvable:$true] %s120
      %s122 = sshll.u32 [#allocation12], 4
      %s123 = int_to_ptr.vmem [resolvable:$true] %s122
      %125 = dma.hbm_to_vmem [thread:$0]  %s121, 16, %s123, [#allocation13]
    $region41: #{pallet_pose_cnn_forward.1} parent=1 // pred_fallthru
      _
    // Predicated region
    $region42: #{pallet_pose_cnn_forward.1} parent=1 // pred_check
      _
    $region43: #{pallet_pose_cnn_forward.1} parent=1 // pred_check_branch
      %127 = sbr.rel (0) target = $region45
    $region44: #{pallet_pose_cnn_forward.1} parent=1 // pred_region
      %129 = vsyncadd [#allocation13], 0
      %s130 = sshll.u32 %s10, 4
      %s131 = int_to_ptr.hbm [resolvable:$true] %s130
      %s132 = sshll.u32 [#allocation14], 4
      %s133 = int_to_ptr.vmem [resolvable:$true] %s132
      %138 = dma.hbm_to_vmem [thread:$0]  %s131, 2560, %s133, [#allocation13], 128, 128, 8
    $region45: #{pallet_pose_cnn_forward.1} parent=1 // pred_fallthru
      _
    // Predicated region
    $region46: #{pallet_pose_cnn_forward.1} parent=1 // pred_check
      _
    $region47: #{pallet_pose_cnn_forward.1} parent=1 // pred_check_branch
      %140 = sbr.rel (0) target = $region49
    $region48: #{pallet_pose_cnn_forward.1} parent=1 // pred_region
      %142 = vsyncadd [#allocation16], 0
      %s144 = sshll.u32 %s11, 4
      %s145 = int_to_ptr.hbm [resolvable:$true] %s144
      %s146 = sshll.u32 [#allocation15], 4
      %s147 = int_to_ptr.vmem [resolvable:$true] %s146
      %149 = dma.hbm_to_vmem [thread:$0]  %s145, 16, %s147, [#allocation16]
    $region49: #{pallet_pose_cnn_forward.1} parent=1 // pred_fallthru
      _
    // Predicated region
    $region50: #{pallet_pose_cnn_forward.1} parent=1 // pred_check
      _
    $region51: #{pallet_pose_cnn_forward.1} parent=1 // pred_check_branch
      %151 = sbr.rel (0) target = $region53
    $region52: #{pallet_pose_cnn_forward.1} parent=1 // pred_region
      _
    $region53: #{pallet_pose_cnn_forward.1} parent=1 // pred_fallthru
      _
    // Predicated region
    $region54: #{pallet_pose_cnn_forward.1} parent=1 // pred_check
      _
    $region55: #{pallet_pose_cnn_forward.1} parent=1 // pred_check_branch
      %153 = sbr.rel (0) target = $region57
    $region56: #{pallet_pose_cnn_forward.1} parent=1 // pred_region
      %155 = vsyncadd [#allocation16], 0
      %s157 = sshll.u32 %s13, 4
      %s158 = int_to_ptr.hbm [resolvable:$true] %s157
      %s159 = sshll.u32 [#allocation17], 4
      %s160 = int_to_ptr.vmem [resolvable:$true] %s159
      %162 = dma.hbm_to_vmem [thread:$0]  %s158, 16, %s160, [#allocation16]
    $region57: #{pallet_pose_cnn_forward.1} parent=1 // pred_fallthru
      _
    // Predicated region
    $region58: #{pallet_pose_cnn_forward.1} parent=1 // pred_check
      _
    $region59: #{pallet_pose_cnn_forward.1} parent=1 // pred_check_branch
      %164 = sbr.rel (0) target = $region61
    $region60: #{pallet_pose_cnn_forward.1} parent=1 // pred_region
      %166 = vsyncadd [#allocation19], 0
      %s167 = sshll.u32 %s14, 4
      %s168 = int_to_ptr.hbm [resolvable:$true] %s167
      %s169 = sshll.u32 [#allocation18], 4
      %s170 = int_to_ptr.vmem [resolvable:$true] %s169
      %175 = dma.hbm_to_vmem [thread:$0]  %s168, 6144, %s170, [#allocation19], 128, 128, 8
    $region61: #{pallet_pose_cnn_forward.1} parent=1 // pred_fallthru
      _
    // Predicated region
    $region62: #{pallet_pose_cnn_forward.1} parent=1 // pred_check
      _
    $region63: #{pallet_pose_cnn_forward.1} parent=1 // pred_check_branch
      %177 = sbr.rel (0) target = $region65
    $region64: #{pallet_pose_cnn_forward.1} parent=1 // pred_region
      %179 = vsyncadd [#allocation19], 0
      %s181 = sshll.u32 %s15, 4
      %s182 = int_to_ptr.hbm [resolvable:$true] %s181
      %s183 = sshll.u32 [#allocation20], 4
      %s184 = int_to_ptr.vmem [resolvable:$true] %s183
      %186 = dma.hbm_to_vmem [thread:$0]  %s182, 16, %s184, [#allocation19]
    $region65: #{pallet_pose_cnn_forward.1} parent=1 // pred_fallthru
      _
    // Predicated region
    $region66: #{pallet_pose_cnn_forward.1} parent=1 // pred_check
      _
    $region67: #{pallet_pose_cnn_forward.1} parent=1 // pred_check_branch
      %188 = sbr.rel (0) target = $region69
    $region68: #{pallet_pose_cnn_forward.1} parent=1 // pred_region
      %190 = vsyncadd [#allocation22], 0
      %s191 = sshll.u32 %s16, 4
      %s192 = int_to_ptr.hbm [resolvable:$true] %s191
      %s193 = sshll.u32 [#allocation21], 4
      %s194 = int_to_ptr.vmem [resolvable:$true] %s193
      %199 = dma.hbm_to_vmem [thread:$0]  %s192, 6144, %s194, [#allocation22], 128, 128, 8
    $region69: #{pallet_pose_cnn_forward.1} parent=1 // pred_fallthru
      _
    // Predicated region
    $region70: #{pallet_pose_cnn_forward.1} parent=1 // pred_check
      _
    $region71: #{pallet_pose_cnn_forward.1} parent=1 // pred_check_branch
      %201 = sbr.rel (0) target = $region73
    $region72: #{pallet_pose_cnn_forward.1} parent=1 // pred_region
      %203 = vsyncadd [#allocation22], 0
      %s205 = sshll.u32 %s17, 4
      %s206 = int_to_ptr.hbm [resolvable:$true] %s205
      %s207 = sshll.u32 [#allocation23], 4
      %s208 = int_to_ptr.vmem [resolvable:$true] %s207
      %210 = dma.hbm_to_vmem [thread:$0]  %s206, 16, %s208, [#allocation22]
    $region73: #{pallet_pose_cnn_forward.1} parent=1 // pred_fallthru
      _
    // Predicated region
    $region74: #{pallet_pose_cnn_forward.1} parent=1 // pred_check
      _
    $region75: #{pallet_pose_cnn_forward.1} parent=1 // pred_check_branch
      %212 = sbr.rel (0) target = $region77
    $region76: #{pallet_pose_cnn_forward.1} parent=1 // pred_region
      %214 = vsyncadd [#allocation25], 0
      %s215 = sshll.u32 %s18, 4
      %s216 = int_to_ptr.hbm [resolvable:$true] %s215
      %s217 = sshll.u32 [#allocation24], 4
      %s218 = int_to_ptr.vmem [resolvable:$true] %s217
      %223 = dma.hbm_to_vmem [thread:$0]  %s216, 12288, %s218, [#allocation25], 256, 256, 16
    $region77: #{pallet_pose_cnn_forward.1} parent=1 // pred_fallthru
      _
    // Predicated region
    $region78: #{pallet_pose_cnn_forward.1} parent=1 // pred_check
      _
    $region79: #{pallet_pose_cnn_forward.1} parent=1 // pred_check_branch
      %225 = sbr.rel (0) target = $region81
    $region80: #{pallet_pose_cnn_forward.1} parent=1 // pred_region
      _
    $region81: #{pallet_pose_cnn_forward.1} parent=1 // pred_fallthru
      _
    // Predicated region
    $region82: #{pallet_pose_cnn_forward.1} parent=1 // pred_check
      _
    $region83: #{pallet_pose_cnn_forward.1} parent=1 // pred_check_branch
      %227 = sbr.rel (0) target = $region85
    $region84: #{pallet_pose_cnn_forward.1} parent=1 // pred_region
      %229 = vsyncadd [#allocation25], 0
      %s230 = sshll.u32 %s20, 4
      %s231 = int_to_ptr.hbm [resolvable:$true] %s230
      %s232 = sshll.u32 [#allocation26], 4
      %s233 = int_to_ptr.vmem [resolvable:$true] %s232
      %238 = dma.hbm_to_vmem [thread:$0]  %s231, 4096, %s233, [#allocation25], 128, 128, 8
    $region85: #{pallet_pose_cnn_forward.1} parent=1 // pred_fallthru
      _
    // Predicated region
    $region86: #{pallet_pose_cnn_forward.1} parent=1 // pred_check
      _
    $region87: #{pallet_pose_cnn_forward.1} parent=1 // pred_check_branch
      %240 = sbr.rel (0) target = $region89
    $region88: #{pallet_pose_cnn_forward.1} parent=1 // pred_region
      %242 = vsyncadd [#allocation28], 0
      %s244 = sshll.u32 %s21, 4
      %s245 = int_to_ptr.hbm [resolvable:$true] %s244
      %s246 = sshll.u32 [#allocation27], 4
      %s247 = int_to_ptr.vmem [resolvable:$true] %s246
      %249 = dma.hbm_to_vmem [thread:$0]  %s245, 16, %s247, [#allocation28]
    $region89: #{pallet_pose_cnn_forward.1} parent=1 // pred_fallthru
      _
    // Predicated region
    $region90: #{pallet_pose_cnn_forward.1} parent=1 // pred_check
      _
    $region91: #{pallet_pose_cnn_forward.1} parent=1 // pred_check_branch
      %251 = sbr.rel (0) target = $region93
    $region92: #{pallet_pose_cnn_forward.1} parent=1 // pred_region
      _
    $region93: #{pallet_pose_cnn_forward.1} parent=1 // pred_fallthru
      _
    // Predicated region
    $region94: #{pallet_pose_cnn_forward.1} parent=1 // pred_check
      _
    $region95: #{pallet_pose_cnn_forward.1} parent=1 // pred_check_branch
      %253 = sbr.rel (0) target = $region97
    $region96: #{pallet_pose_cnn_forward.1} parent=1 // pred_region
      %255 = vsyncadd [#allocation28], 0
      %s257 = sshll.u32 %s23, 4
      %s258 = int_to_ptr.hbm [resolvable:$true] %s257
      %s259 = sshll.u32 [#allocation29], 4
      %s260 = int_to_ptr.vmem [resolvable:$true] %s259
      %262 = dma.hbm_to_vmem [thread:$0]  %s258, 16, %s260, [#allocation28]
    $region97: #{pallet_pose_cnn_forward.1} parent=1 // pred_fallthru
      _
    // Predicated region
    $region98: #{pallet_pose_cnn_forward.1} parent=1 // pred_check
      _
    $region99: #{pallet_pose_cnn_forward.1} parent=1 // pred_check_branch
      %264 = sbr.rel (0) target = $region101
    $region100: #{pallet_pose_cnn_forward.1} parent=1 // pred_region
      _
    $region101: #{pallet_pose_cnn_forward.1} parent=1 // pred_fallthru
      _
    // Predicated region
    $region102: #{pallet_pose_cnn_forward.1} parent=1 // pred_check
      _
    $region103: #{pallet_pose_cnn_forward.1} parent=1 // pred_check_branch
      %266 = sbr.rel (0) target = $region105
    $region104: #{pallet_pose_cnn_forward.1} parent=1 // pred_region
      %268 = vsyncadd [#allocation31], 0
      %s270 = sshll.u32 %s25, 4
      %s271 = int_to_ptr.hbm [resolvable:$true] %s270
      %s272 = sshll.u32 [#allocation30], 4
      %s273 = int_to_ptr.vmem [resolvable:$true] %s272
      %275 = dma.hbm_to_vmem [thread:$0]  %s271, 16, %s273, [#allocation31]
    $region105: #{pallet_pose_cnn_forward.1} parent=1 // pred_fallthru
      _
    // Predicated region
    $region106: #{pallet_pose_cnn_forward.1} parent=1 // pred_check
      _
    $region107: #{pallet_pose_cnn_forward.1} parent=1 // pred_check_branch
      %277 = sbr.rel (0) target = $region109
    $region108: #{pallet_pose_cnn_forward.1} parent=1 // pred_region
      %279 = dma.done [#allocation4], 2048
    $region109: #{pallet_pose_cnn_forward.1} parent=1 // pred_fallthru
      _
    // Predicated region
    $region110: #{pallet_pose_cnn_forward.1} parent=1 // pred_check
      _
    $region111: #{pallet_pose_cnn_forward.1} parent=1 // pred_check_branch
      %281 = sbr.rel (0) target = $region113
    $region112: #{pallet_pose_cnn_forward.1} parent=1 // pred_region
      %283 = dma.done [#allocation7], 512
    $region113: #{pallet_pose_cnn_forward.1} parent=1 // pred_fallthru
      _
    // Predicated region
    $region114: #{pallet_pose_cnn_forward.1} parent=1 // pred_check
      _
    $region115: #{pallet_pose_cnn_forward.1} parent=1 // pred_check_branch
      %285 = sbr.rel (0) target = $region117
    $region116: #{pallet_pose_cnn_forward.1} parent=1 // pred_region
      %287 = dma.done [#allocation7], 256
    $region117: #{pallet_pose_cnn_forward.1} parent=1 // pred_fallthru
      _
    // Predicated region
    $region118: #{pallet_pose_cnn_forward.1} parent=1 // pred_check
      _
    $region119: #{pallet_pose_cnn_forward.1} parent=1 // pred_check_branch
      %289 = sbr.rel (0) target = $region121
    $region120: #{pallet_pose_cnn_forward.1} parent=1 // pred_region
      %291 = dma.done [#allocation10], 256
    $region121: #{pallet_pose_cnn_forward.1} parent=1 // pred_fallthru
      _
    // Predicated region
    $region122: #{pallet_pose_cnn_forward.1} parent=1 // pred_check
      _
    $region123: #{pallet_pose_cnn_forward.1} parent=1 // pred_check_branch
      %293 = sbr.rel (0) target = $region125
    $region124: #{pallet_pose_cnn_forward.1} parent=1 // pred_region
      %295 = dma.done [#allocation10], 80
    $region125: #{pallet_pose_cnn_forward.1} parent=1 // pred_fallthru
      _
    // Predicated region
    $region126: #{pallet_pose_cnn_forward.1} parent=1 // pred_check
      _
    $region127: #{pallet_pose_cnn_forward.1} parent=1 // pred_check_branch
      %297 = sbr.rel (0) target = $region129
    $region128: #{pallet_pose_cnn_forward.1} parent=1 // pred_region
      %299 = dma.done [#allocation13], 16
    $region129: #{pallet_pose_cnn_forward.1} parent=1 // pred_fallthru
      _
    // Predicated region
    $region130: #{pallet_pose_cnn_forward.1} parent=1 // pred_check
      _
    $region131: #{pallet_pose_cnn_forward.1} parent=1 // pred_check_branch
      %301 = sbr.rel (0) target = $region133
    $region132: #{pallet_pose_cnn_forward.1} parent=1 // pred_region
      %303 = dma.done [#allocation13], 2560
    $region133: #{pallet_pose_cnn_forward.1} parent=1 // pred_fallthru
      _
    // Predicated region
    $region134: #{pallet_pose_cnn_forward.1} parent=1 // pred_check
      _
    $region135: #{pallet_pose_cnn_forward.1} parent=1 // pred_check_branch
      %305 = sbr.rel (0) target = $region137
    $region136: #{pallet_pose_cnn_forward.1} parent=1 // pred_region
      %307 = dma.done [#allocation16], 16
    $region137: #{pallet_pose_cnn_forward.1} parent=1 // pred_fallthru
      _
    // Predicated region
    $region138: #{pallet_pose_cnn_forward.1} parent=1 // pred_check
      _
    $region139: #{pallet_pose_cnn_forward.1} parent=1 // pred_check_branch
      %309 = sbr.rel (0) target = $region141
    $region140: #{pallet_pose_cnn_forward.1} parent=1 // pred_region
      %311 = dma.done [#allocation16], 16
    $region141: #{pallet_pose_cnn_forward.1} parent=1 // pred_fallthru
      _
    // Predicated region
    $region142: #{pallet_pose_cnn_forward.1} parent=1 // pred_check
      _
    $region143: #{pallet_pose_cnn_forward.1} parent=1 // pred_check_branch
      %313 = sbr.rel (0) target = $region145
    $region144: #{pallet_pose_cnn_forward.1} parent=1 // pred_region
      %315 = dma.done [#allocation19], 6144
    $region145: #{pallet_pose_cnn_forward.1} parent=1 // pred_fallthru
      _
    // Predicated region
    $region146: #{pallet_pose_cnn_forward.1} parent=1 // pred_check
      _
    $region147: #{pallet_pose_cnn_forward.1} parent=1 // pred_check_branch
      %317 = sbr.rel (0) target = $region149
    $region148: #{pallet_pose_cnn_forward.1} parent=1 // pred_region
      %319 = dma.done [#allocation19], 16
    $region149: #{pallet_pose_cnn_forward.1} parent=1 // pred_fallthru
      _
    // Predicated region
    $region150: #{pallet_pose_cnn_forward.1} parent=1 // pred_check
      _
    $region151: #{pallet_pose_cnn_forward.1} parent=1 // pred_check_branch
      %321 = sbr.rel (0) target = $region153
    $region152: #{pallet_pose_cnn_forward.1} parent=1 // pred_region
      %323 = dma.done [#allocation22], 6144
    $region153: #{pallet_pose_cnn_forward.1} parent=1 // pred_fallthru
      _
    // Predicated region
    $region154: #{pallet_pose_cnn_forward.1} parent=1 // pred_check
      _
    $region155: #{pallet_pose_cnn_forward.1} parent=1 // pred_check_branch
      %325 = sbr.rel (0) target = $region157
    $region156: #{pallet_pose_cnn_forward.1} parent=1 // pred_region
      %327 = dma.done [#allocation22], 16
    $region157: #{pallet_pose_cnn_forward.1} parent=1 // pred_fallthru
      _
    // Predicated region
    $region158: #{pallet_pose_cnn_forward.1} parent=1 // pred_check
      _
    $region159: #{pallet_pose_cnn_forward.1} parent=1 // pred_check_branch
      %329 = sbr.rel (0) target = $region161
    $region160: #{pallet_pose_cnn_forward.1} parent=1 // pred_region
      %331 = dma.done [#allocation25], 12288
    $region161: #{pallet_pose_cnn_forward.1} parent=1 // pred_fallthru
      _
    // Predicated region
    $region162: #{pallet_pose_cnn_forward.1} parent=1 // pred_check
      _
    $region163: #{pallet_pose_cnn_forward.1} parent=1 // pred_check_branch
      %333 = sbr.rel (0) target = $region165
    $region164: #{pallet_pose_cnn_forward.1} parent=1 // pred_region
      %335 = dma.done [#allocation25], 4096
    $region165: #{pallet_pose_cnn_forward.1} parent=1 // pred_fallthru
      _
    // Predicated region
    $region166: #{pallet_pose_cnn_forward.1} parent=1 // pred_check
      _
    $region167: #{pallet_pose_cnn_forward.1} parent=1 // pred_check_branch
      %337 = sbr.rel (0) target = $region169
    $region168: #{pallet_pose_cnn_forward.1} parent=1 // pred_region
      %339 = dma.done [#allocation28], 16
    $region169: #{pallet_pose_cnn_forward.1} parent=1 // pred_fallthru
      _
    // Predicated region
    $region170: #{pallet_pose_cnn_forward.1} parent=1 // pred_check
      _
    $region171: #{pallet_pose_cnn_forward.1} parent=1 // pred_check_branch
      %341 = sbr.rel (0) target = $region173
    $region172: #{pallet_pose_cnn_forward.1} parent=1 // pred_region
      %343 = dma.done [#allocation28], 16
    $region173: #{pallet_pose_cnn_forward.1} parent=1 // pred_fallthru
      _
    // Predicated region
    $region174: #{pallet_pose_cnn_forward.1} parent=1 // pred_check
      _
    $region175: #{pallet_pose_cnn_forward.1} parent=1 // pred_check_branch
      %345 = sbr.rel (0) target = $region177
    $region176: #{pallet_pose_cnn_forward.1} parent=1 // pred_region
      %347 = dma.done [#allocation31], 16
    $region177: #{pallet_pose_cnn_forward.1} parent=1 // pred_fallthru
      _
    %348 = vst [vmem:[#allocation2] sm:$0x3] 0.0
    %349 = vst [vmem:[#allocation2 + $0x42] sm:$0x3] 0.0
    %v350 = vld [vmem:[%s0] sm:$0xff]
    %v351 = vld [vmem:[%s0 + $0x8] sm:$0xff]
    %v352 = vld [vmem:[%s0 + $0x10] sm:$0xff]
    %v353 = vld [vmem:[%s0 + $0x18] sm:$0xff]
    %v354 = vld [vmem:[%s0 + $0x20] sm:$0xff]
    %v355 = vld [vmem:[%s0 + $0x28] sm:$0xff]
    %v356 = vld [vmem:[%s0 + $0x30] sm:$0xff]
    %v357 = vld [vmem:[%s0 + $0x38] sm:$0xff]
    %vm358 = vcmask 7168
    %359 = vst.msk [vmem:[#allocation2 + $0x2] sm:$0xff] %vm358, %v350
    %360 = vst.msk [vmem:[#allocation2 + $0xa] sm:$0xff] %vm358, %v351
    %361 = vst.msk [vmem:[#allocation2 + $0x12] sm:$0xff] %vm358, %v352
    %362 = vst.msk [vmem:[#allocation2 + $0x1a] sm:$0xff] %vm358, %v353
    %363 = vst.msk [vmem:[#allocation2 + $0x22] sm:$0xff] %vm358, %v354
    %364 = vst.msk [vmem:[#allocation2 + $0x2a] sm:$0xff] %vm358, %v355
    %365 = vst.msk [vmem:[#allocation2 + $0x32] sm:$0xff] %vm358, %v356
    %366 = vst.msk [vmem:[#allocation2 + $0x3a] sm:$0xff] %vm358, %v357
    %367 = vst [vmem:[#allocation2 + $0x44] sm:$0x3] 0.0
    %368 = vst [vmem:[#allocation2 + $0x86] sm:$0x3] 0.0
    %v369 = vld [vmem:[%s0] sm:$0xff]
    %v370 = vld [vmem:[%s0 + $0x8] sm:$0xff]
    %v371 = vld [vmem:[%s0 + $0x10] sm:$0xff]
    %v372 = vld [vmem:[%s0 + $0x18] sm:$0xff]
    %v373 = vld [vmem:[%s0 + $0x20] sm:$0xff]
    %v374 = vld [vmem:[%s0 + $0x28] sm:$0xff]
    %v375 = vld [vmem:[%s0 + $0x30] sm:$0xff]
    %v376 = vld [vmem:[%s0 + $0x38] sm:$0xff]
    %385 = vrot.lane.b32.xlu0 %v369, 127
    %v386 = vpop.permute.xlu0 %385
    %387 = vrot.lane.b32.xlu0 %v370, 127
    %v388 = vpop.permute.xlu0 %387
    %389 = vrot.lane.b32.xlu0 %v371, 127
    %v390 = vpop.permute.xlu0 %389
    %391 = vrot.lane.b32.xlu0 %v372, 127
    %v392 = vpop.permute.xlu0 %391
    %393 = vrot.lane.b32.xlu0 %v373, 127
    %v394 = vpop.permute.xlu0 %393
    %395 = vrot.lane.b32.xlu0 %v374, 127
    %v396 = vpop.permute.xlu0 %395
    %397 = vrot.lane.b32.xlu0 %v375, 127
    %v398 = vpop.permute.xlu0 %397
    %399 = vrot.lane.b32.xlu0 %v376, 127
    %v400 = vpop.permute.xlu0 %399
    %409 = vst.msk [vmem:[#allocation2 + $0x46] sm:$0xff] %vm358, %v386
    %410 = vst.msk [vmem:[#allocation2 + $0x4e] sm:$0xff] %vm358, %v388
    %411 = vst.msk [vmem:[#allocation2 + $0x56] sm:$0xff] %vm358, %v390
    %412 = vst.msk [vmem:[#allocation2 + $0x5e] sm:$0xff] %vm358, %v392
    %413 = vst.msk [vmem:[#allocation2 + $0x66] sm:$0xff] %vm358, %v394
    %414 = vst.msk [vmem:[#allocation2 + $0x6e] sm:$0xff] %vm358, %v396
    %415 = vst.msk [vmem:[#allocation2 + $0x76] sm:$0xff] %vm358, %v398
    %416 = vst.msk [vmem:[#allocation2 + $0x7e] sm:$0xff] %vm358, %v400
    %v417 = vld [vmem:[#allocation2] sm:$0xff]
    %v418 = vld [vmem:[#allocation2 + $0x8] sm:$0xff]
    %v419 = vld [vmem:[#allocation2 + $0x10] sm:$0xff]
    %v420 = vld [vmem:[#allocation2 + $0x18] sm:$0xff]
    %v421 = vld [vmem:[#allocation2 + $0x20] sm:$0xff]
    %v422 = vld [vmem:[#allocation2 + $0x28] sm:$0xff]
    %v423 = vld [vmem:[#allocation2 + $0x30] sm:$0xff]
    %v424 = vld [vmem:[#allocation2 + $0x38] sm:$0xff]
    %v425 = vld [vmem:[#allocation2 + $0x40] sm:$0xff]
    %v426 = vld [vmem:[#allocation2 + $0x48] sm:$0xff]
    %v427 = vld [vmem:[#allocation2 + $0x50] sm:$0xff]
    %v428 = vld [vmem:[#allocation2 + $0x58] sm:$0xff]
    %v429 = vld [vmem:[#allocation2 + $0x60] sm:$0xff]
    %v430 = vld [vmem:[#allocation2 + $0x68] sm:$0xff]
    %v431 = vld [vmem:[#allocation2 + $0x70] sm:$0xff]
    %v432 = vld [vmem:[#allocation2 + $0x78] sm:$0xff]
    %v433 = vld [vmem:[#allocation2 + $0x80] sm:$0x7]
    %v434 = vld [vmem:[#allocation11] sm:$0x1]
    %436 = vset.pattern.permute.xlu0 0
    %437 = vperm.xlu0 %436, %v417
    %v438 = vpop.permute.xlu0 %437
    %441 = vset.pattern.permute.xlu0 0
    %442 = vperm.xlu0 %441, %v418
    %v443 = vpop.permute.xlu0 %442
    %446 = vset.pattern.permute.xlu0 0
    %447 = vperm.xlu0 %446, %v419
    %v448 = vpop.permute.xlu0 %447
    %451 = vset.pattern.permute.xlu0 0
    %452 = vperm.xlu0 %451, %v420
    %v453 = vpop.permute.xlu0 %452
    %456 = vset.pattern.permute.xlu0 0
    %457 = vperm.xlu0 %456, %v421
    %v458 = vpop.permute.xlu0 %457
    %461 = vset.pattern.permute.xlu0 0
    %462 = vperm.xlu0 %461, %v422
    %v463 = vpop.permute.xlu0 %462
    %466 = vset.pattern.permute.xlu0 0
    %467 = vperm.xlu0 %466, %v423
    %v468 = vpop.permute.xlu0 %467
    %471 = vset.pattern.permute.xlu0 0
    %472 = vperm.xlu0 %471, %v424
    %v473 = vpop.permute.xlu0 %472
    %476 = vset.pattern.permute.xlu0 0
    %477 = vperm.xlu0 %476, %v425
    %v478 = vpop.permute.xlu0 %477
    %481 = vset.pattern.permute.xlu0 0
    %482 = vperm.xlu0 %481, %v426
    %v483 = vpop.permute.xlu0 %482
    %486 = vset.pattern.permute.xlu0 0
    %487 = vperm.xlu0 %486, %v427
    %v488 = vpop.permute.xlu0 %487
    %491 = vset.pattern.permute.xlu0 0
    %492 = vperm.xlu0 %491, %v428
    %v493 = vpop.permute.xlu0 %492
    %496 = vset.pattern.permute.xlu0 0
    %497 = vperm.xlu0 %496, %v429
    %v498 = vpop.permute.xlu0 %497
    %501 = vset.pattern.permute.xlu0 0
    %502 = vperm.xlu0 %501, %v430
    %v503 = vpop.permute.xlu0 %502
    %506 = vset.pattern.permute.xlu0 0
    %507 = vperm.xlu0 %506, %v431
    %v508 = vpop.permute.xlu0 %507
    %511 = vset.pattern.permute.xlu0 0
    %512 = vperm.xlu0 %511, %v432
    %v513 = vpop.permute.xlu0 %512
    %516 = vset.pattern.permute.xlu0 0
    %517 = vperm.xlu0 %516, %v433
    %v518 = vpop.permute.xlu0 %517
    %v521 = vperm.slane %v434, 0
    %v523 = vmul.f32 %v438, %v521
    %v524 = vmul.f32 %v443, %v521
    %v525 = vmul.f32 %v448, %v521
    %v526 = vmul.f32 %v453, %v521
    %v527 = vmul.f32 %v458, %v521
    %v528 = vmul.f32 %v463, %v521
    %v529 = vmul.f32 %v468, %v521
    %v530 = vmul.f32 %v473, %v521
    %v531 = vmul.f32 %v478, %v521
    %v532 = vmul.f32 %v483, %v521
    %v533 = vmul.f32 %v488, %v521
    %v534 = vmul.f32 %v493, %v521
    %v535 = vmul.f32 %v498, %v521
    %v536 = vmul.f32 %v503, %v521
    %v537 = vmul.f32 %v508, %v521
    %v538 = vmul.f32 %v513, %v521
    %v539 = vmul.f32 %v518, %v521
    %v540 = vld [vmem:[#allocation2 + $0x1] sm:$0xff]
    %v541 = vld [vmem:[#allocation2 + $0x9] sm:$0xff]
    %v542 = vld [vmem:[#allocation2 + $0x11] sm:$0xff]
    %v543 = vld [vmem:[#allocation2 + $0x19] sm:$0xff]
    %v544 = vld [vmem:[#allocation2 + $0x21] sm:$0xff]
    %v545 = vld [vmem:[#allocation2 + $0x29] sm:$0xff]
    %v546 = vld [vmem:[#allocation2 + $0x31] sm:$0xff]
    %v547 = vld [vmem:[#allocation2 + $0x39] sm:$0xff]
    %v548 = vld [vmem:[#allocation2 + $0x41] sm:$0xff]
    %v549 = vld [vmem:[#allocation2 + $0x49] sm:$0xff]
    %v550 = vld [vmem:[#allocation2 + $0x51] sm:$0xff]
    %v551 = vld [vmem:[#allocation2 + $0x59] sm:$0xff]
    %v552 = vld [vmem:[#allocation2 + $0x61] sm:$0xff]
    %v553 = vld [vmem:[#allocation2 + $0x69] sm:$0xff]
    %v554 = vld [vmem:[#allocation2 + $0x71] sm:$0xff]
    %v555 = vld [vmem:[#allocation2 + $0x79] sm:$0xff]
    %v556 = vld [vmem:[#allocation2 + $0x81] sm:$0x7]
    %s557 = scalar_lea.vmem [#allocation11], 1
    %v558 = vld [vmem:[%s557] sm:$0x1]
    %560 = vset.pattern.permute.xlu0 0
    %561 = vperm.xlu0 %560, %v540
    %v562 = vpop.permute.xlu0 %561
    %565 = vset.pattern.permute.xlu0 0
    %566 = vperm.xlu0 %565, %v541
    %v567 = vpop.permute.xlu0 %566
    %570 = vset.pattern.permute.xlu0 0
    %571 = vperm.xlu0 %570, %v542
    %v572 = vpop.permute.xlu0 %571
    %575 = vset.pattern.permute.xlu0 0
    %576 = vperm.xlu0 %575, %v543
    %v577 = vpop.permute.xlu0 %576
    %580 = vset.pattern.permute.xlu0 0
    %581 = vperm.xlu0 %580, %v544
    %v582 = vpop.permute.xlu0 %581
    %585 = vset.pattern.permute.xlu0 0
    %586 = vperm.xlu0 %585, %v545
    %v587 = vpop.permute.xlu0 %586
    %590 = vset.pattern.permute.xlu0 0
    %591 = vperm.xlu0 %590, %v546
    %v592 = vpop.permute.xlu0 %591
    %595 = vset.pattern.permute.xlu0 0
    %596 = vperm.xlu0 %595, %v547
    %v597 = vpop.permute.xlu0 %596
    %600 = vset.pattern.permute.xlu0 0
    %601 = vperm.xlu0 %600, %v548
    %v602 = vpop.permute.xlu0 %601
    %605 = vset.pattern.permute.xlu0 0
    %606 = vperm.xlu0 %605, %v549
    %v607 = vpop.permute.xlu0 %606
    %610 = vset.pattern.permute.xlu0 0
    %611 = vperm.xlu0 %610, %v550
    %v612 = vpop.permute.xlu0 %611
    %615 = vset.pattern.permute.xlu0 0
    %616 = vperm.xlu0 %615, %v551
    %v617 = vpop.permute.xlu0 %616
    %620 = vset.pattern.permute.xlu0 0
    %621 = vperm.xlu0 %620, %v552
    %v622 = vpop.permute.xlu0 %621
    %625 = vset.pattern.permute.xlu0 0
    %626 = vperm.xlu0 %625, %v553
    %v627 = vpop.permute.xlu0 %626
    %630 = vset.pattern.permute.xlu0 0
    %631 = vperm.xlu0 %630, %v554
    %v632 = vpop.permute.xlu0 %631
    %635 = vset.pattern.permute.xlu0 0
    %636 = vperm.xlu0 %635, %v555
    %v637 = vpop.permute.xlu0 %636
    %640 = vset.pattern.permute.xlu0 0
    %641 = vperm.xlu0 %640, %v556
    %v642 = vpop.permute.xlu0 %641
    %v645 = vperm.slane %v558, 0
    %v647 = vmul.f32 %v562, %v645
    %v648 = vmul.f32 %v567, %v645
    %v649 = vmul.f32 %v572, %v645
    %v650 = vmul.f32 %v577, %v645
    %v651 = vmul.f32 %v582, %v645
    %v652 = vmul.f32 %v587, %v645
    %v653 = vmul.f32 %v592, %v645
    %v654 = vmul.f32 %v597, %v645
    %v655 = vmul.f32 %v602, %v645
    %v656 = vmul.f32 %v607, %v645
    %v657 = vmul.f32 %v612, %v645
    %v658 = vmul.f32 %v617, %v645
    %v659 = vmul.f32 %v622, %v645
    %v660 = vmul.f32 %v627, %v645
    %v661 = vmul.f32 %v632, %v645
    %v662 = vmul.f32 %v637, %v645
    %v663 = vmul.f32 %v642, %v645
    %v664 = vadd.f32 %v523, %v647
    %v665 = vadd.f32 %v524, %v648
    %v666 = vadd.f32 %v525, %v649
    %v667 = vadd.f32 %v526, %v650
    %v668 = vadd.f32 %v527, %v651
    %v669 = vadd.f32 %v528, %v652
    %v670 = vadd.f32 %v529, %v653
    %v671 = vadd.f32 %v530, %v654
    %v672 = vadd.f32 %v531, %v655
    %v673 = vadd.f32 %v532, %v656
    %v674 = vadd.f32 %v533, %v657
    %v675 = vadd.f32 %v534, %v658
    %v676 = vadd.f32 %v535, %v659
    %v677 = vadd.f32 %v536, %v660
    %v678 = vadd.f32 %v537, %v661
    %v679 = vadd.f32 %v538, %v662
    %v680 = vadd.f32 %v539, %v663
    %v681 = vld [vmem:[#allocation2 + $0x2] sm:$0xff]
    %v682 = vld [vmem:[#allocation2 + $0xa] sm:$0xff]
    %v683 = vld [vmem:[#allocation2 + $0x12] sm:$0xff]
    %v684 = vld [vmem:[#allocation2 + $0x1a] sm:$0xff]
    %v685 = vld [vmem:[#allocation2 + $0x22] sm:$0xff]
    %v686 = vld [vmem:[#allocation2 + $0x2a] sm:$0xff]
    %v687 = vld [vmem:[#allocation2 + $0x32] sm:$0xff]
    %v688 = vld [vmem:[#allocation2 + $0x3a] sm:$0xff]
    %v689 = vld [vmem:[#allocation2 + $0x42] sm:$0xff]
    %v690 = vld [vmem:[#allocation2 + $0x4a] sm:$0xff]
    %v691 = vld [vmem:[#allocation2 + $0x52] sm:$0xff]
    %v692 = vld [vmem:[#allocation2 + $0x5a] sm:$0xff]
    %v693 = vld [vmem:[#allocation2 + $0x62] sm:$0xff]
    %v694 = vld [vmem:[#allocation2 + $0x6a] sm:$0xff]
    %v695 = vld [vmem:[#allocation2 + $0x72] sm:$0xff]
    %v696 = vld [vmem:[#allocation2 + $0x7a] sm:$0xff]
    %v697 = vld [vmem:[#allocation2 + $0x82] sm:$0x7]
    %s698 = scalar_lea.vmem [#allocation11], 2
    %v699 = vld [vmem:[%s698] sm:$0x1]
    %701 = vset.pattern.permute.xlu0 0
    %702 = vperm.xlu0 %701, %v681
    %v703 = vpop.permute.xlu0 %702
    %706 = vset.pattern.permute.xlu0 0
    %707 = vperm.xlu0 %706, %v682
    %v708 = vpop.permute.xlu0 %707
    %711 = vset.pattern.permute.xlu0 0
    %712 = vperm.xlu0 %711, %v683
    %v713 = vpop.permute.xlu0 %712
    %716 = vset.pattern.permute.xlu0 0
    %717 = vperm.xlu0 %716, %v684
    %v718 = vpop.permute.xlu0 %717
    %721 = vset.pattern.permute.xlu0 0
    %722 = vperm.xlu0 %721, %v685
    %v723 = vpop.permute.xlu0 %722
    %726 = vset.pattern.permute.xlu0 0
    %727 = vperm.xlu0 %726, %v686
    %v728 = vpop.permute.xlu0 %727
    %731 = vset.pattern.permute.xlu0 0
    %732 = vperm.xlu0 %731, %v687
    %v733 = vpop.permute.xlu0 %732
    %736 = vset.pattern.permute.xlu0 0
    %737 = vperm.xlu0 %736, %v688
    %v738 = vpop.permute.xlu0 %737
    %741 = vset.pattern.permute.xlu0 0
    %742 = vperm.xlu0 %741, %v689
    %v743 = vpop.permute.xlu0 %742
    %746 = vset.pattern.permute.xlu0 0
    %747 = vperm.xlu0 %746, %v690
    %v748 = vpop.permute.xlu0 %747
    %751 = vset.pattern.permute.xlu0 0
    %752 = vperm.xlu0 %751, %v691
    %v753 = vpop.permute.xlu0 %752
    %756 = vset.pattern.permute.xlu0 0
    %757 = vperm.xlu0 %756, %v692
    %v758 = vpop.permute.xlu0 %757
    %761 = vset.pattern.permute.xlu0 0
    %762 = vperm.xlu0 %761, %v693
    %v763 = vpop.permute.xlu0 %762
    %766 = vset.pattern.permute.xlu0 0
    %767 = vperm.xlu0 %766, %v694
    %v768 = vpop.permute.xlu0 %767
    %771 = vset.pattern.permute.xlu0 0
    %772 = vperm.xlu0 %771, %v695
    %v773 = vpop.permute.xlu0 %772
    %776 = vset.pattern.permute.xlu0 0
    %777 = vperm.xlu0 %776, %v696
    %v778 = vpop.permute.xlu0 %777
    %781 = vset.pattern.permute.xlu0 0
    %782 = vperm.xlu0 %781, %v697
    %v783 = vpop.permute.xlu0 %782
    %v786 = vperm.slane %v699, 0
    %v788 = vmul.f32 %v703, %v786
    %v789 = vmul.f32 %v708, %v786
    %v790 = vmul.f32 %v713, %v786
    %v791 = vmul.f32 %v718, %v786
    %v792 = vmul.f32 %v723, %v786
    %v793 = vmul.f32 %v728, %v786
    %v794 = vmul.f32 %v733, %v786
    %v795 = vmul.f32 %v738, %v786
    %v796 = vmul.f32 %v743, %v786
    %v797 = vmul.f32 %v748, %v786
    %v798 = vmul.f32 %v753, %v786
    %v799 = vmul.f32 %v758, %v786
    %v800 = vmul.f32 %v763, %v786
    %v801 = vmul.f32 %v768, %v786
    %v802 = vmul.f32 %v773, %v786
    %v803 = vmul.f32 %v778, %v786
    %v804 = vmul.f32 %v783, %v786
    %v805 = vadd.f32 %v664, %v788
    %v806 = vadd.f32 %v665, %v789
    %v807 = vadd.f32 %v666, %v790
    %v808 = vadd.f32 %v667, %v791
    %v809 = vadd.f32 %v668, %v792
    %v810 = vadd.f32 %v669, %v793
    %v811 = vadd.f32 %v670, %v794
    %v812 = vadd.f32 %v671, %v795
    %v813 = vadd.f32 %v672, %v796
    %v814 = vadd.f32 %v673, %v797
    %v815 = vadd.f32 %v674, %v798
    %v816 = vadd.f32 %v675, %v799
    %v817 = vadd.f32 %v676, %v800
    %v818 = vadd.f32 %v677, %v801
    %v819 = vadd.f32 %v678, %v802
    %v820 = vadd.f32 %v679, %v803
    %v821 = vadd.f32 %v680, %v804
    %v822 = vld [vmem:[#allocation2 + $0x3] sm:$0xff]
    %v823 = vld [vmem:[#allocation2 + $0xb] sm:$0xff]
    %v824 = vld [vmem:[#allocation2 + $0x13] sm:$0xff]
    %v825 = vld [vmem:[#allocation2 + $0x1b] sm:$0xff]
    %v826 = vld [vmem:[#allocation2 + $0x23] sm:$0xff]
    %v827 = vld [vmem:[#allocation2 + $0x2b] sm:$0xff]
    %v828 = vld [vmem:[#allocation2 + $0x33] sm:$0xff]
    %v829 = vld [vmem:[#allocation2 + $0x3b] sm:$0xff]
    %v830 = vld [vmem:[#allocation2 + $0x43] sm:$0xff]
    %v831 = vld [vmem:[#allocation2 + $0x4b] sm:$0xff]
    %v832 = vld [vmem:[#allocation2 + $0x53] sm:$0xff]
    %v833 = vld [vmem:[#allocation2 + $0x5b] sm:$0xff]
    %v834 = vld [vmem:[#allocation2 + $0x63] sm:$0xff]
    %v835 = vld [vmem:[#allocation2 + $0x6b] sm:$0xff]
    %v836 = vld [vmem:[#allocation2 + $0x73] sm:$0xff]
    %v837 = vld [vmem:[#allocation2 + $0x7b] sm:$0xff]
    %v838 = vld [vmem:[#allocation2 + $0x83] sm:$0x7]
    %s839 = scalar_lea.vmem [#allocation11], 3
    %v840 = vld [vmem:[%s839] sm:$0x1]
    %842 = vset.pattern.permute.xlu0 0
    %843 = vperm.xlu0 %842, %v822
    %v844 = vpop.permute.xlu0 %843
    %847 = vset.pattern.permute.xlu0 0
    %848 = vperm.xlu0 %847, %v823
    %v849 = vpop.permute.xlu0 %848
    %852 = vset.pattern.permute.xlu0 0
    %853 = vperm.xlu0 %852, %v824
    %v854 = vpop.permute.xlu0 %853
    %857 = vset.pattern.permute.xlu0 0
    %858 = vperm.xlu0 %857, %v825
    %v859 = vpop.permute.xlu0 %858
    %862 = vset.pattern.permute.xlu0 0
    %863 = vperm.xlu0 %862, %v826
    %v864 = vpop.permute.xlu0 %863
    %867 = vset.pattern.permute.xlu0 0
    %868 = vperm.xlu0 %867, %v827
    %v869 = vpop.permute.xlu0 %868
    %872 = vset.pattern.permute.xlu0 0
    %873 = vperm.xlu0 %872, %v828
    %v874 = vpop.permute.xlu0 %873
    %877 = vset.pattern.permute.xlu0 0
    %878 = vperm.xlu0 %877, %v829
    %v879 = vpop.permute.xlu0 %878
    %882 = vset.pattern.permute.xlu0 0
    %883 = vperm.xlu0 %882, %v830
    %v884 = vpop.permute.xlu0 %883
    %887 = vset.pattern.permute.xlu0 0
    %888 = vperm.xlu0 %887, %v831
    %v889 = vpop.permute.xlu0 %888
    %892 = vset.pattern.permute.xlu0 0
    %893 = vperm.xlu0 %892, %v832
    %v894 = vpop.permute.xlu0 %893
    %897 = vset.pattern.permute.xlu0 0
    %898 = vperm.xlu0 %897, %v833
    %v899 = vpop.permute.xlu0 %898
    %902 = vset.pattern.permute.xlu0 0
    %903 = vperm.xlu0 %902, %v834
    %v904 = vpop.permute.xlu0 %903
    %907 = vset.pattern.permute.xlu0 0
    %908 = vperm.xlu0 %907, %v835
    %v909 = vpop.permute.xlu0 %908
    %912 = vset.pattern.permute.xlu0 0
    %913 = vperm.xlu0 %912, %v836
    %v914 = vpop.permute.xlu0 %913
    %917 = vset.pattern.permute.xlu0 0
    %918 = vperm.xlu0 %917, %v837
    %v919 = vpop.permute.xlu0 %918
    %922 = vset.pattern.permute.xlu0 0
    %923 = vperm.xlu0 %922, %v838
    %v924 = vpop.permute.xlu0 %923
    %v927 = vperm.slane %v840, 0
    %v929 = vmul.f32 %v844, %v927
    %v930 = vmul.f32 %v849, %v927
    %v931 = vmul.f32 %v854, %v927
    %v932 = vmul.f32 %v859, %v927
    %v933 = vmul.f32 %v864, %v927
    %v934 = vmul.f32 %v869, %v927
    %v935 = vmul.f32 %v874, %v927
    %v936 = vmul.f32 %v879, %v927
    %v937 = vmul.f32 %v884, %v927
    %v938 = vmul.f32 %v889, %v927
    %v939 = vmul.f32 %v894, %v927
    %v940 = vmul.f32 %v899, %v927
    %v941 = vmul.f32 %v904, %v927
    %v942 = vmul.f32 %v909, %v927
    %v943 = vmul.f32 %v914, %v927
    %v944 = vmul.f32 %v919, %v927
    %v945 = vmul.f32 %v924, %v927
    %v946 = vadd.f32 %v805, %v929
    %v947 = vadd.f32 %v806, %v930
    %v948 = vadd.f32 %v807, %v931
    %v949 = vadd.f32 %v808, %v932
    %v950 = vadd.f32 %v809, %v933
    %v951 = vadd.f32 %v810, %v934
    %v952 = vadd.f32 %v811, %v935
    %v953 = vadd.f32 %v812, %v936
    %v954 = vadd.f32 %v813, %v937
    %v955 = vadd.f32 %v814, %v938
    %v956 = vadd.f32 %v815, %v939
    %v957 = vadd.f32 %v816, %v940
    %v958 = vadd.f32 %v817, %v941
    %v959 = vadd.f32 %v818, %v942
    %v960 = vadd.f32 %v819, %v943
    %v961 = vadd.f32 %v820, %v944
    %v962 = vadd.f32 %v821, %v945
    %v963 = vld [vmem:[#allocation2 + $0x4] sm:$0xff]
    %v964 = vld [vmem:[#allocation2 + $0xc] sm:$0xff]
    %v965 = vld [vmem:[#allocation2 + $0x14] sm:$0xff]
    %v966 = vld [vmem:[#allocation2 + $0x1c] sm:$0xff]
    %v967 = vld [vmem:[#allocation2 + $0x24] sm:$0xff]
    %v968 = vld [vmem:[#allocation2 + $0x2c] sm:$0xff]
    %v969 = vld [vmem:[#allocation2 + $0x34] sm:$0xff]
    %v970 = vld [vmem:[#allocation2 + $0x3c] sm:$0xff]
    %v971 = vld [vmem:[#allocation2 + $0x44] sm:$0xff]
    %v972 = vld [vmem:[#allocation2 + $0x4c] sm:$0xff]
    %v973 = vld [vmem:[#allocation2 + $0x54] sm:$0xff]
    %v974 = vld [vmem:[#allocation2 + $0x5c] sm:$0xff]
    %v975 = vld [vmem:[#allocation2 + $0x64] sm:$0xff]
    %v976 = vld [vmem:[#allocation2 + $0x6c] sm:$0xff]
    %v977 = vld [vmem:[#allocation2 + $0x74] sm:$0xff]
    %v978 = vld [vmem:[#allocation2 + $0x7c] sm:$0xff]
    %v979 = vld [vmem:[#allocation2 + $0x84] sm:$0x7]
    %s980 = scalar_lea.vmem [#allocation11], 4
    %v981 = vld [vmem:[%s980] sm:$0x1]
    %983 = vset.pattern.permute.xlu0 0
    %984 = vperm.xlu0 %983, %v963
    %v985 = vpop.permute.xlu0 %984
    %988 = vset.pattern.permute.xlu0 0
    %989 = vperm.xlu0 %988, %v964
    %v990 = vpop.permute.xlu0 %989
    %993 = vset.pattern.permute.xlu0 0
    %994 = vperm.xlu0 %993, %v965
    %v995 = vpop.permute.xlu0 %994
    %998 = vset.pattern.permute.xlu0 0
    %999 = vperm.xlu0 %998, %v966
    %v1000 = vpop.permute.xlu0 %999
    %1003 = vset.pattern.permute.xlu0 0
    %1004 = vperm.xlu0 %1003, %v967
    %v1005 = vpop.permute.xlu0 %1004
    %1008 = vset.pattern.permute.xlu0 0
    %1009 = vperm.xlu0 %1008, %v968
    %v1010 = vpop.permute.xlu0 %1009
    %1013 = vset.pattern.permute.xlu0 0
    %1014 = vperm.xlu0 %1013, %v969
    %v1015 = vpop.permute.xlu0 %1014
    %1018 = vset.pattern.permute.xlu0 0
    %1019 = vperm.xlu0 %1018, %v970
    %v1020 = vpop.permute.xlu0 %1019
    %1023 = vset.pattern.permute.xlu0 0
    %1024 = vperm.xlu0 %1023, %v971
    %v1025 = vpop.permute.xlu0 %1024
    %1028 = vset.pattern.permute.xlu0 0
    %1029 = vperm.xlu0 %1028, %v972
    %v1030 = vpop.permute.xlu0 %1029
    %1033 = vset.pattern.permute.xlu0 0
    %1034 = vperm.xlu0 %1033, %v973
    %v1035 = vpop.permute.xlu0 %1034
    %1038 = vset.pattern.permute.xlu0 0
    %1039 = vperm.xlu0 %1038, %v974
    %v1040 = vpop.permute.xlu0 %1039
    %1043 = vset.pattern.permute.xlu0 0
    %1044 = vperm.xlu0 %1043, %v975
    %v1045 = vpop.permute.xlu0 %1044
    %1048 = vset.pattern.permute.xlu0 0
    %1049 = vperm.xlu0 %1048, %v976
    %v1050 = vpop.permute.xlu0 %1049
    %1053 = vset.pattern.permute.xlu0 0
    %1054 = vperm.xlu0 %1053, %v977
    %v1055 = vpop.permute.xlu0 %1054
    %1058 = vset.pattern.permute.xlu0 0
    %1059 = vperm.xlu0 %1058, %v978
    %v1060 = vpop.permute.xlu0 %1059
    %1063 = vset.pattern.permute.xlu0 0
    %1064 = vperm.xlu0 %1063, %v979
    %v1065 = vpop.permute.xlu0 %1064
    %v1068 = vperm.slane %v981, 0
    %v1070 = vmul.f32 %v985, %v1068
    %v1071 = vmul.f32 %v990, %v1068
    %v1072 = vmul.f32 %v995, %v1068
    %v1073 = vmul.f32 %v1000, %v1068
    %v1074 = vmul.f32 %v1005, %v1068
    %v1075 = vmul.f32 %v1010, %v1068
    %v1076 = vmul.f32 %v1015, %v1068
    %v1077 = vmul.f32 %v1020, %v1068
    %v1078 = vmul.f32 %v1025, %v1068
    %v1079 = vmul.f32 %v1030, %v1068
    %v1080 = vmul.f32 %v1035, %v1068
    %v1081 = vmul.f32 %v1040, %v1068
    %v1082 = vmul.f32 %v1045, %v1068
    %v1083 = vmul.f32 %v1050, %v1068
    %v1084 = vmul.f32 %v1055, %v1068
    %v1085 = vmul.f32 %v1060, %v1068
    %v1086 = vmul.f32 %v1065, %v1068
    %v1087 = vadd.f32 %v946, %v1070
    %v1088 = vadd.f32 %v947, %v1071
    %v1089 = vadd.f32 %v948, %v1072
    %v1090 = vadd.f32 %v949, %v1073
    %v1091 = vadd.f32 %v950, %v1074
    %v1092 = vadd.f32 %v951, %v1075
    %v1093 = vadd.f32 %v952, %v1076
    %v1094 = vadd.f32 %v953, %v1077
    %v1095 = vadd.f32 %v954, %v1078
    %v1096 = vadd.f32 %v955, %v1079
    %v1097 = vadd.f32 %v956, %v1080
    %v1098 = vadd.f32 %v957, %v1081
    %v1099 = vadd.f32 %v958, %v1082
    %v1100 = vadd.f32 %v959, %v1083
    %v1101 = vadd.f32 %v960, %v1084
    %v1102 = vadd.f32 %v961, %v1085
    %v1103 = vadd.f32 %v962, %v1086
    %v1104 = vld [vmem:[#allocation3] sm:$0xff]
    %v1105 = vld [vmem:[#allocation3 + $0x8] sm:$0xff]
    %v1106 = vld [vmem:[#allocation3 + $0x10] sm:$0xff]
    %v1107 = vld [vmem:[#allocation3 + $0x18] sm:$0xff]
    %v1108 = vld [vmem:[#allocation3 + $0x20] sm:$0xff]
    %v1109 = vld [vmem:[#allocation3 + $0x28] sm:$0xff]
    %v1110 = vld [vmem:[#allocation3 + $0x30] sm:$0xff]
    %v1111 = vld [vmem:[#allocation3 + $0x38] sm:$0xff]
    %v1112 = vld [vmem:[#allocation3 + $0x40] sm:$0xff]
    %v1113 = vld [vmem:[#allocation3 + $0x48] sm:$0xff]
    %v1114 = vld [vmem:[#allocation3 + $0x50] sm:$0xff]
    %v1115 = vld [vmem:[#allocation3 + $0x58] sm:$0xff]
    %v1116 = vld [vmem:[#allocation3 + $0x60] sm:$0xff]
    %v1117 = vld [vmem:[#allocation3 + $0x68] sm:$0xff]
    %v1118 = vld [vmem:[#allocation3 + $0x70] sm:$0xff]
    %v1119 = vld [vmem:[#allocation3 + $0x78] sm:$0xff]
    %v1120 = vld [vmem:[#allocation12] sm:$0x1]
    %v1122 = vperm.slane %v1120, 0
    %vm1124 = vcmask 23552
    %v1126 = vsel %vm1124, %v1105, 0
    %v1129 = vsel %vm1124, %v1107, 0
    %v1132 = vsel %vm1124, %v1109, 0
    %v1135 = vsel %vm1124, %v1111, 0
    %v1138 = vsel %vm1124, %v1113, 0
    %v1141 = vsel %vm1124, %v1115, 0
    %v1144 = vsel %vm1124, %v1117, 0
    %v1147 = vsel %vm1124, %v1119, 0
    %vm1149 = vcmask 1042432
    %v1151 = vsel %vm1149, %v1103, 0
    %1153 = vmatpush.msra.mxu0 %v1102
    %1154 = vmatpush.msra.mxu0 %v1101
    %1155 = vmatpush.msra.mxu0 %v1100
    %1156 = vmatpush.msra.mxu0 %v1099
    %1157 = vmatpush.msra.mxu0 %v1098
    %1158 = vmatpush.msra.mxu0 %v1097
    %1159 = vmatpush.msra.mxu0 %v1096
    %1160 = vmatpush.msra.mxu0 %v1095
    %1161 = vmatpush.msra.mxu0 %v1094
    %1162 = vmatpush.msra.mxu0 %v1093
    %1163 = vmatpush.msra.mxu0 %v1092
    %1164 = vmatpush.msra.mxu0 %v1091
    %1165 = vmatpush.msra.mxu0 %v1090
    %1166 = vmatpush.msra.mxu0 %v1089
    %1167 = vmatpush.msra.mxu0 %v1088
    %1168 = vmatpush.msra.mxu0 %v1087
    %1169 = vmatmul.f32.gmra.mxu0 %v1104
    %v1170 = vpop.f32.mrf.mxu0
    %v1171 = vadd.f32 %v1122, %v1170
    %1172 = vmatmul.f32.gmra.mxu0 %v1106
    %v1173 = vpop.f32.mrf.mxu0
    %v1174 = vadd.f32 %v1122, %v1173
    %1175 = vmatmul.f32.gmra.mxu0 %v1108
    %v1176 = vpop.f32.mrf.mxu0
    %v1177 = vadd.f32 %v1122, %v1176
    %1178 = vmatmul.f32.gmra.mxu0 %v1110
    %v1179 = vpop.f32.mrf.mxu0
    %v1180 = vadd.f32 %v1122, %v1179
    %1181 = vmatmul.f32.gmra.mxu0 %v1112
    %v1182 = vpop.f32.mrf.mxu0
    %v1183 = vadd.f32 %v1122, %v1182
    %1184 = vmatmul.f32.gmra.mxu0 %v1114
    %v1185 = vpop.f32.mrf.mxu0
    %v1186 = vadd.f32 %v1122, %v1185
    %1187 = vmatmul.f32.gmra.mxu0 %v1116
    %v1188 = vpop.f32.mrf.mxu0
    %v1189 = vadd.f32 %v1122, %v1188
    %1190 = vmatmul.f32.gmra.mxu0 %v1118
    %v1191 = vpop.f32.mrf.mxu0
    %v1192 = vadd.f32 %v1122, %v1191
    %1193 = vdwg.mxu0
    %1194 = vmatpush.msra.mxu0 0.0
    %1195 = vmatpush.msra.mxu0 0.0
    %1196 = vmatpush.msra.mxu0 0.0
    %1197 = vmatpush.msra.mxu0 0.0
    %1198 = vmatpush.msra.mxu0 0.0
    %1199 = vmatpush.msra.mxu0 0.0
    %1200 = vmatpush.msra.mxu0 0.0
    %1201 = vmatpush.msra.mxu0 0.0
    %1202 = vmatpush.msra.mxu0 0.0
    %1203 = vmatpush.msra.mxu0 0.0
    %1204 = vmatpush.msra.mxu0 0.0
    %1205 = vmatpush.msra.mxu0 0.0
    %1206 = vmatpush.msra.mxu0 0.0
    %1207 = vmatpush.msra.mxu0 0.0
    %1208 = vmatpush.msra.mxu0 0.0
    %1209 = vmatpush.msra.mxu0 %v1151
    %1210 = vmatmul.f32.gmra.mxu0 %v1126
    %v1211 = vpop.f32.mrf.mxu0
    %v1212 = vadd.f32 %v1171, %v1211
    %1213 = vmatmul.f32.gmra.mxu0 %v1129
    %v1214 = vpop.f32.mrf.mxu0
    %v1215 = vadd.f32 %v1174, %v1214
    %1216 = vmatmul.f32.gmra.mxu0 %v1132
    %v1217 = vpop.f32.mrf.mxu0
    %v1218 = vadd.f32 %v1177, %v1217
    %1219 = vmatmul.f32.gmra.mxu0 %v1135
    %v1220 = vpop.f32.mrf.mxu0
    %v1221 = vadd.f32 %v1180, %v1220
    %1222 = vmatmul.f32.gmra.mxu0 %v1138
    %v1223 = vpop.f32.mrf.mxu0
    %v1224 = vadd.f32 %v1183, %v1223
    %1225 = vmatmul.f32.gmra.mxu0 %v1141
    %v1226 = vpop.f32.mrf.mxu0
    %v1227 = vadd.f32 %v1186, %v1226
    %1228 = vmatmul.f32.gmra.mxu0 %v1144
    %v1229 = vpop.f32.mrf.mxu0
    %v1230 = vadd.f32 %v1189, %v1229
    %1231 = vmatmul.f32.gmra.mxu0 %v1147
    %v1232 = vpop.f32.mrf.mxu0
    %v1233 = vadd.f32 %v1192, %v1232
    %1234 = vdwg.mxu0
    %v1235 = vmax.f32 %v1212, 0.0
    %v1236 = vmax.f32 %v1215, 0.0
    %v1237 = vmax.f32 %v1218, 0.0
    %v1238 = vmax.f32 %v1221, 0.0
    %v1239 = vmax.f32 %v1224, 0.0
    %v1240 = vmax.f32 %v1227, 0.0
    %v1241 = vmax.f32 %v1230, 0.0
    %v1242 = vmax.f32 %v1233, 0.0
    %1243 = vst [vmem:[#allocation2] sm:$0x3] 0.0
    %1244 = vst [vmem:[#allocation2 + $0x22] sm:$0x3] 0.0
    %vm1245 = vcmask 261120
    %1246 = vst.msk [vmem:[#allocation2 + $0x2] sm:$0xff] %vm1245, %v1235
    %1247 = vst.msk [vmem:[#allocation2 + $0xa] sm:$0xff] %vm1245, %v1236
    %1248 = vst.msk [vmem:[#allocation2 + $0x12] sm:$0xff] %vm1245, %v1237
    %1249 = vst.msk [vmem:[#allocation2 + $0x1a] sm:$0xff] %vm1245, %v1238
    %1250 = vst [vmem:[#allocation2 + $0x24] sm:$0x3] 0.0
    %1251 = vst [vmem:[#allocation2 + $0x46] sm:$0x3] 0.0
    %1252 = vst.msk [vmem:[#allocation2 + $0x26] sm:$0xff] %vm1245, %v1239
    %1253 = vst.msk [vmem:[#allocation2 + $0x2e] sm:$0xff] %vm1245, %v1240
    %1254 = vst.msk [vmem:[#allocation2 + $0x36] sm:$0xff] %vm1245, %v1241
    %1255 = vst.msk [vmem:[#allocation2 + $0x3e] sm:$0xff] %vm1245, %v1242
    %v1256 = vld [vmem:[#allocation2] sm:$0xff]
    %v1257 = vld [vmem:[#allocation2 + $0x8] sm:$0xff]
    %v1258 = vld [vmem:[#allocation2 + $0x10] sm:$0xff]
    %v1259 = vld [vmem:[#allocation2 + $0x18] sm:$0xff]
    %v1260 = vld [vmem:[#allocation2 + $0x20] sm:$0xff]
    %v1261 = vld [vmem:[#allocation2 + $0x28] sm:$0xff]
    %v1262 = vld [vmem:[#allocation2 + $0x30] sm:$0xff]
    %v1263 = vld [vmem:[#allocation2 + $0x38] sm:$0xff]
    %v1264 = vld [vmem:[#allocation2 + $0x40] sm:$0x7]
    %v1265 = vld [vmem:[#allocation14] sm:$0xff]
    %v1266 = vld [vmem:[#allocation14 + $0x8] sm:$0xff]
    %v1267 = vld [vmem:[#allocation14 + $0x10] sm:$0xff]
    %v1268 = vld [vmem:[#allocation14 + $0x18] sm:$0xff]
    %v1269 = vld [vmem:[#allocation2 + $0x1] sm:$0xff]
    %v1270 = vld [vmem:[#allocation2 + $0x9] sm:$0xff]
    %v1271 = vld [vmem:[#allocation2 + $0x11] sm:$0xff]
    %v1272 = vld [vmem:[#allocation2 + $0x19] sm:$0xff]
    %v1273 = vld [vmem:[#allocation2 + $0x21] sm:$0xff]
    %v1274 = vld [vmem:[#allocation2 + $0x29] sm:$0xff]
    %v1275 = vld [vmem:[#allocation2 + $0x31] sm:$0xff]
    %v1276 = vld [vmem:[#allocation2 + $0x39] sm:$0xff]
    %v1277 = vld [vmem:[#allocation2 + $0x41] sm:$0x7]
    %s1278 = scalar_lea.vmem [#allocation14], 32
    %v1279 = vld [vmem:[%s1278] sm:$0xff]
    %v1280 = vld [vmem:[%s1278 + $0x8] sm:$0xff]
    %v1281 = vld [vmem:[%s1278 + $0x10] sm:$0xff]
    %v1282 = vld [vmem:[%s1278 + $0x18] sm:$0xff]
    %v1284 = vsel %vm1245, %v1269, 0
    %v1287 = vsel %vm1245, %v1270, 0
    %v1290 = vsel %vm1245, %v1271, 0
    %v1293 = vsel %vm1245, %v1272, 0
    %v1296 = vsel %vm1245, %v1273, 0
    %v1299 = vsel %vm1245, %v1274, 0
    %v1302 = vsel %vm1245, %v1275, 0
    %v1305 = vsel %vm1245, %v1276, 0
    %v1308 = vsel %vm1245, %v1277, 0
    %1310 = vmatpush.msra.mxu0 0.0
    %1311 = vmatpush.msra.mxu0 0.0
    %1312 = vmatpush.msra.mxu0 0.0
    %1313 = vmatpush.msra.mxu0 0.0
    %1314 = vmatpush.msra.mxu0 0.0
    %1315 = vmatpush.msra.mxu0 0.0
    %1316 = vmatpush.msra.mxu0 0.0
    %1317 = vmatpush.msra.mxu0 0.0
    %1318 = vmatpush.msra.mxu0 0.0
    %1319 = vmatpush.msra.mxu0 0.0
    %1320 = vmatpush.msra.mxu0 0.0
    %1321 = vmatpush.msra.mxu0 0.0
    %1322 = vmatpush.msra.mxu0 %v1282
    %1323 = vmatpush.msra.mxu0 %v1281
    %1324 = vmatpush.msra.mxu0 %v1280
    %1325 = vmatpush.msra.mxu0 %v1279
    %1326 = vmatmul.f32.gmra.mxu0 %v1284
    %v1327 = vpop.f32.mrf.mxu0
    %v1328 = vadd.f32 0.0, %v1327
    %1329 = vmatmul.f32.gmra.mxu0 %v1287
    %v1330 = vpop.f32.mrf.mxu0
    %v1331 = vadd.f32 0.0, %v1330
    %1332 = vmatmul.f32.gmra.mxu0 %v1290
    %v1333 = vpop.f32.mrf.mxu0
    %v1334 = vadd.f32 0.0, %v1333
    %1335 = vmatmul.f32.gmra.mxu0 %v1293
    %v1336 = vpop.f32.mrf.mxu0
    %v1337 = vadd.f32 0.0, %v1336
    %1338 = vmatmul.f32.gmra.mxu0 %v1296
    %v1339 = vpop.f32.mrf.mxu0
    %v1340 = vadd.f32 0.0, %v1339
    %1341 = vmatmul.f32.gmra.mxu0 %v1299
    %v1342 = vpop.f32.mrf.mxu0
    %v1343 = vadd.f32 0.0, %v1342
    %1344 = vmatmul.f32.gmra.mxu0 %v1302
    %v1345 = vpop.f32.mrf.mxu0
    %v1346 = vadd.f32 0.0, %v1345
    %1347 = vmatmul.f32.gmra.mxu0 %v1305
    %v1348 = vpop.f32.mrf.mxu0
    %v1349 = vadd.f32 0.0, %v1348
    %1350 = vmatmul.f32.gmra.mxu0 %v1308
    %v1351 = vpop.f32.mrf.mxu0
    %v1352 = vadd.f32 0.0, %v1351
    %1353 = vdwg.mxu0
    %v1355 = vsel %vm1245, %v1256, 0
    %v1358 = vsel %vm1245, %v1257, 0
    %v1361 = vsel %vm1245, %v1258, 0
    %v1364 = vsel %vm1245, %v1259, 0
    %v1367 = vsel %vm1245, %v1260, 0
    %v1370 = vsel %vm1245, %v1261, 0
    %v1373 = vsel %vm1245, %v1262, 0
    %v1376 = vsel %vm1245, %v1263, 0
    %v1379 = vsel %vm1245, %v1264, 0
    %1381 = vmatpush.msra.mxu0 0.0
    %1382 = vmatpush.msra.mxu0 0.0
    %1383 = vmatpush.msra.mxu0 0.0
    %1384 = vmatpush.msra.mxu0 0.0
    %1385 = vmatpush.msra.mxu0 0.0
    %1386 = vmatpush.msra.mxu0 0.0
    %1387 = vmatpush.msra.mxu0 0.0
    %1388 = vmatpush.msra.mxu0 0.0
    %1389 = vmatpush.msra.mxu0 0.0
    %1390 = vmatpush.msra.mxu0 0.0
    %1391 = vmatpush.msra.mxu0 0.0
    %1392 = vmatpush.msra.mxu0 0.0
    %1393 = vmatpush.msra.mxu0 %v1268
    %1394 = vmatpush.msra.mxu0 %v1267
    %1395 = vmatpush.msra.mxu0 %v1266
    %1396 = vmatpush.msra.mxu0 %v1265
    %1397 = vmatmul.f32.gmra.mxu0 %v1355
    %v1398 = vpop.f32.mrf.mxu0
    %v1399 = vadd.f32 %v1328, %v1398
    %1400 = vmatmul.f32.gmra.mxu0 %v1358
    %v1401 = vpop.f32.mrf.mxu0
    %v1402 = vadd.f32 %v1331, %v1401
    %1403 = vmatmul.f32.gmra.mxu0 %v1361
    %v1404 = vpop.f32.mrf.mxu0
    %v1405 = vadd.f32 %v1334, %v1404
    %1406 = vmatmul.f32.gmra.mxu0 %v1364
    %v1407 = vpop.f32.mrf.mxu0
    %v1408 = vadd.f32 %v1337, %v1407
    %1409 = vmatmul.f32.gmra.mxu0 %v1367
    %v1410 = vpop.f32.mrf.mxu0
    %v1411 = vadd.f32 %v1340, %v1410
    %1412 = vmatmul.f32.gmra.mxu0 %v1370
    %v1413 = vpop.f32.mrf.mxu0
    %v1414 = vadd.f32 %v1343, %v1413
    %1415 = vmatmul.f32.gmra.mxu0 %v1373
    %v1416 = vpop.f32.mrf.mxu0
    %v1417 = vadd.f32 %v1346, %v1416
    %1418 = vmatmul.f32.gmra.mxu0 %v1376
    %v1419 = vpop.f32.mrf.mxu0
    %v1420 = vadd.f32 %v1349, %v1419
    %1421 = vmatmul.f32.gmra.mxu0 %v1379
    %v1422 = vpop.f32.mrf.mxu0
    %v1423 = vadd.f32 %v1352, %v1422
    %1424 = vdwg.mxu0
    %v1425 = vld [vmem:[#allocation2 + $0x2] sm:$0xff]
    %v1426 = vld [vmem:[#allocation2 + $0xa] sm:$0xff]
    %v1427 = vld [vmem:[#allocation2 + $0x12] sm:$0xff]
    %v1428 = vld [vmem:[#allocation2 + $0x1a] sm:$0xff]
    %v1429 = vld [vmem:[#allocation2 + $0x22] sm:$0xff]
    %v1430 = vld [vmem:[#allocation2 + $0x2a] sm:$0xff]
    %v1431 = vld [vmem:[#allocation2 + $0x32] sm:$0xff]
    %v1432 = vld [vmem:[#allocation2 + $0x3a] sm:$0xff]
    %v1433 = vld [vmem:[#allocation2 + $0x42] sm:$0x7]
    %s1434 = scalar_lea.vmem [#allocation14], 64
    %v1435 = vld [vmem:[%s1434] sm:$0xff]
    %v1436 = vld [vmem:[%s1434 + $0x8] sm:$0xff]
    %v1437 = vld [vmem:[%s1434 + $0x10] sm:$0xff]
    %v1438 = vld [vmem:[%s1434 + $0x18] sm:$0xff]
    %v1440 = vsel %vm1245, %v1425, 0
    %v1443 = vsel %vm1245, %v1426, 0
    %v1446 = vsel %vm1245, %v1427, 0
    %v1449 = vsel %vm1245, %v1428, 0
    %v1452 = vsel %vm1245, %v1429, 0
    %v1455 = vsel %vm1245, %v1430, 0
    %v1458 = vsel %vm1245, %v1431, 0
    %v1461 = vsel %vm1245, %v1432, 0
    %v1464 = vsel %vm1245, %v1433, 0
    %1466 = vmatpush.msra.mxu0 0.0
    %1467 = vmatpush.msra.mxu0 0.0
    %1468 = vmatpush.msra.mxu0 0.0
    %1469 = vmatpush.msra.mxu0 0.0
    %1470 = vmatpush.msra.mxu0 0.0
    %1471 = vmatpush.msra.mxu0 0.0
    %1472 = vmatpush.msra.mxu0 0.0
    %1473 = vmatpush.msra.mxu0 0.0
    %1474 = vmatpush.msra.mxu0 0.0
    %1475 = vmatpush.msra.mxu0 0.0
    %1476 = vmatpush.msra.mxu0 0.0
    %1477 = vmatpush.msra.mxu0 0.0
    %1478 = vmatpush.msra.mxu0 %v1438
    %1479 = vmatpush.msra.mxu0 %v1437
    %1480 = vmatpush.msra.mxu0 %v1436
    %1481 = vmatpush.msra.mxu0 %v1435
    %1482 = vmatmul.f32.gmra.mxu0 %v1440
    %v1483 = vpop.f32.mrf.mxu0
    %v1484 = vadd.f32 0.0, %v1483
    %1485 = vmatmul.f32.gmra.mxu0 %v1443
    %v1486 = vpop.f32.mrf.mxu0
    %v1487 = vadd.f32 0.0, %v1486
    %1488 = vmatmul.f32.gmra.mxu0 %v1446
    %v1489 = vpop.f32.mrf.mxu0
    %v1490 = vadd.f32 0.0, %v1489
    %1491 = vmatmul.f32.gmra.mxu0 %v1449
    %v1492 = vpop.f32.mrf.mxu0
    %v1493 = vadd.f32 0.0, %v1492
    %1494 = vmatmul.f32.gmra.mxu0 %v1452
    %v1495 = vpop.f32.mrf.mxu0
    %v1496 = vadd.f32 0.0, %v1495
    %1497 = vmatmul.f32.gmra.mxu0 %v1455
    %v1498 = vpop.f32.mrf.mxu0
    %v1499 = vadd.f32 0.0, %v1498
    %1500 = vmatmul.f32.gmra.mxu0 %v1458
    %v1501 = vpop.f32.mrf.mxu0
    %v1502 = vadd.f32 0.0, %v1501
    %1503 = vmatmul.f32.gmra.mxu0 %v1461
    %v1504 = vpop.f32.mrf.mxu0
    %v1505 = vadd.f32 0.0, %v1504
    %1506 = vmatmul.f32.gmra.mxu0 %v1464
    %v1507 = vpop.f32.mrf.mxu0
    %v1508 = vadd.f32 0.0, %v1507
    %1509 = vdwg.mxu0
    %v1510 = vadd.f32 %v1399, %v1484
    %v1511 = vadd.f32 %v1402, %v1487
    %v1512 = vadd.f32 %v1405, %v1490
    %v1513 = vadd.f32 %v1408, %v1493
    %v1514 = vadd.f32 %v1411, %v1496
    %v1515 = vadd.f32 %v1414, %v1499
    %v1516 = vadd.f32 %v1417, %v1502
    %v1517 = vadd.f32 %v1420, %v1505
    %v1518 = vadd.f32 %v1423, %v1508
    %v1519 = vld [vmem:[#allocation2 + $0x3] sm:$0xff]
    %v1520 = vld [vmem:[#allocation2 + $0xb] sm:$0xff]
    %v1521 = vld [vmem:[#allocation2 + $0x13] sm:$0xff]
    %v1522 = vld [vmem:[#allocation2 + $0x1b] sm:$0xff]
    %v1523 = vld [vmem:[#allocation2 + $0x23] sm:$0xff]
    %v1524 = vld [vmem:[#allocation2 + $0x2b] sm:$0xff]
    %v1525 = vld [vmem:[#allocation2 + $0x33] sm:$0xff]
    %v1526 = vld [vmem:[#allocation2 + $0x3b] sm:$0xff]
    %v1527 = vld [vmem:[#allocation2 + $0x43] sm:$0x7]
    %s1528 = scalar_lea.vmem [#allocation14], 96
    %v1529 = vld [vmem:[%s1528] sm:$0xff]
    %v1530 = vld [vmem:[%s1528 + $0x8] sm:$0xff]
    %v1531 = vld [vmem:[%s1528 + $0x10] sm:$0xff]
    %v1532 = vld [vmem:[%s1528 + $0x18] sm:$0xff]
    %v1534 = vsel %vm1245, %v1519, 0
    %v1537 = vsel %vm1245, %v1520, 0
    %v1540 = vsel %vm1245, %v1521, 0
    %v1543 = vsel %vm1245, %v1522, 0
    %v1546 = vsel %vm1245, %v1523, 0
    %v1549 = vsel %vm1245, %v1524, 0
    %v1552 = vsel %vm1245, %v1525, 0
    %v1555 = vsel %vm1245, %v1526, 0
    %v1558 = vsel %vm1245, %v1527, 0
    %1560 = vmatpush.msra.mxu0 0.0
    %1561 = vmatpush.msra.mxu0 0.0
    %1562 = vmatpush.msra.mxu0 0.0
    %1563 = vmatpush.msra.mxu0 0.0
    %1564 = vmatpush.msra.mxu0 0.0
    %1565 = vmatpush.msra.mxu0 0.0
    %1566 = vmatpush.msra.mxu0 0.0
    %1567 = vmatpush.msra.mxu0 0.0
    %1568 = vmatpush.msra.mxu0 0.0
    %1569 = vmatpush.msra.mxu0 0.0
    %1570 = vmatpush.msra.mxu0 0.0
    %1571 = vmatpush.msra.mxu0 0.0
    %1572 = vmatpush.msra.mxu0 %v1532
    %1573 = vmatpush.msra.mxu0 %v1531
    %1574 = vmatpush.msra.mxu0 %v1530
    %1575 = vmatpush.msra.mxu0 %v1529
    %1576 = vmatmul.f32.gmra.mxu0 %v1534
    %v1577 = vpop.f32.mrf.mxu0
    %v1578 = vadd.f32 0.0, %v1577
    %1579 = vmatmul.f32.gmra.mxu0 %v1537
    %v1580 = vpop.f32.mrf.mxu0
    %v1581 = vadd.f32 0.0, %v1580
    %1582 = vmatmul.f32.gmra.mxu0 %v1540
    %v1583 = vpop.f32.mrf.mxu0
    %v1584 = vadd.f32 0.0, %v1583
    %1585 = vmatmul.f32.gmra.mxu0 %v1543
    %v1586 = vpop.f32.mrf.mxu0
    %v1587 = vadd.f32 0.0, %v1586
    %1588 = vmatmul.f32.gmra.mxu0 %v1546
    %v1589 = vpop.f32.mrf.mxu0
    %v1590 = vadd.f32 0.0, %v1589
    %1591 = vmatmul.f32.gmra.mxu0 %v1549
    %v1592 = vpop.f32.mrf.mxu0
    %v1593 = vadd.f32 0.0, %v1592
    %1594 = vmatmul.f32.gmra.mxu0 %v1552
    %v1595 = vpop.f32.mrf.mxu0
    %v1596 = vadd.f32 0.0, %v1595
    %1597 = vmatmul.f32.gmra.mxu0 %v1555
    %v1598 = vpop.f32.mrf.mxu0
    %v1599 = vadd.f32 0.0, %v1598
    %1600 = vmatmul.f32.gmra.mxu0 %v1558
    %v1601 = vpop.f32.mrf.mxu0
    %v1602 = vadd.f32 0.0, %v1601
    %1603 = vdwg.mxu0
    %v1604 = vadd.f32 %v1510, %v1578
    %v1605 = vadd.f32 %v1511, %v1581
    %v1606 = vadd.f32 %v1512, %v1584
    %v1607 = vadd.f32 %v1513, %v1587
    %v1608 = vadd.f32 %v1514, %v1590
    %v1609 = vadd.f32 %v1515, %v1593
    %v1610 = vadd.f32 %v1516, %v1596
    %v1611 = vadd.f32 %v1517, %v1599
    %v1612 = vadd.f32 %v1518, %v1602
    %v1613 = vld [vmem:[#allocation2 + $0x4] sm:$0xff]
    %v1614 = vld [vmem:[#allocation2 + $0xc] sm:$0xff]
    %v1615 = vld [vmem:[#allocation2 + $0x14] sm:$0xff]
    %v1616 = vld [vmem:[#allocation2 + $0x1c] sm:$0xff]
    %v1617 = vld [vmem:[#allocation2 + $0x24] sm:$0xff]
    %v1618 = vld [vmem:[#allocation2 + $0x2c] sm:$0xff]
    %v1619 = vld [vmem:[#allocation2 + $0x34] sm:$0xff]
    %v1620 = vld [vmem:[#allocation2 + $0x3c] sm:$0xff]
    %v1621 = vld [vmem:[#allocation2 + $0x44] sm:$0x7]
    %s1622 = scalar_lea.vmem [#allocation14], 128
    %v1623 = vld [vmem:[%s1622] sm:$0xff]
    %v1624 = vld [vmem:[%s1622 + $0x8] sm:$0xff]
    %v1625 = vld [vmem:[%s1622 + $0x10] sm:$0xff]
    %v1626 = vld [vmem:[%s1622 + $0x18] sm:$0xff]
    %v1628 = vsel %vm1245, %v1613, 0
    %v1631 = vsel %vm1245, %v1614, 0
    %v1634 = vsel %vm1245, %v1615, 0
    %v1637 = vsel %vm1245, %v1616, 0
    %v1640 = vsel %vm1245, %v1617, 0
    %v1643 = vsel %vm1245, %v1618, 0
    %v1646 = vsel %vm1245, %v1619, 0
    %v1649 = vsel %vm1245, %v1620, 0
    %v1652 = vsel %vm1245, %v1621, 0
    %1654 = vmatpush.msra.mxu0 0.0
    %1655 = vmatpush.msra.mxu0 0.0
    %1656 = vmatpush.msra.mxu0 0.0
    %1657 = vmatpush.msra.mxu0 0.0
    %1658 = vmatpush.msra.mxu0 0.0
    %1659 = vmatpush.msra.mxu0 0.0
    %1660 = vmatpush.msra.mxu0 0.0
    %1661 = vmatpush.msra.mxu0 0.0
    %1662 = vmatpush.msra.mxu0 0.0
    %1663 = vmatpush.msra.mxu0 0.0
    %1664 = vmatpush.msra.mxu0 0.0
    %1665 = vmatpush.msra.mxu0 0.0
    %1666 = vmatpush.msra.mxu0 %v1626
    %1667 = vmatpush.msra.mxu0 %v1625
    %1668 = vmatpush.msra.mxu0 %v1624
    %1669 = vmatpush.msra.mxu0 %v1623
    %1670 = vmatmul.f32.gmra.mxu0 %v1628
    %v1671 = vpop.f32.mrf.mxu0
    %v1672 = vadd.f32 0.0, %v1671
    %1673 = vmatmul.f32.gmra.mxu0 %v1631
    %v1674 = vpop.f32.mrf.mxu0
    %v1675 = vadd.f32 0.0, %v1674
    %1676 = vmatmul.f32.gmra.mxu0 %v1634
    %v1677 = vpop.f32.mrf.mxu0
    %v1678 = vadd.f32 0.0, %v1677
    %1679 = vmatmul.f32.gmra.mxu0 %v1637
    %v1680 = vpop.f32.mrf.mxu0
    %v1681 = vadd.f32 0.0, %v1680
    %1682 = vmatmul.f32.gmra.mxu0 %v1640
    %v1683 = vpop.f32.mrf.mxu0
    %v1684 = vadd.f32 0.0, %v1683
    %1685 = vmatmul.f32.gmra.mxu0 %v1643
    %v1686 = vpop.f32.mrf.mxu0
    %v1687 = vadd.f32 0.0, %v1686
    %1688 = vmatmul.f32.gmra.mxu0 %v1646
    %v1689 = vpop.f32.mrf.mxu0
    %v1690 = vadd.f32 0.0, %v1689
    %1691 = vmatmul.f32.gmra.mxu0 %v1649
    %v1692 = vpop.f32.mrf.mxu0
    %v1693 = vadd.f32 0.0, %v1692
    %1694 = vmatmul.f32.gmra.mxu0 %v1652
    %v1695 = vpop.f32.mrf.mxu0
    %v1696 = vadd.f32 0.0, %v1695
    %1697 = vdwg.mxu0
    %v1698 = vadd.f32 %v1604, %v1672
    %v1699 = vadd.f32 %v1605, %v1675
    %v1700 = vadd.f32 %v1606, %v1678
    %v1701 = vadd.f32 %v1607, %v1681
    %v1702 = vadd.f32 %v1608, %v1684
    %v1703 = vadd.f32 %v1609, %v1687
    %v1704 = vadd.f32 %v1610, %v1690
    %v1705 = vadd.f32 %v1611, %v1693
    %v1706 = vadd.f32 %v1612, %v1696
    %v1707 = vld [vmem:[#allocation6] sm:$0xff]
    %v1708 = vld [vmem:[#allocation6 + $0x8] sm:$0xff]
    %v1709 = vld [vmem:[#allocation6 + $0x10] sm:$0xff]
    %v1710 = vld [vmem:[#allocation6 + $0x18] sm:$0xff]
    %v1711 = vld [vmem:[#allocation15] sm:$0x1]
    %v1713 = vperm.slane %v1711, 0
    %vm1715 = vcmask 547840
    %v1717 = vsel %vm1715, %v1707, 0
    %v1720 = vsel %vm1715, %v1708, 0
    %v1723 = vsel %vm1715, %v1709, 0
    %v1726 = vsel %vm1715, %v1710, 0
    %v1729 = vsel %vm1149, %v1706, 0
    %1731 = vmatpush.msra.mxu0 0.0
    %1732 = vmatpush.msra.mxu0 0.0
    %1733 = vmatpush.msra.mxu0 0.0
    %1734 = vmatpush.msra.mxu0 0.0
    %1735 = vmatpush.msra.mxu0 0.0
    %1736 = vmatpush.msra.mxu0 0.0
    %1737 = vmatpush.msra.mxu0 0.0
    %1738 = vmatpush.msra.mxu0 %v1729
    %1739 = vmatpush.msra.mxu0 %v1705
    %1740 = vmatpush.msra.mxu0 %v1704
    %1741 = vmatpush.msra.mxu0 %v1703
    %1742 = vmatpush.msra.mxu0 %v1702
    %1743 = vmatpush.msra.mxu0 %v1701
    %1744 = vmatpush.msra.mxu0 %v1700
    %1745 = vmatpush.msra.mxu0 %v1699
    %1746 = vmatpush.msra.mxu0 %v1698
    %1747 = vmatmul.f32.gmra.mxu0 %v1717
    %v1748 = vpop.f32.mrf.mxu0
    %v1749 = vadd.f32 %v1713, %v1748
    %1750 = vmatmul.f32.gmra.mxu0 %v1720
    %v1751 = vpop.f32.mrf.mxu0
    %v1752 = vadd.f32 %v1713, %v1751
    %1753 = vmatmul.f32.gmra.mxu0 %v1723
    %v1754 = vpop.f32.mrf.mxu0
    %v1755 = vadd.f32 %v1713, %v1754
    %1756 = vmatmul.f32.gmra.mxu0 %v1726
    %v1757 = vpop.f32.mrf.mxu0
    %v1758 = vadd.f32 %v1713, %v1757
    %1759 = vdwg.mxu0
    %v1760 = vmax.f32 %v1749, 0.0
    %v1761 = vmax.f32 %v1752, 0.0
    %v1762 = vmax.f32 %v1755, 0.0
    %v1763 = vmax.f32 %v1758, 0.0
    %1764 = vst [vmem:[#allocation2] sm:$0x3] 0.0
    %1765 = vst [vmem:[#allocation2 + $0x12] sm:$0x3] 0.0
    %vm1766 = vcmask 523264
    %1767 = vst.msk [vmem:[#allocation2 + $0x2] sm:$0xff] %vm1766, %v1760
    %1768 = vst.msk [vmem:[#allocation2 + $0xa] sm:$0xff] %vm1766, %v1761
    %1769 = vst [vmem:[#allocation2 + $0x14] sm:$0x3] 0.0
    %1770 = vst [vmem:[#allocation2 + $0x26] sm:$0x3] 0.0
    %1771 = vst.msk [vmem:[#allocation2 + $0x16] sm:$0xff] %vm1766, %v1762
    %1772 = vst.msk [vmem:[#allocation2 + $0x1e] sm:$0xff] %vm1766, %v1763
    %v1773 = vld [vmem:[#allocation2] sm:$0xff]
    %v1774 = vld [vmem:[#allocation2 + $0x8] sm:$0xff]
    %v1775 = vld [vmem:[#allocation2 + $0x10] sm:$0xff]
    %v1776 = vld [vmem:[#allocation2 + $0x18] sm:$0xff]
    %v1777 = vld [vmem:[#allocation2 + $0x20] sm:$0x7]
    %v1778 = vld [vmem:[%s12] sm:$0xff]
    %v1779 = vld [vmem:[%s12 + $0x8] sm:$0xff]
    %v1780 = vld [vmem:[%s12 + $0x10] sm:$0xff]
    %v1781 = vld [vmem:[%s12 + $0x18] sm:$0xff]
    %v1782 = vld [vmem:[%s12 + $0x20] sm:$0xff]
    %v1783 = vld [vmem:[%s12 + $0x28] sm:$0xff]
    %v1784 = vld [vmem:[%s12 + $0x30] sm:$0xff]
    %v1785 = vld [vmem:[%s12 + $0x38] sm:$0xff]
    %v1786 = vld [vmem:[#allocation2 + $0x1] sm:$0xff]
    %v1787 = vld [vmem:[#allocation2 + $0x9] sm:$0xff]
    %v1788 = vld [vmem:[#allocation2 + $0x11] sm:$0xff]
    %v1789 = vld [vmem:[#allocation2 + $0x19] sm:$0xff]
    %v1790 = vld [vmem:[#allocation2 + $0x21] sm:$0x7]
    %s1791 = scalar_lea.vmem %s12, 64
    %v1792 = vld [vmem:[%s1791] sm:$0xff]
    %v1793 = vld [vmem:[%s1791 + $0x8] sm:$0xff]
    %v1794 = vld [vmem:[%s1791 + $0x10] sm:$0xff]
    %v1795 = vld [vmem:[%s1791 + $0x18] sm:$0xff]
    %v1796 = vld [vmem:[%s1791 + $0x20] sm:$0xff]
    %v1797 = vld [vmem:[%s1791 + $0x28] sm:$0xff]
    %v1798 = vld [vmem:[%s1791 + $0x30] sm:$0xff]
    %v1799 = vld [vmem:[%s1791 + $0x38] sm:$0xff]
    %v1801 = vsel %vm1766, %v1786, 0
    %v1804 = vsel %vm1766, %v1787, 0
    %v1807 = vsel %vm1766, %v1788, 0
    %v1810 = vsel %vm1766, %v1789, 0
    %v1813 = vsel %vm1766, %v1790, 0
    %1815 = vmatpush.msra.mxu0 0.0
    %1816 = vmatpush.msra.mxu0 0.0
    %1817 = vmatpush.msra.mxu0 0.0
    %1818 = vmatpush.msra.mxu0 0.0
    %1819 = vmatpush.msra.mxu0 0.0
    %1820 = vmatpush.msra.mxu0 0.0
    %1821 = vmatpush.msra.mxu0 0.0
    %1822 = vmatpush.msra.mxu0 0.0
    %1823 = vmatpush.msra.mxu0 %v1799
    %1824 = vmatpush.msra.mxu0 %v1798
    %1825 = vmatpush.msra.mxu0 %v1797
    %1826 = vmatpush.msra.mxu0 %v1796
    %1827 = vmatpush.msra.mxu0 %v1795
    %1828 = vmatpush.msra.mxu0 %v1794
    %1829 = vmatpush.msra.mxu0 %v1793
    %1830 = vmatpush.msra.mxu0 %v1792
    %1831 = vmatmul.f32.gmra.mxu0 %v1801
    %v1832 = vpop.f32.mrf.mxu0
    %v1833 = vadd.f32 0.0, %v1832
    %1834 = vmatmul.f32.gmra.mxu0 %v1804
    %v1835 = vpop.f32.mrf.mxu0
    %v1836 = vadd.f32 0.0, %v1835
    %1837 = vmatmul.f32.gmra.mxu0 %v1807
    %v1838 = vpop.f32.mrf.mxu0
    %v1839 = vadd.f32 0.0, %v1838
    %1840 = vmatmul.f32.gmra.mxu0 %v1810
    %v1841 = vpop.f32.mrf.mxu0
    %v1842 = vadd.f32 0.0, %v1841
    %1843 = vmatmul.f32.gmra.mxu0 %v1813
    %v1844 = vpop.f32.mrf.mxu0
    %v1845 = vadd.f32 0.0, %v1844
    %1846 = vdwg.mxu0
    %v1848 = vsel %vm1766, %v1773, 0
    %v1851 = vsel %vm1766, %v1774, 0
    %v1854 = vsel %vm1766, %v1775, 0
    %v1857 = vsel %vm1766, %v1776, 0
    %v1860 = vsel %vm1766, %v1777, 0
    %1862 = vmatpush.msra.mxu0 0.0
    %1863 = vmatpush.msra.mxu0 0.0
    %1864 = vmatpush.msra.mxu0 0.0
    %1865 = vmatpush.msra.mxu0 0.0
    %1866 = vmatpush.msra.mxu0 0.0
    %1867 = vmatpush.msra.mxu0 0.0
    %1868 = vmatpush.msra.mxu0 0.0
    %1869 = vmatpush.msra.mxu0 0.0
    %1870 = vmatpush.msra.mxu0 %v1785
    %1871 = vmatpush.msra.mxu0 %v1784
    %1872 = vmatpush.msra.mxu0 %v1783
    %1873 = vmatpush.msra.mxu0 %v1782
    %1874 = vmatpush.msra.mxu0 %v1781
    %1875 = vmatpush.msra.mxu0 %v1780
    %1876 = vmatpush.msra.mxu0 %v1779
    %1877 = vmatpush.msra.mxu0 %v1778
    %1878 = vmatmul.f32.gmra.mxu0 %v1848
    %v1879 = vpop.f32.mrf.mxu0
    %v1880 = vadd.f32 %v1833, %v1879
    %1881 = vmatmul.f32.gmra.mxu0 %v1851
    %v1882 = vpop.f32.mrf.mxu0
    %v1883 = vadd.f32 %v1836, %v1882
    %1884 = vmatmul.f32.gmra.mxu0 %v1854
    %v1885 = vpop.f32.mrf.mxu0
    %v1886 = vadd.f32 %v1839, %v1885
    %1887 = vmatmul.f32.gmra.mxu0 %v1857
    %v1888 = vpop.f32.mrf.mxu0
    %v1889 = vadd.f32 %v1842, %v1888
    %1890 = vmatmul.f32.gmra.mxu0 %v1860
    %v1891 = vpop.f32.mrf.mxu0
    %v1892 = vadd.f32 %v1845, %v1891
    %1893 = vdwg.mxu0
    %v1894 = vld [vmem:[#allocation2 + $0x2] sm:$0xff]
    %v1895 = vld [vmem:[#allocation2 + $0xa] sm:$0xff]
    %v1896 = vld [vmem:[#allocation2 + $0x12] sm:$0xff]
    %v1897 = vld [vmem:[#allocation2 + $0x1a] sm:$0xff]
    %v1898 = vld [vmem:[#allocation2 + $0x22] sm:$0x7]
    %s1899 = scalar_lea.vmem %s12, 128
    %v1900 = vld [vmem:[%s1899] sm:$0xff]
    %v1901 = vld [vmem:[%s1899 + $0x8] sm:$0xff]
    %v1902 = vld [vmem:[%s1899 + $0x10] sm:$0xff]
    %v1903 = vld [vmem:[%s1899 + $0x18] sm:$0xff]
    %v1904 = vld [vmem:[%s1899 + $0x20] sm:$0xff]
    %v1905 = vld [vmem:[%s1899 + $0x28] sm:$0xff]
    %v1906 = vld [vmem:[%s1899 + $0x30] sm:$0xff]
    %v1907 = vld [vmem:[%s1899 + $0x38] sm:$0xff]
    %v1909 = vsel %vm1766, %v1894, 0
    %v1912 = vsel %vm1766, %v1895, 0
    %v1915 = vsel %vm1766, %v1896, 0
    %v1918 = vsel %vm1766, %v1897, 0
    %v1921 = vsel %vm1766, %v1898, 0
    %1923 = vmatpush.msra.mxu0 0.0
    %1924 = vmatpush.msra.mxu0 0.0
    %1925 = vmatpush.msra.mxu0 0.0
    %1926 = vmatpush.msra.mxu0 0.0
    %1927 = vmatpush.msra.mxu0 0.0
    %1928 = vmatpush.msra.mxu0 0.0
    %1929 = vmatpush.msra.mxu0 0.0
    %1930 = vmatpush.msra.mxu0 0.0
    %1931 = vmatpush.msra.mxu0 %v1907
    %1932 = vmatpush.msra.mxu0 %v1906
    %1933 = vmatpush.msra.mxu0 %v1905
    %1934 = vmatpush.msra.mxu0 %v1904
    %1935 = vmatpush.msra.mxu0 %v1903
    %1936 = vmatpush.msra.mxu0 %v1902
    %1937 = vmatpush.msra.mxu0 %v1901
    %1938 = vmatpush.msra.mxu0 %v1900
    %1939 = vmatmul.f32.gmra.mxu0 %v1909
    %v1940 = vpop.f32.mrf.mxu0
    %v1941 = vadd.f32 0.0, %v1940
    %1942 = vmatmul.f32.gmra.mxu0 %v1912
    %v1943 = vpop.f32.mrf.mxu0
    %v1944 = vadd.f32 0.0, %v1943
    %1945 = vmatmul.f32.gmra.mxu0 %v1915
    %v1946 = vpop.f32.mrf.mxu0
    %v1947 = vadd.f32 0.0, %v1946
    %1948 = vmatmul.f32.gmra.mxu0 %v1918
    %v1949 = vpop.f32.mrf.mxu0
    %v1950 = vadd.f32 0.0, %v1949
    %1951 = vmatmul.f32.gmra.mxu0 %v1921
    %v1952 = vpop.f32.mrf.mxu0
    %v1953 = vadd.f32 0.0, %v1952
    %1954 = vdwg.mxu0
    %v1955 = vadd.f32 %v1880, %v1941
    %v1956 = vadd.f32 %v1883, %v1944
    %v1957 = vadd.f32 %v1886, %v1947
    %v1958 = vadd.f32 %v1889, %v1950
    %v1959 = vadd.f32 %v1892, %v1953
    %v1960 = vld [vmem:[#allocation2 + $0x3] sm:$0xff]
    %v1961 = vld [vmem:[#allocation2 + $0xb] sm:$0xff]
    %v1962 = vld [vmem:[#allocation2 + $0x13] sm:$0xff]
    %v1963 = vld [vmem:[#allocation2 + $0x1b] sm:$0xff]
    %v1964 = vld [vmem:[#allocation2 + $0x23] sm:$0x7]
    %s1965 = scalar_lea.vmem %s12, 192
    %v1966 = vld [vmem:[%s1965] sm:$0xff]
    %v1967 = vld [vmem:[%s1965 + $0x8] sm:$0xff]
    %v1968 = vld [vmem:[%s1965 + $0x10] sm:$0xff]
    %v1969 = vld [vmem:[%s1965 + $0x18] sm:$0xff]
    %v1970 = vld [vmem:[%s1965 + $0x20] sm:$0xff]
    %v1971 = vld [vmem:[%s1965 + $0x28] sm:$0xff]
    %v1972 = vld [vmem:[%s1965 + $0x30] sm:$0xff]
    %v1973 = vld [vmem:[%s1965 + $0x38] sm:$0xff]
    %v1975 = vsel %vm1766, %v1960, 0
    %v1978 = vsel %vm1766, %v1961, 0
    %v1981 = vsel %vm1766, %v1962, 0
    %v1984 = vsel %vm1766, %v1963, 0
    %v1987 = vsel %vm1766, %v1964, 0
    %1989 = vmatpush.msra.mxu0 0.0
    %1990 = vmatpush.msra.mxu0 0.0
    %1991 = vmatpush.msra.mxu0 0.0
    %1992 = vmatpush.msra.mxu0 0.0
    %1993 = vmatpush.msra.mxu0 0.0
    %1994 = vmatpush.msra.mxu0 0.0
    %1995 = vmatpush.msra.mxu0 0.0
    %1996 = vmatpush.msra.mxu0 0.0
    %1997 = vmatpush.msra.mxu0 %v1973
    %1998 = vmatpush.msra.mxu0 %v1972
    %1999 = vmatpush.msra.mxu0 %v1971
    %2000 = vmatpush.msra.mxu0 %v1970
    %2001 = vmatpush.msra.mxu0 %v1969
    %2002 = vmatpush.msra.mxu0 %v1968
    %2003 = vmatpush.msra.mxu0 %v1967
    %2004 = vmatpush.msra.mxu0 %v1966
    %2005 = vmatmul.f32.gmra.mxu0 %v1975
    %v2006 = vpop.f32.mrf.mxu0
    %v2007 = vadd.f32 0.0, %v2006
    %2008 = vmatmul.f32.gmra.mxu0 %v1978
    %v2009 = vpop.f32.mrf.mxu0
    %v2010 = vadd.f32 0.0, %v2009
    %2011 = vmatmul.f32.gmra.mxu0 %v1981
    %v2012 = vpop.f32.mrf.mxu0
    %v2013 = vadd.f32 0.0, %v2012
    %2014 = vmatmul.f32.gmra.mxu0 %v1984
    %v2015 = vpop.f32.mrf.mxu0
    %v2016 = vadd.f32 0.0, %v2015
    %2017 = vmatmul.f32.gmra.mxu0 %v1987
    %v2018 = vpop.f32.mrf.mxu0
    %v2019 = vadd.f32 0.0, %v2018
    %2020 = vdwg.mxu0
    %v2021 = vadd.f32 %v1955, %v2007
    %v2022 = vadd.f32 %v1956, %v2010
    %v2023 = vadd.f32 %v1957, %v2013
    %v2024 = vadd.f32 %v1958, %v2016
    %v2025 = vadd.f32 %v1959, %v2019
    %v2026 = vld [vmem:[#allocation2 + $0x4] sm:$0xff]
    %v2027 = vld [vmem:[#allocation2 + $0xc] sm:$0xff]
    %v2028 = vld [vmem:[#allocation2 + $0x14] sm:$0xff]
    %v2029 = vld [vmem:[#allocation2 + $0x1c] sm:$0xff]
    %v2030 = vld [vmem:[#allocation2 + $0x24] sm:$0x7]
    %s2031 = scalar_lea.vmem %s12, 256
    %v2032 = vld [vmem:[%s2031] sm:$0xff]
    %v2033 = vld [vmem:[%s2031 + $0x8] sm:$0xff]
    %v2034 = vld [vmem:[%s2031 + $0x10] sm:$0xff]
    %v2035 = vld [vmem:[%s2031 + $0x18] sm:$0xff]
    %v2036 = vld [vmem:[%s2031 + $0x20] sm:$0xff]
    %v2037 = vld [vmem:[%s2031 + $0x28] sm:$0xff]
    %v2038 = vld [vmem:[%s2031 + $0x30] sm:$0xff]
    %v2039 = vld [vmem:[%s2031 + $0x38] sm:$0xff]
    %v2041 = vsel %vm1766, %v2026, 0
    %v2044 = vsel %vm1766, %v2027, 0
    %v2047 = vsel %vm1766, %v2028, 0
    %v2050 = vsel %vm1766, %v2029, 0
    %v2053 = vsel %vm1766, %v2030, 0
    %2055 = vmatpush.msra.mxu0 0.0
    %2056 = vmatpush.msra.mxu0 0.0
    %2057 = vmatpush.msra.mxu0 0.0
    %2058 = vmatpush.msra.mxu0 0.0
    %2059 = vmatpush.msra.mxu0 0.0
    %2060 = vmatpush.msra.mxu0 0.0
    %2061 = vmatpush.msra.mxu0 0.0
    %2062 = vmatpush.msra.mxu0 0.0
    %2063 = vmatpush.msra.mxu0 %v2039
    %2064 = vmatpush.msra.mxu0 %v2038
    %2065 = vmatpush.msra.mxu0 %v2037
    %2066 = vmatpush.msra.mxu0 %v2036
    %2067 = vmatpush.msra.mxu0 %v2035
    %2068 = vmatpush.msra.mxu0 %v2034
    %2069 = vmatpush.msra.mxu0 %v2033
    %2070 = vmatpush.msra.mxu0 %v2032
    %2071 = vmatmul.f32.gmra.mxu0 %v2041
    %v2072 = vpop.f32.mrf.mxu0
    %v2073 = vadd.f32 0.0, %v2072
    %2074 = vmatmul.f32.gmra.mxu0 %v2044
    %v2075 = vpop.f32.mrf.mxu0
    %v2076 = vadd.f32 0.0, %v2075
    %2077 = vmatmul.f32.gmra.mxu0 %v2047
    %v2078 = vpop.f32.mrf.mxu0
    %v2079 = vadd.f32 0.0, %v2078
    %2080 = vmatmul.f32.gmra.mxu0 %v2050
    %v2081 = vpop.f32.mrf.mxu0
    %v2082 = vadd.f32 0.0, %v2081
    %2083 = vmatmul.f32.gmra.mxu0 %v2053
    %v2084 = vpop.f32.mrf.mxu0
    %v2085 = vadd.f32 0.0, %v2084
    %2086 = vdwg.mxu0
    %v2087 = vadd.f32 %v2021, %v2073
    %v2088 = vadd.f32 %v2022, %v2076
    %v2089 = vadd.f32 %v2023, %v2079
    %v2090 = vadd.f32 %v2024, %v2082
    %v2091 = vadd.f32 %v2025, %v2085
    %v2092 = vld [vmem:[#allocation8] sm:$0xff]
    %v2093 = vld [vmem:[#allocation8 + $0x8] sm:$0xff]
    %v2094 = vld [vmem:[#allocation17] sm:$0x1]
    %v2096 = vperm.slane %v2094, 0
    %vm2098 = vcmask 285696
    %v2100 = vsel %vm2098, %v2092, 0
    %v2103 = vsel %vm2098, %v2093, 0
    %v2106 = vsel %vm1149, %v2091, 0
    %2108 = vmatpush.msra.mxu0 0.0
    %2109 = vmatpush.msra.mxu0 0.0
    %2110 = vmatpush.msra.mxu0 0.0
    %2111 = vmatpush.msra.mxu0 0.0
    %2112 = vmatpush.msra.mxu0 0.0
    %2113 = vmatpush.msra.mxu0 0.0
    %2114 = vmatpush.msra.mxu0 0.0
    %2115 = vmatpush.msra.mxu0 0.0
    %2116 = vmatpush.msra.mxu0 0.0
    %2117 = vmatpush.msra.mxu0 0.0
    %2118 = vmatpush.msra.mxu0 0.0
    %2119 = vmatpush.msra.mxu0 %v2106
    %2120 = vmatpush.msra.mxu0 %v2090
    %2121 = vmatpush.msra.mxu0 %v2089
    %2122 = vmatpush.msra.mxu0 %v2088
    %2123 = vmatpush.msra.mxu0 %v2087
    %2124 = vmatmul.f32.gmra.mxu0 %v2100
    %v2125 = vpop.f32.mrf.mxu0
    %v2126 = vadd.f32 %v2096, %v2125
    %2127 = vmatmul.f32.gmra.mxu0 %v2103
    %v2128 = vpop.f32.mrf.mxu0
    %v2129 = vadd.f32 %v2096, %v2128
    %2130 = vdwg.mxu0
    %v2131 = vmax.f32 %v2126, 0.0
    %v2132 = vmax.f32 %v2129, 0.0
    %2133 = vst [vmem:[#allocation2] sm:$0x3] 0.0
    %2134 = vst [vmem:[#allocation2 + $0xa] sm:$0x3] 0.0
    %2135 = vst [vmem:[#allocation2 + $0x2] sm:$0xff] %v2131
    %2136 = vst [vmem:[#allocation2 + $0xc] sm:$0x3] 0.0
    %2137 = vst [vmem:[#allocation2 + $0x16] sm:$0x3] 0.0
    %2138 = vst [vmem:[#allocation2 + $0xe] sm:$0xff] %v2132
    %v2139 = vld [vmem:[#allocation2] sm:$0xff]
    %v2140 = vld [vmem:[#allocation2 + $0x8] sm:$0xff]
    %v2141 = vld [vmem:[#allocation2 + $0x10] sm:$0xf]
    %v2142 = vld [vmem:[#allocation18] sm:$0xff]
    %v2143 = vld [vmem:[#allocation18 + $0x8] sm:$0xff]
    %v2144 = vld [vmem:[#allocation18 + $0x10] sm:$0xff]
    %v2145 = vld [vmem:[#allocation18 + $0x18] sm:$0xff]
    %v2146 = vld [vmem:[#allocation18 + $0x20] sm:$0xff]
    %v2147 = vld [vmem:[#allocation18 + $0x28] sm:$0xff]
    %v2148 = vld [vmem:[#allocation18 + $0x30] sm:$0xff]
    %v2149 = vld [vmem:[#allocation18 + $0x38] sm:$0xff]
    %v2150 = vld [vmem:[#allocation18 + $0x40] sm:$0xff]
    %v2151 = vld [vmem:[#allocation18 + $0x48] sm:$0xff]
    %v2152 = vld [vmem:[#allocation18 + $0x50] sm:$0xff]
    %v2153 = vld [vmem:[#allocation18 + $0x58] sm:$0xff]
    %v2154 = vld [vmem:[#allocation18 + $0x60] sm:$0xff]
    %v2155 = vld [vmem:[#allocation18 + $0x68] sm:$0xff]
    %v2156 = vld [vmem:[#allocation18 + $0x70] sm:$0xff]
    %v2157 = vld [vmem:[#allocation18 + $0x78] sm:$0xff]
    %v2158 = vld [vmem:[#allocation2 + $0x2] sm:$0xff]
    %v2159 = vld [vmem:[#allocation2 + $0xa] sm:$0xff]
    %v2160 = vld [vmem:[#allocation2 + $0x12] sm:$0xf]
    %s2161 = scalar_lea.vmem [#allocation18], 128
    %v2162 = vld [vmem:[%s2161] sm:$0xff]
    %v2163 = vld [vmem:[%s2161 + $0x8] sm:$0xff]
    %v2164 = vld [vmem:[%s2161 + $0x10] sm:$0xff]
    %v2165 = vld [vmem:[%s2161 + $0x18] sm:$0xff]
    %v2166 = vld [vmem:[%s2161 + $0x20] sm:$0xff]
    %v2167 = vld [vmem:[%s2161 + $0x28] sm:$0xff]
    %v2168 = vld [vmem:[%s2161 + $0x30] sm:$0xff]
    %v2169 = vld [vmem:[%s2161 + $0x38] sm:$0xff]
    %v2170 = vld [vmem:[%s2161 + $0x40] sm:$0xff]
    %v2171 = vld [vmem:[%s2161 + $0x48] sm:$0xff]
    %v2172 = vld [vmem:[%s2161 + $0x50] sm:$0xff]
    %v2173 = vld [vmem:[%s2161 + $0x58] sm:$0xff]
    %v2174 = vld [vmem:[%s2161 + $0x60] sm:$0xff]
    %v2175 = vld [vmem:[%s2161 + $0x68] sm:$0xff]
    %v2176 = vld [vmem:[%s2161 + $0x70] sm:$0xff]
    %v2177 = vld [vmem:[%s2161 + $0x78] sm:$0xff]
    %2178 = vmatpush.msra.mxu0 %v2177
    %2179 = vmatpush.msra.mxu0 %v2176
    %2180 = vmatpush.msra.mxu0 %v2175
    %2181 = vmatpush.msra.mxu0 %v2174
    %2182 = vmatpush.msra.mxu0 %v2173
    %2183 = vmatpush.msra.mxu0 %v2172
    %2184 = vmatpush.msra.mxu0 %v2171
    %2185 = vmatpush.msra.mxu0 %v2170
    %2186 = vmatpush.msra.mxu0 %v2169
    %2187 = vmatpush.msra.mxu0 %v2168
    %2188 = vmatpush.msra.mxu0 %v2167
    %2189 = vmatpush.msra.mxu0 %v2166
    %2190 = vmatpush.msra.mxu0 %v2165
    %2191 = vmatpush.msra.mxu0 %v2164
    %2192 = vmatpush.msra.mxu0 %v2163
    %2193 = vmatpush.msra.mxu0 %v2162
    %2194 = vmatmul.f32.gmra.mxu0 %v2158
    %v2195 = vpop.f32.mrf.mxu0
    %v2196 = vadd.f32 0.0, %v2195
    %2197 = vmatmul.f32.gmra.mxu0 %v2159
    %v2198 = vpop.f32.mrf.mxu0
    %v2199 = vadd.f32 0.0, %v2198
    %2200 = vmatmul.f32.gmra.mxu0 %v2160
    %v2201 = vpop.f32.mrf.mxu0
    %v2202 = vadd.f32 0.0, %v2201
    %2203 = vdwg.mxu0
    %2204 = vmatpush.msra.mxu0 %v2157
    %2205 = vmatpush.msra.mxu0 %v2156
    %2206 = vmatpush.msra.mxu0 %v2155
    %2207 = vmatpush.msra.mxu0 %v2154
    %2208 = vmatpush.msra.mxu0 %v2153
    %2209 = vmatpush.msra.mxu0 %v2152
    %2210 = vmatpush.msra.mxu0 %v2151
    %2211 = vmatpush.msra.mxu0 %v2150
    %2212 = vmatpush.msra.mxu0 %v2149
    %2213 = vmatpush.msra.mxu0 %v2148
    %2214 = vmatpush.msra.mxu0 %v2147
    %2215 = vmatpush.msra.mxu0 %v2146
    %2216 = vmatpush.msra.mxu0 %v2145
    %2217 = vmatpush.msra.mxu0 %v2144
    %2218 = vmatpush.msra.mxu0 %v2143
    %2219 = vmatpush.msra.mxu0 %v2142
    %2220 = vmatmul.f32.gmra.mxu0 %v2139
    %v2221 = vpop.f32.mrf.mxu0
    %v2222 = vadd.f32 %v2196, %v2221
    %2223 = vmatmul.f32.gmra.mxu0 %v2140
    %v2224 = vpop.f32.mrf.mxu0
    %v2225 = vadd.f32 %v2199, %v2224
    %2226 = vmatmul.f32.gmra.mxu0 %v2141
    %v2227 = vpop.f32.mrf.mxu0
    %v2228 = vadd.f32 %v2202, %v2227
    %2229 = vdwg.mxu0
    %v2230 = vld [vmem:[#allocation2 + $0x4] sm:$0xff]
    %v2231 = vld [vmem:[#allocation2 + $0xc] sm:$0xff]
    %v2232 = vld [vmem:[#allocation2 + $0x14] sm:$0xf]
    %s2233 = scalar_lea.vmem [#allocation18], 256
    %v2234 = vld [vmem:[%s2233] sm:$0xff]
    %v2235 = vld [vmem:[%s2233 + $0x8] sm:$0xff]
    %v2236 = vld [vmem:[%s2233 + $0x10] sm:$0xff]
    %v2237 = vld [vmem:[%s2233 + $0x18] sm:$0xff]
    %v2238 = vld [vmem:[%s2233 + $0x20] sm:$0xff]
    %v2239 = vld [vmem:[%s2233 + $0x28] sm:$0xff]
    %v2240 = vld [vmem:[%s2233 + $0x30] sm:$0xff]
    %v2241 = vld [vmem:[%s2233 + $0x38] sm:$0xff]
    %v2242 = vld [vmem:[%s2233 + $0x40] sm:$0xff]
    %v2243 = vld [vmem:[%s2233 + $0x48] sm:$0xff]
    %v2244 = vld [vmem:[%s2233 + $0x50] sm:$0xff]
    %v2245 = vld [vmem:[%s2233 + $0x58] sm:$0xff]
    %v2246 = vld [vmem:[%s2233 + $0x60] sm:$0xff]
    %v2247 = vld [vmem:[%s2233 + $0x68] sm:$0xff]
    %v2248 = vld [vmem:[%s2233 + $0x70] sm:$0xff]
    %v2249 = vld [vmem:[%s2233 + $0x78] sm:$0xff]
    %2250 = vmatpush.msra.mxu0 %v2249
    %2251 = vmatpush.msra.mxu0 %v2248
    %2252 = vmatpush.msra.mxu0 %v2247
    %2253 = vmatpush.msra.mxu0 %v2246
    %2254 = vmatpush.msra.mxu0 %v2245
    %2255 = vmatpush.msra.mxu0 %v2244
    %2256 = vmatpush.msra.mxu0 %v2243
    %2257 = vmatpush.msra.mxu0 %v2242
    %2258 = vmatpush.msra.mxu0 %v2241
    %2259 = vmatpush.msra.mxu0 %v2240
    %2260 = vmatpush.msra.mxu0 %v2239
    %2261 = vmatpush.msra.mxu0 %v2238
    %2262 = vmatpush.msra.mxu0 %v2237
    %2263 = vmatpush.msra.mxu0 %v2236
    %2264 = vmatpush.msra.mxu0 %v2235
    %2265 = vmatpush.msra.mxu0 %v2234
    %2266 = vmatmul.f32.gmra.mxu0 %v2230
    %v2267 = vpop.f32.mrf.mxu0
    %v2268 = vadd.f32 0.0, %v2267
    %2269 = vmatmul.f32.gmra.mxu0 %v2231
    %v2270 = vpop.f32.mrf.mxu0
    %v2271 = vadd.f32 0.0, %v2270
    %2272 = vmatmul.f32.gmra.mxu0 %v2232
    %v2273 = vpop.f32.mrf.mxu0
    %v2274 = vadd.f32 0.0, %v2273
    %2275 = vdwg.mxu0
    %v2276 = vadd.f32 %v2222, %v2268
    %v2277 = vadd.f32 %v2225, %v2271
    %v2278 = vadd.f32 %v2228, %v2274
    %v2279 = vld [vmem:[#allocation9] sm:$0xff]
    %v2280 = vld [vmem:[#allocation9 + $0x8] sm:$0xff]
    %v2281 = vld [vmem:[#allocation20] sm:$0x1]
    %v2283 = vperm.slane %v2281, 0
    %vm2285 = vcmask 162816
    %v2287 = vsel %vm2285, %v2279, 0
    %v2290 = vsel %vm2285, %v2280, 0
    %vm2292 = vcmask 1043456
    %v2294 = vsel %vm2292, %v2278, 0
    %2296 = vmatpush.msra.mxu0 0.0
    %2297 = vmatpush.msra.mxu0 0.0
    %2298 = vmatpush.msra.mxu0 0.0
    %2299 = vmatpush.msra.mxu0 0.0
    %2300 = vmatpush.msra.mxu0 0.0
    %2301 = vmatpush.msra.mxu0 0.0
    %2302 = vmatpush.msra.mxu0 0.0
    %2303 = vmatpush.msra.mxu0 0.0
    %2304 = vmatpush.msra.mxu0 0.0
    %2305 = vmatpush.msra.mxu0 0.0
    %2306 = vmatpush.msra.mxu0 0.0
    %2307 = vmatpush.msra.mxu0 0.0
    %2308 = vmatpush.msra.mxu0 0.0
    %2309 = vmatpush.msra.mxu0 %v2294
    %2310 = vmatpush.msra.mxu0 %v2277
    %2311 = vmatpush.msra.mxu0 %v2276
    %2312 = vmatmul.f32.gmra.mxu0 %v2287
    %v2313 = vpop.f32.mrf.mxu0
    %v2314 = vadd.f32 %v2283, %v2313
    %2315 = vmatmul.f32.gmra.mxu0 %v2290
    %v2316 = vpop.f32.mrf.mxu0
    %v2317 = vadd.f32 %v2283, %v2316
    %2318 = vdwg.mxu0
    %v2319 = vmax.f32 %v2314, 0.0
    %v2320 = vmax.f32 %v2317, 0.0
    %2321 = vst [vmem:[#allocation2] sm:$0xf] 0.0
    %2322 = vst [vmem:[#allocation2 + $0xc] sm:$0xf] 0.0
    %2323 = vst [vmem:[#allocation2 + $0x4] sm:$0xff] %v2319
    %2324 = vst [vmem:[#allocation2 + $0x10] sm:$0xf] 0.0
    %2325 = vst [vmem:[#allocation2 + $0x1c] sm:$0xf] 0.0
    %2326 = vst [vmem:[#allocation2 + $0x14] sm:$0xff] %v2320
    %v2327 = vld [vmem:[#allocation2] sm:$0xff]
    %v2328 = vld [vmem:[#allocation2 + $0x8] sm:$0xff]
    %v2329 = vld [vmem:[#allocation2 + $0x10] sm:$0xff]
    %v2330 = vld [vmem:[#allocation21] sm:$0xff]
    %v2331 = vld [vmem:[#allocation21 + $0x8] sm:$0xff]
    %v2332 = vld [vmem:[#allocation21 + $0x10] sm:$0xff]
    %v2333 = vld [vmem:[#allocation21 + $0x18] sm:$0xff]
    %v2334 = vld [vmem:[#allocation21 + $0x20] sm:$0xff]
    %v2335 = vld [vmem:[#allocation21 + $0x28] sm:$0xff]
    %v2336 = vld [vmem:[#allocation21 + $0x30] sm:$0xff]
    %v2337 = vld [vmem:[#allocation21 + $0x38] sm:$0xff]
    %v2338 = vld [vmem:[#allocation21 + $0x40] sm:$0xff]
    %v2339 = vld [vmem:[#allocation21 + $0x48] sm:$0xff]
    %v2340 = vld [vmem:[#allocation21 + $0x50] sm:$0xff]
    %v2341 = vld [vmem:[#allocation21 + $0x58] sm:$0xff]
    %v2342 = vld [vmem:[#allocation21 + $0x60] sm:$0xff]
    %v2343 = vld [vmem:[#allocation21 + $0x68] sm:$0xff]
    %v2344 = vld [vmem:[#allocation21 + $0x70] sm:$0xff]
    %v2345 = vld [vmem:[#allocation21 + $0x78] sm:$0xff]
    %v2346 = vld [vmem:[#allocation2 + $0x4] sm:$0xff]
    %v2347 = vld [vmem:[#allocation2 + $0xc] sm:$0xff]
    %v2348 = vld [vmem:[#allocation2 + $0x14] sm:$0xff]
    %s2349 = scalar_lea.vmem [#allocation21], 128
    %v2350 = vld [vmem:[%s2349] sm:$0xff]
    %v2351 = vld [vmem:[%s2349 + $0x8] sm:$0xff]
    %v2352 = vld [vmem:[%s2349 + $0x10] sm:$0xff]
    %v2353 = vld [vmem:[%s2349 + $0x18] sm:$0xff]
    %v2354 = vld [vmem:[%s2349 + $0x20] sm:$0xff]
    %v2355 = vld [vmem:[%s2349 + $0x28] sm:$0xff]
    %v2356 = vld [vmem:[%s2349 + $0x30] sm:$0xff]
    %v2357 = vld [vmem:[%s2349 + $0x38] sm:$0xff]
    %v2358 = vld [vmem:[%s2349 + $0x40] sm:$0xff]
    %v2359 = vld [vmem:[%s2349 + $0x48] sm:$0xff]
    %v2360 = vld [vmem:[%s2349 + $0x50] sm:$0xff]
    %v2361 = vld [vmem:[%s2349 + $0x58] sm:$0xff]
    %v2362 = vld [vmem:[%s2349 + $0x60] sm:$0xff]
    %v2363 = vld [vmem:[%s2349 + $0x68] sm:$0xff]
    %v2364 = vld [vmem:[%s2349 + $0x70] sm:$0xff]
    %v2365 = vld [vmem:[%s2349 + $0x78] sm:$0xff]
    %2366 = vmatpush.msra.mxu0 %v2365
    %2367 = vmatpush.msra.mxu0 %v2364
    %2368 = vmatpush.msra.mxu0 %v2363
    %2369 = vmatpush.msra.mxu0 %v2362
    %2370 = vmatpush.msra.mxu0 %v2361
    %2371 = vmatpush.msra.mxu0 %v2360
    %2372 = vmatpush.msra.mxu0 %v2359
    %2373 = vmatpush.msra.mxu0 %v2358
    %2374 = vmatpush.msra.mxu0 %v2357
    %2375 = vmatpush.msra.mxu0 %v2356
    %2376 = vmatpush.msra.mxu0 %v2355
    %2377 = vmatpush.msra.mxu0 %v2354
    %2378 = vmatpush.msra.mxu0 %v2353
    %2379 = vmatpush.msra.mxu0 %v2352
    %2380 = vmatpush.msra.mxu0 %v2351
    %2381 = vmatpush.msra.mxu0 %v2350
    %2382 = vmatmul.f32.gmra.mxu0 %v2346
    %v2383 = vpop.f32.mrf.mxu0
    %v2384 = vadd.f32 0.0, %v2383
    %2385 = vmatmul.f32.gmra.mxu0 %v2347
    %v2386 = vpop.f32.mrf.mxu0
    %v2387 = vadd.f32 0.0, %v2386
    %2388 = vmatmul.f32.gmra.mxu0 %v2348
    %v2389 = vpop.f32.mrf.mxu0
    %v2390 = vadd.f32 0.0, %v2389
    %2391 = vdwg.mxu0
    %2392 = vmatpush.msra.mxu0 %v2345
    %2393 = vmatpush.msra.mxu0 %v2344
    %2394 = vmatpush.msra.mxu0 %v2343
    %2395 = vmatpush.msra.mxu0 %v2342
    %2396 = vmatpush.msra.mxu0 %v2341
    %2397 = vmatpush.msra.mxu0 %v2340
    %2398 = vmatpush.msra.mxu0 %v2339
    %2399 = vmatpush.msra.mxu0 %v2338
    %2400 = vmatpush.msra.mxu0 %v2337
    %2401 = vmatpush.msra.mxu0 %v2336
    %2402 = vmatpush.msra.mxu0 %v2335
    %2403 = vmatpush.msra.mxu0 %v2334
    %2404 = vmatpush.msra.mxu0 %v2333
    %2405 = vmatpush.msra.mxu0 %v2332
    %2406 = vmatpush.msra.mxu0 %v2331
    %2407 = vmatpush.msra.mxu0 %v2330
    %2408 = vmatmul.f32.gmra.mxu0 %v2327
    %v2409 = vpop.f32.mrf.mxu0
    %v2410 = vadd.f32 %v2384, %v2409
    %2411 = vmatmul.f32.gmra.mxu0 %v2328
    %v2412 = vpop.f32.mrf.mxu0
    %v2413 = vadd.f32 %v2387, %v2412
    %2414 = vmatmul.f32.gmra.mxu0 %v2329
    %v2415 = vpop.f32.mrf.mxu0
    %v2416 = vadd.f32 %v2390, %v2415
    %2417 = vdwg.mxu0
    %v2418 = vld [vmem:[#allocation2 + $0x8] sm:$0xff]
    %v2419 = vld [vmem:[#allocation2 + $0x10] sm:$0xff]
    %v2420 = vld [vmem:[#allocation2 + $0x18] sm:$0xff]
    %s2421 = scalar_lea.vmem [#allocation21], 256
    %v2422 = vld [vmem:[%s2421] sm:$0xff]
    %v2423 = vld [vmem:[%s2421 + $0x8] sm:$0xff]
    %v2424 = vld [vmem:[%s2421 + $0x10] sm:$0xff]
    %v2425 = vld [vmem:[%s2421 + $0x18] sm:$0xff]
    %v2426 = vld [vmem:[%s2421 + $0x20] sm:$0xff]
    %v2427 = vld [vmem:[%s2421 + $0x28] sm:$0xff]
    %v2428 = vld [vmem:[%s2421 + $0x30] sm:$0xff]
    %v2429 = vld [vmem:[%s2421 + $0x38] sm:$0xff]
    %v2430 = vld [vmem:[%s2421 + $0x40] sm:$0xff]
    %v2431 = vld [vmem:[%s2421 + $0x48] sm:$0xff]
    %v2432 = vld [vmem:[%s2421 + $0x50] sm:$0xff]
    %v2433 = vld [vmem:[%s2421 + $0x58] sm:$0xff]
    %v2434 = vld [vmem:[%s2421 + $0x60] sm:$0xff]
    %v2435 = vld [vmem:[%s2421 + $0x68] sm:$0xff]
    %v2436 = vld [vmem:[%s2421 + $0x70] sm:$0xff]
    %v2437 = vld [vmem:[%s2421 + $0x78] sm:$0xff]
    %2438 = vmatpush.msra.mxu0 %v2437
    %2439 = vmatpush.msra.mxu0 %v2436
    %2440 = vmatpush.msra.mxu0 %v2435
    %2441 = vmatpush.msra.mxu0 %v2434
    %2442 = vmatpush.msra.mxu0 %v2433
    %2443 = vmatpush.msra.mxu0 %v2432
    %2444 = vmatpush.msra.mxu0 %v2431
    %2445 = vmatpush.msra.mxu0 %v2430
    %2446 = vmatpush.msra.mxu0 %v2429
    %2447 = vmatpush.msra.mxu0 %v2428
    %2448 = vmatpush.msra.mxu0 %v2427
    %2449 = vmatpush.msra.mxu0 %v2426
    %2450 = vmatpush.msra.mxu0 %v2425
    %2451 = vmatpush.msra.mxu0 %v2424
    %2452 = vmatpush.msra.mxu0 %v2423
    %2453 = vmatpush.msra.mxu0 %v2422
    %2454 = vmatmul.f32.gmra.mxu0 %v2418
    %v2455 = vpop.f32.mrf.mxu0
    %v2456 = vadd.f32 0.0, %v2455
    %2457 = vmatmul.f32.gmra.mxu0 %v2419
    %v2458 = vpop.f32.mrf.mxu0
    %v2459 = vadd.f32 0.0, %v2458
    %2460 = vmatmul.f32.gmra.mxu0 %v2420
    %v2461 = vpop.f32.mrf.mxu0
    %v2462 = vadd.f32 0.0, %v2461
    %2463 = vdwg.mxu0
    %v2464 = vadd.f32 %v2410, %v2456
    %v2465 = vadd.f32 %v2413, %v2459
    %v2466 = vadd.f32 %v2416, %v2462
    %v2467 = vld [vmem:[%s5] sm:$0xff]
    %v2468 = vld [vmem:[%s5 + $0x8] sm:$0xff]
    %v2469 = vld [vmem:[#allocation23] sm:$0x1]
    %v2471 = vperm.slane %v2469, 0
    %vm2473 = vcmask 195584
    %v2475 = vsel %vm2473, %v2467, 0
    %v2478 = vsel %vm2473, %v2468, 0
    %2480 = vmatpush.msra.mxu0 0.0
    %2481 = vmatpush.msra.mxu0 0.0
    %2482 = vmatpush.msra.mxu0 0.0
    %2483 = vmatpush.msra.mxu0 0.0
    %2484 = vmatpush.msra.mxu0 0.0
    %2485 = vmatpush.msra.mxu0 0.0
    %2486 = vmatpush.msra.mxu0 0.0
    %2487 = vmatpush.msra.mxu0 0.0
    %2488 = vmatpush.msra.mxu0 0.0
    %2489 = vmatpush.msra.mxu0 0.0
    %2490 = vmatpush.msra.mxu0 0.0
    %2491 = vmatpush.msra.mxu0 0.0
    %2492 = vmatpush.msra.mxu0 0.0
    %2493 = vmatpush.msra.mxu0 %v2466
    %2494 = vmatpush.msra.mxu0 %v2465
    %2495 = vmatpush.msra.mxu0 %v2464
    %2496 = vmatmul.f32.gmra.mxu0 %v2475
    %v2497 = vpop.f32.mrf.mxu0
    %v2498 = vadd.f32 %v2471, %v2497
    %2499 = vmatmul.f32.gmra.mxu0 %v2478
    %v2500 = vpop.f32.mrf.mxu0
    %v2501 = vadd.f32 %v2471, %v2500
    %2502 = vdwg.mxu0
    %v2503 = vmax.f32 %v2498, 0.0
    %v2504 = vmax.f32 %v2501, 0.0
    %2505 = vst [vmem:[#allocation2] sm:$0x1] 0.0
    %2506 = vst [vmem:[#allocation2 + $0x9] sm:$0x1] 0.0
    %2507 = vst [vmem:[#allocation2 + $0x1] sm:$0xff] %v2503
    %2508 = vst [vmem:[#allocation2 + $0xa] sm:$0x1] 0.0
    %2509 = vst [vmem:[#allocation2 + $0x13] sm:$0x1] 0.0
    %2510 = vst [vmem:[#allocation2 + $0xb] sm:$0xff] %v2504
    %v2511 = vld [vmem:[#allocation2] sm:$0xff]
    %v2512 = vld [vmem:[#allocation2 + $0x8] sm:$0xff]
    %v2513 = vld [vmem:[#allocation2 + $0x10] sm:$0x1]
    %v2514 = vld [vmem:[#allocation24] sm:$0xff]
    %v2515 = vld [vmem:[#allocation24 + $0x8] sm:$0xff]
    %v2516 = vld [vmem:[#allocation24 + $0x10] sm:$0xff]
    %v2517 = vld [vmem:[#allocation24 + $0x18] sm:$0xff]
    %v2518 = vld [vmem:[#allocation24 + $0x20] sm:$0xff]
    %v2519 = vld [vmem:[#allocation24 + $0x28] sm:$0xff]
    %v2520 = vld [vmem:[#allocation24 + $0x30] sm:$0xff]
    %v2521 = vld [vmem:[#allocation24 + $0x38] sm:$0xff]
    %v2522 = vld [vmem:[#allocation24 + $0x40] sm:$0xff]
    %v2523 = vld [vmem:[#allocation24 + $0x48] sm:$0xff]
    %v2524 = vld [vmem:[#allocation24 + $0x50] sm:$0xff]
    %v2525 = vld [vmem:[#allocation24 + $0x58] sm:$0xff]
    %v2526 = vld [vmem:[#allocation24 + $0x60] sm:$0xff]
    %v2527 = vld [vmem:[#allocation24 + $0x68] sm:$0xff]
    %v2528 = vld [vmem:[#allocation24 + $0x70] sm:$0xff]
    %v2529 = vld [vmem:[#allocation24 + $0x78] sm:$0xff]
    %v2530 = vld [vmem:[#allocation24 + $0x80] sm:$0xff]
    %v2531 = vld [vmem:[#allocation24 + $0x88] sm:$0xff]
    %v2532 = vld [vmem:[#allocation24 + $0x90] sm:$0xff]
    %v2533 = vld [vmem:[#allocation24 + $0x98] sm:$0xff]
    %v2534 = vld [vmem:[#allocation24 + $0xa0] sm:$0xff]
    %v2535 = vld [vmem:[#allocation24 + $0xa8] sm:$0xff]
    %v2536 = vld [vmem:[#allocation24 + $0xb0] sm:$0xff]
    %v2537 = vld [vmem:[#allocation24 + $0xb8] sm:$0xff]
    %v2538 = vld [vmem:[#allocation24 + $0xc0] sm:$0xff]
    %v2539 = vld [vmem:[#allocation24 + $0xc8] sm:$0xff]
    %v2540 = vld [vmem:[#allocation24 + $0xd0] sm:$0xff]
    %v2541 = vld [vmem:[#allocation24 + $0xd8] sm:$0xff]
    %v2542 = vld [vmem:[#allocation24 + $0xe0] sm:$0xff]
    %v2543 = vld [vmem:[#allocation24 + $0xe8] sm:$0xff]
    %v2544 = vld [vmem:[#allocation24 + $0xf0] sm:$0xff]
    %v2545 = vld [vmem:[#allocation24 + $0xf8] sm:$0xff]
    %v2546 = vld [vmem:[#allocation2 + $0x1] sm:$0xff]
    %v2547 = vld [vmem:[#allocation2 + $0x9] sm:$0xff]
    %v2548 = vld [vmem:[#allocation2 + $0x11] sm:$0x1]
    %s2549 = scalar_lea.vmem [#allocation24], 256
    %v2550 = vld [vmem:[%s2549] sm:$0xff]
    %v2551 = vld [vmem:[%s2549 + $0x8] sm:$0xff]
    %v2552 = vld [vmem:[%s2549 + $0x10] sm:$0xff]
    %v2553 = vld [vmem:[%s2549 + $0x18] sm:$0xff]
    %v2554 = vld [vmem:[%s2549 + $0x20] sm:$0xff]
    %v2555 = vld [vmem:[%s2549 + $0x28] sm:$0xff]
    %v2556 = vld [vmem:[%s2549 + $0x30] sm:$0xff]
    %v2557 = vld [vmem:[%s2549 + $0x38] sm:$0xff]
    %v2558 = vld [vmem:[%s2549 + $0x40] sm:$0xff]
    %v2559 = vld [vmem:[%s2549 + $0x48] sm:$0xff]
    %v2560 = vld [vmem:[%s2549 + $0x50] sm:$0xff]
    %v2561 = vld [vmem:[%s2549 + $0x58] sm:$0xff]
    %v2562 = vld [vmem:[%s2549 + $0x60] sm:$0xff]
    %v2563 = vld [vmem:[%s2549 + $0x68] sm:$0xff]
    %v2564 = vld [vmem:[%s2549 + $0x70] sm:$0xff]
    %v2565 = vld [vmem:[%s2549 + $0x78] sm:$0xff]
    %v2566 = vld [vmem:[%s2549 + $0x80] sm:$0xff]
    %v2567 = vld [vmem:[%s2549 + $0x88] sm:$0xff]
    %v2568 = vld [vmem:[%s2549 + $0x90] sm:$0xff]
    %v2569 = vld [vmem:[%s2549 + $0x98] sm:$0xff]
    %v2570 = vld [vmem:[%s2549 + $0xa0] sm:$0xff]
    %v2571 = vld [vmem:[%s2549 + $0xa8] sm:$0xff]
    %v2572 = vld [vmem:[%s2549 + $0xb0] sm:$0xff]
    %v2573 = vld [vmem:[%s2549 + $0xb8] sm:$0xff]
    %v2574 = vld [vmem:[%s2549 + $0xc0] sm:$0xff]
    %v2575 = vld [vmem:[%s2549 + $0xc8] sm:$0xff]
    %v2576 = vld [vmem:[%s2549 + $0xd0] sm:$0xff]
    %v2577 = vld [vmem:[%s2549 + $0xd8] sm:$0xff]
    %v2578 = vld [vmem:[%s2549 + $0xe0] sm:$0xff]
    %v2579 = vld [vmem:[%s2549 + $0xe8] sm:$0xff]
    %v2580 = vld [vmem:[%s2549 + $0xf0] sm:$0xff]
    %v2581 = vld [vmem:[%s2549 + $0xf8] sm:$0xff]
    %2582 = vmatpush.msra.mxu0 %v2580
    %2583 = vmatpush.msra.mxu0 %v2578
    %2584 = vmatpush.msra.mxu0 %v2576
    %2585 = vmatpush.msra.mxu0 %v2574
    %2586 = vmatpush.msra.mxu0 %v2572
    %2587 = vmatpush.msra.mxu0 %v2570
    %2588 = vmatpush.msra.mxu0 %v2568
    %2589 = vmatpush.msra.mxu0 %v2566
    %2590 = vmatpush.msra.mxu0 %v2564
    %2591 = vmatpush.msra.mxu0 %v2562
    %2592 = vmatpush.msra.mxu0 %v2560
    %2593 = vmatpush.msra.mxu0 %v2558
    %2594 = vmatpush.msra.mxu0 %v2556
    %2595 = vmatpush.msra.mxu0 %v2554
    %2596 = vmatpush.msra.mxu0 %v2552
    %2597 = vmatpush.msra.mxu0 %v2550
    %2598 = vmatmul.f32.gmra.mxu0 %v2546
    %v2599 = vpop.f32.mrf.mxu0
    %v2600 = vadd.f32 0.0, %v2599
    %2601 = vmatmul.f32.gmra.mxu0 %v2547
    %v2602 = vpop.f32.mrf.mxu0
    %v2603 = vadd.f32 0.0, %v2602
    %2604 = vmatmul.f32.gmra.mxu0 %v2548
    %v2605 = vpop.f32.mrf.mxu0
    %v2606 = vadd.f32 0.0, %v2605
    %2607 = vdwg.mxu0
    %2608 = vmatpush.msra.mxu0 %v2581
    %2609 = vmatpush.msra.mxu0 %v2579
    %2610 = vmatpush.msra.mxu0 %v2577
    %2611 = vmatpush.msra.mxu0 %v2575
    %2612 = vmatpush.msra.mxu0 %v2573
    %2613 = vmatpush.msra.mxu0 %v2571
    %2614 = vmatpush.msra.mxu0 %v2569
    %2615 = vmatpush.msra.mxu0 %v2567
    %2616 = vmatpush.msra.mxu0 %v2565
    %2617 = vmatpush.msra.mxu0 %v2563
    %2618 = vmatpush.msra.mxu0 %v2561
    %2619 = vmatpush.msra.mxu0 %v2559
    %2620 = vmatpush.msra.mxu0 %v2557
    %2621 = vmatpush.msra.mxu0 %v2555
    %2622 = vmatpush.msra.mxu0 %v2553
    %2623 = vmatpush.msra.mxu0 %v2551
    %2624 = vmatmul.f32.gmra.mxu0 %v2546
    %v2625 = vpop.f32.mrf.mxu0
    %v2626 = vadd.f32 0.0, %v2625
    %2627 = vmatmul.f32.gmra.mxu0 %v2547
    %v2628 = vpop.f32.mrf.mxu0
    %v2629 = vadd.f32 0.0, %v2628
    %2630 = vmatmul.f32.gmra.mxu0 %v2548
    %v2631 = vpop.f32.mrf.mxu0
    %v2632 = vadd.f32 0.0, %v2631
    %2633 = vdwg.mxu0
    %2634 = vmatpush.msra.mxu0 %v2544
    %2635 = vmatpush.msra.mxu0 %v2542
    %2636 = vmatpush.msra.mxu0 %v2540
    %2637 = vmatpush.msra.mxu0 %v2538
    %2638 = vmatpush.msra.mxu0 %v2536
    %2639 = vmatpush.msra.mxu0 %v2534
    %2640 = vmatpush.msra.mxu0 %v2532
    %2641 = vmatpush.msra.mxu0 %v2530
    %2642 = vmatpush.msra.mxu0 %v2528
    %2643 = vmatpush.msra.mxu0 %v2526
    %2644 = vmatpush.msra.mxu0 %v2524
    %2645 = vmatpush.msra.mxu0 %v2522
    %2646 = vmatpush.msra.mxu0 %v2520
    %2647 = vmatpush.msra.mxu0 %v2518
    %2648 = vmatpush.msra.mxu0 %v2516
    %2649 = vmatpush.msra.mxu0 %v2514
    %2650 = vmatmul.f32.gmra.mxu0 %v2511
    %v2651 = vpop.f32.mrf.mxu0
    %v2652 = vadd.f32 %v2600, %v2651
    %2653 = vmatmul.f32.gmra.mxu0 %v2512
    %v2654 = vpop.f32.mrf.mxu0
    %v2655 = vadd.f32 %v2603, %v2654
    %2656 = vmatmul.f32.gmra.mxu0 %v2513
    %v2657 = vpop.f32.mrf.mxu0
    %v2658 = vadd.f32 %v2606, %v2657
    %2659 = vdwg.mxu0
    %2660 = vmatpush.msra.mxu0 %v2545
    %2661 = vmatpush.msra.mxu0 %v2543
    %2662 = vmatpush.msra.mxu0 %v2541
    %2663 = vmatpush.msra.mxu0 %v2539
    %2664 = vmatpush.msra.mxu0 %v2537
    %2665 = vmatpush.msra.mxu0 %v2535
    %2666 = vmatpush.msra.mxu0 %v2533
    %2667 = vmatpush.msra.mxu0 %v2531
    %2668 = vmatpush.msra.mxu0 %v2529
    %2669 = vmatpush.msra.mxu0 %v2527
    %2670 = vmatpush.msra.mxu0 %v2525
    %2671 = vmatpush.msra.mxu0 %v2523
    %2672 = vmatpush.msra.mxu0 %v2521
    %2673 = vmatpush.msra.mxu0 %v2519
    %2674 = vmatpush.msra.mxu0 %v2517
    %2675 = vmatpush.msra.mxu0 %v2515
    %2676 = vmatmul.f32.gmra.mxu0 %v2511
    %v2677 = vpop.f32.mrf.mxu0
    %v2678 = vadd.f32 %v2626, %v2677
    %2679 = vmatmul.f32.gmra.mxu0 %v2512
    %v2680 = vpop.f32.mrf.mxu0
    %v2681 = vadd.f32 %v2629, %v2680
    %2682 = vmatmul.f32.gmra.mxu0 %v2513
    %v2683 = vpop.f32.mrf.mxu0
    %v2684 = vadd.f32 %v2632, %v2683
    %2685 = vdwg.mxu0
    %v2686 = vld [vmem:[#allocation2 + $0x2] sm:$0xff]
    %v2687 = vld [vmem:[#allocation2 + $0xa] sm:$0xff]
    %v2688 = vld [vmem:[#allocation2 + $0x12] sm:$0x1]
    %s2689 = scalar_lea.vmem [#allocation24], 512
    %v2690 = vld [vmem:[%s2689] sm:$0xff]
    %v2691 = vld [vmem:[%s2689 + $0x8] sm:$0xff]
    %v2692 = vld [vmem:[%s2689 + $0x10] sm:$0xff]
    %v2693 = vld [vmem:[%s2689 + $0x18] sm:$0xff]
    %v2694 = vld [vmem:[%s2689 + $0x20] sm:$0xff]
    %v2695 = vld [vmem:[%s2689 + $0x28] sm:$0xff]
    %v2696 = vld [vmem:[%s2689 + $0x30] sm:$0xff]
    %v2697 = vld [vmem:[%s2689 + $0x38] sm:$0xff]
    %v2698 = vld [vmem:[%s2689 + $0x40] sm:$0xff]
    %v2699 = vld [vmem:[%s2689 + $0x48] sm:$0xff]
    %v2700 = vld [vmem:[%s2689 + $0x50] sm:$0xff]
    %v2701 = vld [vmem:[%s2689 + $0x58] sm:$0xff]
    %v2702 = vld [vmem:[%s2689 + $0x60] sm:$0xff]
    %v2703 = vld [vmem:[%s2689 + $0x68] sm:$0xff]
    %v2704 = vld [vmem:[%s2689 + $0x70] sm:$0xff]
    %v2705 = vld [vmem:[%s2689 + $0x78] sm:$0xff]
    %v2706 = vld [vmem:[%s2689 + $0x80] sm:$0xff]
    %v2707 = vld [vmem:[%s2689 + $0x88] sm:$0xff]
    %v2708 = vld [vmem:[%s2689 + $0x90] sm:$0xff]
    %v2709 = vld [vmem:[%s2689 + $0x98] sm:$0xff]
    %v2710 = vld [vmem:[%s2689 + $0xa0] sm:$0xff]
    %v2711 = vld [vmem:[%s2689 + $0xa8] sm:$0xff]
    %v2712 = vld [vmem:[%s2689 + $0xb0] sm:$0xff]
    %v2713 = vld [vmem:[%s2689 + $0xb8] sm:$0xff]
    %v2714 = vld [vmem:[%s2689 + $0xc0] sm:$0xff]
    %v2715 = vld [vmem:[%s2689 + $0xc8] sm:$0xff]
    %v2716 = vld [vmem:[%s2689 + $0xd0] sm:$0xff]
    %v2717 = vld [vmem:[%s2689 + $0xd8] sm:$0xff]
    %v2718 = vld [vmem:[%s2689 + $0xe0] sm:$0xff]
    %v2719 = vld [vmem:[%s2689 + $0xe8] sm:$0xff]
    %v2720 = vld [vmem:[%s2689 + $0xf0] sm:$0xff]
    %v2721 = vld [vmem:[%s2689 + $0xf8] sm:$0xff]
    %2722 = vmatpush.msra.mxu0 %v2720
    %2723 = vmatpush.msra.mxu0 %v2718
    %2724 = vmatpush.msra.mxu0 %v2716
    %2725 = vmatpush.msra.mxu0 %v2714
    %2726 = vmatpush.msra.mxu0 %v2712
    %2727 = vmatpush.msra.mxu0 %v2710
    %2728 = vmatpush.msra.mxu0 %v2708
    %2729 = vmatpush.msra.mxu0 %v2706
    %2730 = vmatpush.msra.mxu0 %v2704
    %2731 = vmatpush.msra.mxu0 %v2702
    %2732 = vmatpush.msra.mxu0 %v2700
    %2733 = vmatpush.msra.mxu0 %v2698
    %2734 = vmatpush.msra.mxu0 %v2696
    %2735 = vmatpush.msra.mxu0 %v2694
    %2736 = vmatpush.msra.mxu0 %v2692
    %2737 = vmatpush.msra.mxu0 %v2690
    %2738 = vmatmul.f32.gmra.mxu0 %v2686
    %v2739 = vpop.f32.mrf.mxu0
    %v2740 = vadd.f32 0.0, %v2739
    %2741 = vmatmul.f32.gmra.mxu0 %v2687
    %v2742 = vpop.f32.mrf.mxu0
    %v2743 = vadd.f32 0.0, %v2742
    %2744 = vmatmul.f32.gmra.mxu0 %v2688
    %v2745 = vpop.f32.mrf.mxu0
    %v2746 = vadd.f32 0.0, %v2745
    %2747 = vdwg.mxu0
    %2748 = vmatpush.msra.mxu0 %v2721
    %2749 = vmatpush.msra.mxu0 %v2719
    %2750 = vmatpush.msra.mxu0 %v2717
    %2751 = vmatpush.msra.mxu0 %v2715
    %2752 = vmatpush.msra.mxu0 %v2713
    %2753 = vmatpush.msra.mxu0 %v2711
    %2754 = vmatpush.msra.mxu0 %v2709
    %2755 = vmatpush.msra.mxu0 %v2707
    %2756 = vmatpush.msra.mxu0 %v2705
    %2757 = vmatpush.msra.mxu0 %v2703
    %2758 = vmatpush.msra.mxu0 %v2701
    %2759 = vmatpush.msra.mxu0 %v2699
    %2760 = vmatpush.msra.mxu0 %v2697
    %2761 = vmatpush.msra.mxu0 %v2695
    %2762 = vmatpush.msra.mxu0 %v2693
    %2763 = vmatpush.msra.mxu0 %v2691
    %2764 = vmatmul.f32.gmra.mxu0 %v2686
    %v2765 = vpop.f32.mrf.mxu0
    %v2766 = vadd.f32 0.0, %v2765
    %2767 = vmatmul.f32.gmra.mxu0 %v2687
    %v2768 = vpop.f32.mrf.mxu0
    %v2769 = vadd.f32 0.0, %v2768
    %2770 = vmatmul.f32.gmra.mxu0 %v2688
    %v2771 = vpop.f32.mrf.mxu0
    %v2772 = vadd.f32 0.0, %v2771
    %2773 = vdwg.mxu0
    %v2774 = vadd.f32 %v2652, %v2740
    %v2775 = vadd.f32 %v2678, %v2766
    %v2776 = vadd.f32 %v2655, %v2743
    %v2777 = vadd.f32 %v2681, %v2769
    %v2778 = vadd.f32 %v2658, %v2746
    %v2779 = vadd.f32 %v2684, %v2772
    %v2780 = vld [vmem:[%s6] sm:$0xff]
    %v2781 = vld [vmem:[%s19] sm:$0x3]
    %v2783 = vperm.slane %v2781, 0
    %v2784 = vperm.slane %v2781, 1
    %vm2787 = vcmask 138240
    %v2789 = vsel %vm2787, %v2780, 0
    %vm2791 = vcmask 1040384
    %v2793 = vsel %vm2791, %v2778, 0
    %v2796 = vsel %vm2791, %v2779, 0
    %2798 = vmatpush.msra.mxu0 0.0
    %2799 = vmatpush.msra.mxu0 0.0
    %2800 = vmatpush.msra.mxu0 0.0
    %2801 = vmatpush.msra.mxu0 0.0
    %2802 = vmatpush.msra.mxu0 0.0
    %2803 = vmatpush.msra.mxu0 0.0
    %2804 = vmatpush.msra.mxu0 0.0
    %2805 = vmatpush.msra.mxu0 0.0
    %2806 = vmatpush.msra.mxu0 0.0
    %2807 = vmatpush.msra.mxu0 0.0
    %2808 = vmatpush.msra.mxu0 0.0
    %2809 = vmatpush.msra.mxu0 0.0
    %2810 = vmatpush.msra.mxu0 0.0
    %2811 = vmatpush.msra.mxu0 %v2793
    %2812 = vmatpush.msra.mxu0 %v2776
    %2813 = vmatpush.msra.mxu0 %v2774
    %2814 = vmatmul.f32.gmra.mxu0 %v2789
    %v2815 = vpop.f32.mrf.mxu0
    %v2816 = vadd.f32 %v2783, %v2815
    %2817 = vdwg.mxu0
    %2818 = vmatpush.msra.mxu0 0.0
    %2819 = vmatpush.msra.mxu0 0.0
    %2820 = vmatpush.msra.mxu0 0.0
    %2821 = vmatpush.msra.mxu0 0.0
    %2822 = vmatpush.msra.mxu0 0.0
    %2823 = vmatpush.msra.mxu0 0.0
    %2824 = vmatpush.msra.mxu0 0.0
    %2825 = vmatpush.msra.mxu0 0.0
    %2826 = vmatpush.msra.mxu0 0.0
    %2827 = vmatpush.msra.mxu0 0.0
    %2828 = vmatpush.msra.mxu0 0.0
    %2829 = vmatpush.msra.mxu0 0.0
    %2830 = vmatpush.msra.mxu0 0.0
    %2831 = vmatpush.msra.mxu0 %v2796
    %2832 = vmatpush.msra.mxu0 %v2777
    %2833 = vmatpush.msra.mxu0 %v2775
    %2834 = vmatmul.f32.gmra.mxu0 %v2789
    %v2835 = vpop.f32.mrf.mxu0
    %v2836 = vadd.f32 %v2784, %v2835
    %2837 = vdwg.mxu0
    %v2838 = vmax.f32 %v2816, 0.0
    %v2839 = vmax.f32 %v2836, 0.0
    %v2840 = vld [vmem:[%s7] sm:$0x3]
    %vm2841 = vcmask 64512
    %v2843 = vsel %vm2841, %v2840, 0
    %2845 = vmatpush.msra.mxu0 0.0
    %2846 = vmatpush.msra.mxu0 0.0
    %2847 = vmatpush.msra.mxu0 0.0
    %2848 = vmatpush.msra.mxu0 0.0
    %2849 = vmatpush.msra.mxu0 0.0
    %2850 = vmatpush.msra.mxu0 0.0
    %2851 = vmatpush.msra.mxu0 0.0
    %2852 = vmatpush.msra.mxu0 0.0
    %2853 = vmatpush.msra.mxu0 0.0
    %2854 = vmatpush.msra.mxu0 0.0
    %2855 = vmatpush.msra.mxu0 0.0
    %2856 = vmatpush.msra.mxu0 0.0
    %2857 = vmatpush.msra.mxu0 0.0
    %2858 = vmatpush.msra.mxu0 0.0
    %2859 = vmatpush.msra.mxu0 0.0
    %2860 = vmatpush.msra.mxu0 %v2838
    %2861 = vmatmul.f32.gmra.mxu0 %v2843
    %v2862 = vpop.f32.mrf.mxu0
    %v2863 = vadd.f32 0.0, %v2862
    %2864 = vdwg.mxu0
    %2865 = vmatpush.msra.mxu0 0.0
    %2866 = vmatpush.msra.mxu0 0.0
    %2867 = vmatpush.msra.mxu0 0.0
    %2868 = vmatpush.msra.mxu0 0.0
    %2869 = vmatpush.msra.mxu0 0.0
    %2870 = vmatpush.msra.mxu0 0.0
    %2871 = vmatpush.msra.mxu0 0.0
    %2872 = vmatpush.msra.mxu0 0.0
    %2873 = vmatpush.msra.mxu0 0.0
    %2874 = vmatpush.msra.mxu0 0.0
    %2875 = vmatpush.msra.mxu0 0.0
    %2876 = vmatpush.msra.mxu0 0.0
    %2877 = vmatpush.msra.mxu0 0.0
    %2878 = vmatpush.msra.mxu0 0.0
    %2879 = vmatpush.msra.mxu0 0.0
    %2880 = vmatpush.msra.mxu0 %v2839
    %2881 = vmatmul.f32.gmra.mxu0 %v2843
    %v2882 = vpop.f32.mrf.mxu0
    %v2883 = vadd.f32 0.0, %v2882
    %2884 = vdwg.mxu0
    %v2885 = vld [vmem:[#allocation26] sm:$0xff]
    %v2886 = vld [vmem:[#allocation26 + $0x8] sm:$0xff]
    %v2887 = vld [vmem:[#allocation26 + $0x10] sm:$0xff]
    %v2888 = vld [vmem:[#allocation26 + $0x18] sm:$0xff]
    %v2889 = vld [vmem:[#allocation26 + $0x20] sm:$0xff]
    %v2890 = vld [vmem:[#allocation26 + $0x28] sm:$0xff]
    %v2891 = vld [vmem:[#allocation26 + $0x30] sm:$0xff]
    %v2892 = vld [vmem:[#allocation26 + $0x38] sm:$0xff]
    %v2893 = vld [vmem:[#allocation26 + $0x40] sm:$0xff]
    %v2894 = vld [vmem:[#allocation26 + $0x48] sm:$0xff]
    %v2895 = vld [vmem:[#allocation26 + $0x50] sm:$0xff]
    %v2896 = vld [vmem:[#allocation26 + $0x58] sm:$0xff]
    %v2897 = vld [vmem:[#allocation26 + $0x60] sm:$0xff]
    %v2898 = vld [vmem:[#allocation26 + $0x68] sm:$0xff]
    %v2899 = vld [vmem:[#allocation26 + $0x70] sm:$0xff]
    %v2900 = vld [vmem:[#allocation26 + $0x78] sm:$0xff]
    %v2901 = vld [vmem:[#allocation26 + $0x80] sm:$0xff]
    %v2902 = vld [vmem:[#allocation26 + $0x88] sm:$0xff]
    %v2903 = vld [vmem:[#allocation26 + $0x90] sm:$0xff]
    %v2904 = vld [vmem:[#allocation26 + $0x98] sm:$0xff]
    %v2905 = vld [vmem:[#allocation26 + $0xa0] sm:$0xff]
    %v2906 = vld [vmem:[#allocation26 + $0xa8] sm:$0xff]
    %v2907 = vld [vmem:[#allocation26 + $0xb0] sm:$0xff]
    %v2908 = vld [vmem:[#allocation26 + $0xb8] sm:$0xff]
    %v2909 = vld [vmem:[#allocation26 + $0xc0] sm:$0xff]
    %v2910 = vld [vmem:[#allocation26 + $0xc8] sm:$0xff]
    %v2911 = vld [vmem:[#allocation26 + $0xd0] sm:$0xff]
    %v2912 = vld [vmem:[#allocation26 + $0xd8] sm:$0xff]
    %v2913 = vld [vmem:[#allocation26 + $0xe0] sm:$0xff]
    %v2914 = vld [vmem:[#allocation26 + $0xe8] sm:$0xff]
    %v2915 = vld [vmem:[#allocation26 + $0xf0] sm:$0xff]
    %v2916 = vld [vmem:[#allocation26 + $0xf8] sm:$0xff]
    %v2917 = vld [vmem:[#allocation27] sm:$0x1]
    %v2919 = vperm.slane %v2917, 0
    %2921 = vmatpush.msra.mxu0 %v2900
    %2922 = vmatpush.msra.mxu0 %v2899
    %2923 = vmatpush.msra.mxu0 %v2898
    %2924 = vmatpush.msra.mxu0 %v2897
    %2925 = vmatpush.msra.mxu0 %v2896
    %2926 = vmatpush.msra.mxu0 %v2895
    %2927 = vmatpush.msra.mxu0 %v2894
    %2928 = vmatpush.msra.mxu0 %v2893
    %2929 = vmatpush.msra.mxu0 %v2892
    %2930 = vmatpush.msra.mxu0 %v2891
    %2931 = vmatpush.msra.mxu0 %v2890
    %2932 = vmatpush.msra.mxu0 %v2889
    %2933 = vmatpush.msra.mxu0 %v2888
    %2934 = vmatpush.msra.mxu0 %v2887
    %2935 = vmatpush.msra.mxu0 %v2886
    %2936 = vmatpush.msra.mxu0 %v2885
    %2937 = vmatmul.f32.gmra.mxu0 %v2863
    %v2938 = vpop.f32.mrf.mxu0
    %v2939 = vadd.f32 %v2919, %v2938
    %2940 = vdwg.mxu0
    %2941 = vmatpush.msra.mxu0 %v2916
    %2942 = vmatpush.msra.mxu0 %v2915
    %2943 = vmatpush.msra.mxu0 %v2914
    %2944 = vmatpush.msra.mxu0 %v2913
    %2945 = vmatpush.msra.mxu0 %v2912
    %2946 = vmatpush.msra.mxu0 %v2911
    %2947 = vmatpush.msra.mxu0 %v2910
    %2948 = vmatpush.msra.mxu0 %v2909
    %2949 = vmatpush.msra.mxu0 %v2908
    %2950 = vmatpush.msra.mxu0 %v2907
    %2951 = vmatpush.msra.mxu0 %v2906
    %2952 = vmatpush.msra.mxu0 %v2905
    %2953 = vmatpush.msra.mxu0 %v2904
    %2954 = vmatpush.msra.mxu0 %v2903
    %2955 = vmatpush.msra.mxu0 %v2902
    %2956 = vmatpush.msra.mxu0 %v2901
    %2957 = vmatmul.f32.gmra.mxu0 %v2883
    %v2958 = vpop.f32.mrf.mxu0
    %v2959 = vadd.f32 %v2939, %v2958
    %2960 = vdwg.mxu0
    %v2961 = vmax.f32 %v2959, 0.0
    %v2962 = vld [vmem:[%s22] sm:$0xff]
    %v2963 = vld [vmem:[%s22 + $0x8] sm:$0xff]
    %v2964 = vld [vmem:[%s22 + $0x10] sm:$0xff]
    %v2965 = vld [vmem:[%s22 + $0x18] sm:$0xff]
    %v2966 = vld [vmem:[%s22 + $0x20] sm:$0xff]
    %v2967 = vld [vmem:[%s22 + $0x28] sm:$0xff]
    %v2968 = vld [vmem:[%s22 + $0x30] sm:$0xff]
    %v2969 = vld [vmem:[%s22 + $0x38] sm:$0xff]
    %v2970 = vld [vmem:[%s22 + $0x40] sm:$0xff]
    %v2971 = vld [vmem:[%s22 + $0x48] sm:$0xff]
    %v2972 = vld [vmem:[%s22 + $0x50] sm:$0xff]
    %v2973 = vld [vmem:[%s22 + $0x58] sm:$0xff]
    %v2974 = vld [vmem:[%s22 + $0x60] sm:$0xff]
    %v2975 = vld [vmem:[%s22 + $0x68] sm:$0xff]
    %v2976 = vld [vmem:[%s22 + $0x70] sm:$0xff]
    %v2977 = vld [vmem:[%s22 + $0x78] sm:$0xff]
    %v2978 = vld [vmem:[#allocation29] sm:$0x1]
    %v2980 = vperm.slane %v2978, 0
    %2982 = vmatpush.msra.mxu0 %v2977
    %2983 = vmatpush.msra.mxu0 %v2976
    %2984 = vmatpush.msra.mxu0 %v2975
    %2985 = vmatpush.msra.mxu0 %v2974
    %2986 = vmatpush.msra.mxu0 %v2973
    %2987 = vmatpush.msra.mxu0 %v2972
    %2988 = vmatpush.msra.mxu0 %v2971
    %2989 = vmatpush.msra.mxu0 %v2970
    %2990 = vmatpush.msra.mxu0 %v2969
    %2991 = vmatpush.msra.mxu0 %v2968
    %2992 = vmatpush.msra.mxu0 %v2967
    %2993 = vmatpush.msra.mxu0 %v2966
    %2994 = vmatpush.msra.mxu0 %v2965
    %2995 = vmatpush.msra.mxu0 %v2964
    %2996 = vmatpush.msra.mxu0 %v2963
    %2997 = vmatpush.msra.mxu0 %v2962
    %2998 = vmatmul.f32.gmra.mxu0 %v2961
    %v2999 = vpop.f32.mrf.mxu0
    %v3000 = vadd.f32 %v2980, %v2999
    %3001 = vdwg.mxu0
    %v3002 = vmax.f32 %v3000, 0.0
    %v3003 = vld [vmem:[%s24] sm:$0xff]
    %v3004 = vld [vmem:[%s24 + $0x8] sm:$0xff]
    %v3005 = vld [vmem:[%s24 + $0x10] sm:$0xff]
    %v3006 = vld [vmem:[%s24 + $0x18] sm:$0xff]
    %v3007 = vld [vmem:[%s24 + $0x20] sm:$0xff]
    %v3008 = vld [vmem:[%s24 + $0x28] sm:$0xff]
    %v3009 = vld [vmem:[%s24 + $0x30] sm:$0xff]
    %v3010 = vld [vmem:[%s24 + $0x38] sm:$0xff]
    %v3011 = vld [vmem:[#allocation30] sm:$0x1]
    %v3013 = vperm.slane %v3011, 0
    %v3016 = vsel %vm1766, %v3002, 0
    %3018 = vmatpush.msra.mxu0 0.0
    %3019 = vmatpush.msra.mxu0 0.0
    %3020 = vmatpush.msra.mxu0 0.0
    %3021 = vmatpush.msra.mxu0 0.0
    %3022 = vmatpush.msra.mxu0 0.0
    %3023 = vmatpush.msra.mxu0 0.0
    %3024 = vmatpush.msra.mxu0 0.0
    %3025 = vmatpush.msra.mxu0 0.0
    %3026 = vmatpush.msra.mxu0 %v3010
    %3027 = vmatpush.msra.mxu0 %v3009
    %3028 = vmatpush.msra.mxu0 %v3008
    %3029 = vmatpush.msra.mxu0 %v3007
    %3030 = vmatpush.msra.mxu0 %v3006
    %3031 = vmatpush.msra.mxu0 %v3005
    %3032 = vmatpush.msra.mxu0 %v3004
    %3033 = vmatpush.msra.mxu0 %v3003
    %3034 = vmatmul.f32.gmra.mxu0 %v3016
    %v3035 = vpop.f32.mrf.mxu0
    %v3036 = vadd.f32 %v3013, %v3035
    %3037 = vdwg.mxu0
    %vm3038 = vcmask 17408
    %3039 = vst.msk [vmem:[#allocation32] sm:$0x3] %vm3038, %v3036
    // Predicated region
    $region178: #{pallet_pose_cnn_forward.1} parent=1 // pred_check
      _
    $region179: #{pallet_pose_cnn_forward.1} parent=1 // pred_check_branch
      %3041 = sbr.rel (0) target = $region181
    $region180: #{pallet_pose_cnn_forward.1} parent=1 // pred_region
      %3043 = vsyncadd [#allocation5], 0
      %s3045 = sshll.u32 [#allocation32], 4
      %s3046 = int_to_ptr.vmem [resolvable:$true] %s3045
      %s3047 = sshll.u32 %s26, 4
      %s3048 = int_to_ptr.hbm [resolvable:$true] %s3047
      %3050 = dma.vmem_to_hbm [thread:$0]  %s3046, 32, %s3048, [#allocation5]
    $region181: #{pallet_pose_cnn_forward.1} parent=1 // pred_fallthru
      _
    // Predicated region
    $region182: #{pallet_pose_cnn_forward.1} parent=1 // pred_check
      _
    $region183: #{pallet_pose_cnn_forward.1} parent=1 // pred_check_branch
      %3052 = sbr.rel (0) target = $region185
    $region184: #{pallet_pose_cnn_forward.1} parent=1 // pred_region
      %3054 = dma.done [#allocation5], 32
    $region185: #{pallet_pose_cnn_forward.1} parent=1 // pred_fallthru
      _
    %3055 = vsyncpa [#allocation4], 1
    %3056 = vsyncpa [#allocation7], 1
    %3057 = vsyncpa [#allocation10], 1
    %3058 = vsyncpa [#allocation13], 1
    %3059 = vsyncpa [#allocation16], 1
    %3060 = vsyncpa [#allocation19], 1
    %3061 = vsyncpa [#allocation22], 1
    %3062 = vsyncpa [#allocation25], 1
    %3063 = vsyncpa [#allocation28], 1
    %3064 = vsyncpa [#allocation31], 1
    %3065 = vsyncpa [#allocation5], 1

</llo_original>
